<compile_context>
chip_gen: v5e
topology: v5e:2x2
jax: 0.10.0
libtpu: 0.0.40
codegen_flags: <defaults>
</compile_context>

<pallas_src>
import functools
import jax
import jax.numpy as jnp
from jax.experimental import pallas as pl
from jax.experimental.pallas import tpu as pltpu

# ---- small-BERT config (structure of bert-base, scaled down) ----
VOCAB      = 100
MAX_LEN    = 8      # max_length
HIDDEN     = 64     # encoder hidden size (768 in bert-base)
N_HEADS    = 4
HEAD_DIM   = HIDDEN // N_HEADS
FFN        = 128    # intermediate size
N_LAYERS   = 2
DS_HIDDEN  = 32     # downsampler output dim (the `hidden_dim` ctor arg)
N_CLASSES  = 4
LN_EPS     = 1e-12
ATTN_SCALE = 1.0 / (HEAD_DIM ** 0.5)


def _fs(shape):
    """Full-array BlockSpec for a grid=(1,) kernel."""
    nd = len(shape)
    return pl.BlockSpec(tuple(shape), lambda *_, _n=nd: (0,) * _n)


def _ln(x, g, b):
    """LayerNorm in f32 (elementwise math stays f32 on all generations)."""
    mu = jnp.mean(x, axis=-1, keepdims=True)
    var = jnp.mean((x - mu) ** 2, axis=-1, keepdims=True)
    return (x - mu) * jax.lax.rsqrt(var + LN_EPS) * g + b


def _bf16_dot(a, b):
    """MXU matmul with bf16 operands, f32 accumulation."""
    return jnp.dot(a.astype(jnp.bfloat16), b.astype(jnp.bfloat16),
                   preferred_element_type=jnp.float32)


# ----------------------------- Pallas kernels -----------------------------
def _bert_forward_kernel(ids_ref, mask_ref, wemb_ref, pos_ref, typ_ref,
                         embg_ref, embb_ref,
                         wqkv_ref, bqkv_ref, wo_ref, bo_ref,
                         ln1g_ref, ln1b_ref, w1_ref, b1_ref, w2_ref, b2_ref,
                         ln2g_ref, ln2b_ref,
                         wp_ref, bp_ref, wd_ref, bd_ref, wc_ref, bc_ref,
                         pooled_ref, ds_ref, logits_ref, *, batch, seq):
    """Entire BERT forward (embed -> N layers -> pooler/downsampler/classifier)."""
    m = batch * seq

    # --- embedding: one-hot MXU gather + pos/type add + LayerNorm ---
    ids = ids_ref[...]                                              # (M, 1) int32
    iota = jax.lax.broadcasted_iota(jnp.int32, (m, VOCAB), 1)
    onehot = (iota == ids).astype(jnp.bfloat16)                     # (M, VOCAB)
    x = _bf16_dot(onehot, wemb_ref[...])                            # (M, H) f32
    pos = pos_ref[0:seq, :].astype(jnp.float32)                     # (S, H)
    x = x.reshape(batch, seq, HIDDEN) + pos[None, :, :]
    x = x.reshape(m, HIDDEN) + typ_ref[0:1, :].astype(jnp.float32)  # type-id 0
    h = _ln(x, embg_ref[...], embb_ref[...])

    # --- additive attention-mask bias, computed & broadcast ONCE in-kernel ---
    bias = (1.0 - mask_ref[...].astype(jnp.float32)) * -1e9         # (B, S)
    bias = jnp.broadcast_to(bias[:, None, :], (batch, seq, seq))    # (B, S, S)

    # --- N_LAYERS fused transformer encoder layers (weights stacked on dim 0) ---
    for l in range(N_LAYERS):
        # fused QKV projection: one wide matmul, split on the lane axis
        qkv = _bf16_dot(h, wqkv_ref[l]) + bqkv_ref[l]               # (M, 3H) f32
        q = qkv[:, 0 * HIDDEN:1 * HIDDEN].reshape(batch, seq, HIDDEN)
        k = qkv[:, 1 * HIDDEN:2 * HIDDEN].reshape(batch, seq, HIDDEN)
        v = qkv[:, 2 * HIDDEN:3 * HIDDEN].reshape(batch, seq, HIDDEN)

        # batched attention: one batched einsum per head, context kept in
        # registers and concatenated into a lane-dense (M, HIDDEN) slab.
        ctx_heads = []
        for hd in range(N_HEADS):
            c0 = hd * HEAD_DIM
            qh = q[:, :, c0:c0 + HEAD_DIM].astype(jnp.bfloat16)     # (B, S, D)
            kh = k[:, :, c0:c0 + HEAD_DIM].astype(jnp.bfloat16)
            vh = v[:, :, c0:c0 + HEAD_DIM].astype(jnp.bfloat16)
            s = jnp.einsum('bqd,bkd->bqk', qh, kh,
                           preferred_element_type=jnp.float32)      # (B, S, S) f32
            s = s * ATTN_SCALE + bias
            s = s - jnp.max(s, axis=-1, keepdims=True)
            p = jnp.exp(s)
            p = p * pl.reciprocal(jnp.sum(p, axis=-1, keepdims=True), approx=True)
            ctx_heads.append(
                jnp.einsum('bqk,bkd->bqd', p.astype(jnp.bfloat16), vh,
                           preferred_element_type=jnp.float32))     # (B, S, D) f32
        ctx = jnp.concatenate(ctx_heads, axis=-1).reshape(m, HIDDEN)

        # output projection + residual + LayerNorm (fused epilogue)
        attn_out = _bf16_dot(ctx, wo_ref[l]) + bo_ref[l]
        h1 = _ln(h + attn_out, ln1g_ref[l], ln1b_ref[l])

        # FFN + residual + LayerNorm (fused)
        ffn = _bf16_dot(h1, w1_ref[l]) + b1_ref[l]
        ffn = jax.nn.gelu(ffn)   # TODO(synk): tanh-approx GELU; HF BERT uses erf GELU
        ffn = _bf16_dot(ffn, w2_ref[l]) + b2_ref[l]
        h = _ln(h1 + ffn, ln2g_ref[l], ln2b_ref[l])

    # --- CLS rows (extracted in-kernel) + pooler + downsampler + classifier ---
    cls = jnp.concatenate([h[b * seq:b * seq + 1, :] for b in range(batch)], axis=0)
    pooled = jnp.tanh(_bf16_dot(cls, wp_ref[...]) + bp_ref[...])
    ds = _bf16_dot(pooled, wd_ref[...]) + bd_ref[...]
    logits = _bf16_dot(ds, wc_ref[...]) + bc_ref[...]
    pooled_ref[...] = pooled.astype(pooled_ref.dtype)
    ds_ref[...] = ds.astype(ds_ref.dtype)
    logits_ref[...] = logits.astype(logits_ref.dtype)


def _linear_kernel(x_ref, w_ref, b_ref, o_ref):
    y = _bf16_dot(x_ref[...], w_ref[...]) + b_ref[...]
    o_ref[...] = y.astype(o_ref.dtype)


# ----------------------------- kernel wrappers -----------------------------
_CPARAMS = pltpu.CompilerParams(dimension_semantics=("arbitrary",))


def bert_full(input_ids, attention_mask, params):
    """One fused pallas_call: embedding + all layers + pooler/downsampler/classifier."""
    B, S = input_ids.shape
    M = B * S
    ids2d = input_ids.reshape(M, 1).astype(jnp.int32)
    mask = attention_mask.astype(jnp.int32)
    kernel = functools.partial(_bert_forward_kernel, batch=B, seq=S)
    ins = [ids2d, mask,
           params["word_emb"], params["pos_emb"], params["type_emb"],
           params["emb_ln_g"], params["emb_ln_b"],
           params["wqkv"], params["bqkv"], params["wo"], params["bo"],
           params["ln1_g"], params["ln1_b"],
           params["w1"], params["b1"], params["w2"], params["b2"],
           params["ln2_g"], params["ln2_b"],
           params["wp"], params["bp"], params["wd"], params["bd"],
           params["wc"], params["bc"]]
    return pl.pallas_call(
        kernel,
        out_shape=(jax.ShapeDtypeStruct((B, HIDDEN), jnp.float32),
                   jax.ShapeDtypeStruct((B, DS_HIDDEN), jnp.float32),
                   jax.ShapeDtypeStruct((B, N_CLASSES), jnp.float32)),
        grid=(1,),
        in_specs=[_fs(t.shape) for t in ins],
        out_specs=(_fs((B, HIDDEN)), _fs((B, DS_HIDDEN)), _fs((B, N_CLASSES))),
        compiler_params=_CPARAMS,
    )(*ins)


def classifier_only(x, params):
    x = x.astype(jnp.float32)
    M = x.shape[0]
    ins = [x, params["wc"], params["bc"]]
    return pl.pallas_call(
        _linear_kernel,
        out_shape=jax.ShapeDtypeStruct((M, N_CLASSES), jnp.float32),
        grid=(1,),
        in_specs=[_fs(t.shape) for t in ins],
        out_specs=_fs((M, N_CLASSES)),
        compiler_params=_CPARAMS,
    )(*ins)


# ----------------------------- parameter init -----------------------------
def init_params(key):
    # Matmul weights stored bf16 (MXU-native on v5e/v6e/v7x, halves DMA bytes);
    # biases & LayerNorm params stay f32 (elementwise math kept in f32).
    def nrm(k, shape):
        return (jax.random.normal(k, shape, jnp.float32) * 0.02).astype(jnp.bfloat16)

    keys = iter(jax.random.split(key, 16))
    f32 = jnp.float32
    return {
        "word_emb": nrm(next(keys), (VOCAB, HIDDEN)),
        "pos_emb":  nrm(next(keys), (MAX_LEN, HIDDEN)),
        "type_emb": nrm(next(keys), (2, HIDDEN)),
        "emb_ln_g": jnp.ones((1, HIDDEN), f32),
        "emb_ln_b": jnp.zeros((1, HIDDEN), f32),
        # per-layer weights stacked on a leading layer dim (indexed in-kernel)
        "wqkv":  nrm(next(keys), (N_LAYERS, HIDDEN, 3 * HIDDEN)),
        "bqkv":  jnp.zeros((N_LAYERS, 1, 3 * HIDDEN), f32),
        "wo":    nrm(next(keys), (N_LAYERS, HIDDEN, HIDDEN)),
        "bo":    jnp.zeros((N_LAYERS, 1, HIDDEN), f32),
        "ln1_g": jnp.ones((N_LAYERS, 1, HIDDEN), f32),
        "ln1_b": jnp.zeros((N_LAYERS, 1, HIDDEN), f32),
        "w1":    nrm(next(keys), (N_LAYERS, HIDDEN, FFN)),
        "b1":    jnp.zeros((N_LAYERS, 1, FFN), f32),
        "w2":    nrm(next(keys), (N_LAYERS, FFN, HIDDEN)),
        "b2":    jnp.zeros((N_LAYERS, 1, HIDDEN), f32),
        "ln2_g": jnp.ones((N_LAYERS, 1, HIDDEN), f32),
        "ln2_b": jnp.zeros((N_LAYERS, 1, HIDDEN), f32),
        # pooler / downsampler / classifier
        "wp": nrm(next(keys), (HIDDEN, HIDDEN)),     "bp": jnp.zeros((1, HIDDEN), f32),
        "wd": nrm(next(keys), (HIDDEN, DS_HIDDEN)),  "bd": jnp.zeros((1, DS_HIDDEN), f32),
        "wc": nrm(next(keys), (DS_HIDDEN, N_CLASSES)), "bc": jnp.zeros((1, N_CLASSES), f32),
    }


# ------------------------------- forward ----------------------------------
def bert_base_forward(params, inputs, attention_mask=None, out_from="full"):
    if out_from == "linear":
        # forward(inputs, out_from='linear'): inputs is a [B, DS_HIDDEN] float tensor
        return classifier_only(inputs, params)

    input_ids = inputs
    B, S = input_ids.shape
    if attention_mask is None:
        attention_mask = jnp.ones((B, S), jnp.int32)

    pooled, ds, logits = bert_full(input_ids, attention_mask, params)

    if out_from == "transformers":
        return pooled
    if out_from == "downsampler":
        return ds
    if out_from == "full":
        return logits
    raise ValueError("Invalid value of argument")


# --------------------------------- main ------------------------------------
if __name__ == "__main__":
    key = jax.random.PRNGKey(0)
    pkey, ikey, fkey = jax.random.split(key, 3)
    params = init_params(pkey)

    B = 2
    input_ids = jax.random.randint(ikey, (B, MAX_LEN), 0, VOCAB, dtype=jnp.int32)
    attention_mask = jnp.array([[1, 1, 1, 1, 1, 1, 1, 1],
                                [1, 1, 1, 1, 1, 0, 0, 0]], dtype=jnp.int32)

    logits = bert_base_forward(params, input_ids, attention_mask, out_from="full")
    pooled = bert_base_forward(params, input_ids, attention_mask, out_from="transformers")
    ds_out = bert_base_forward(params, input_ids, attention_mask, out_from="downsampler")
    no_mask = bert_base_forward(params, input_ids, out_from="full")   # default all-ones mask
    feats = jax.random.normal(fkey, (B, DS_HIDDEN), jnp.float32)
    lin_out = bert_base_forward(params, feats, out_from="linear")
    jax.block_until_ready((logits, pooled, ds_out, no_mask, lin_out))

    assert logits.shape == (B, N_CLASSES)
    assert pooled.shape == (B, HIDDEN)
    assert ds_out.shape == (B, DS_HIDDEN)
    assert no_mask.shape == (B, N_CLASSES)
    assert lin_out.shape == (B, N_CLASSES)
    assert bool(jnp.all(jnp.isfinite(logits)))
    assert bool(jnp.all(jnp.isfinite(pooled)))
    assert bool(jnp.all(jnp.isfinite(lin_out)))
    print("KERNEL_OK")
</pallas_src>

<mosaic_0001>
module attributes {stable_mosaic.version = 11 : i64} {
  func.func @_bert_forward_kernel(%arg0: i32, %arg1: memref<16x1xi32, #tpu.memory_space<vmem>>, %arg2: memref<2x8xi32, #tpu.memory_space<vmem>>, %arg3: memref<100x64xbf16, #tpu.memory_space<vmem>>, %arg4: memref<8x64xbf16, #tpu.memory_space<vmem>>, %arg5: memref<2x64xbf16, #tpu.memory_space<vmem>>, %arg6: memref<1x64xf32, #tpu.memory_space<vmem>>, %arg7: memref<1x64xf32, #tpu.memory_space<vmem>>, %arg8: memref<2x64x192xbf16, #tpu.memory_space<vmem>>, %arg9: memref<2x1x192xf32, #tpu.memory_space<vmem>>, %arg10: memref<2x64x64xbf16, #tpu.memory_space<vmem>>, %arg11: memref<2x1x64xf32, #tpu.memory_space<vmem>>, %arg12: memref<2x1x64xf32, #tpu.memory_space<vmem>>, %arg13: memref<2x1x64xf32, #tpu.memory_space<vmem>>, %arg14: memref<2x64x128xbf16, #tpu.memory_space<vmem>>, %arg15: memref<2x1x128xf32, #tpu.memory_space<vmem>>, %arg16: memref<2x128x64xbf16, #tpu.memory_space<vmem>>, %arg17: memref<2x1x64xf32, #tpu.memory_space<vmem>>, %arg18: memref<2x1x64xf32, #tpu.memory_space<vmem>>, %arg19: memref<2x1x64xf32, #tpu.memory_space<vmem>>, %arg20: memref<64x64xbf16, #tpu.memory_space<vmem>>, %arg21: memref<1x64xf32, #tpu.memory_space<vmem>>, %arg22: memref<64x32xbf16, #tpu.memory_space<vmem>>, %arg23: memref<1x32xf32, #tpu.memory_space<vmem>>, %arg24: memref<32x4xbf16, #tpu.memory_space<vmem>>, %arg25: memref<1x4xf32, #tpu.memory_space<vmem>>, %arg26: memref<2x64xf32, #tpu.memory_space<vmem>>, %arg27: memref<2x32xf32, #tpu.memory_space<vmem>>, %arg28: memref<2x4xf32, #tpu.memory_space<vmem>>) attributes {dimension_semantics = [#tpu.dimension_semantics<arbitrary>], iteration_bounds = array<i64: 1>, scalar_prefetch = 0 : i64, scratch_operands = 0 : i64, tpu.core_type = #tpu.core_type<tc>, window_params = [{pipeline_mode = #tpu.pipeline_mode<synchronous>, transform_indices = @transform_0, window_bounds = array<i64: 16, 1>}, {pipeline_mode = #tpu.pipeline_mode<synchronous>, transform_indices = @transform_1, window_bounds = array<i64: 2, 8>}, {pipeline_mode = #tpu.pipeline_mode<synchronous>, transform_indices = @transform_2, window_bounds = array<i64: 100, 64>}, {pipeline_mode = #tpu.pipeline_mode<synchronous>, transform_indices = @transform_3, window_bounds = array<i64: 8, 64>}, {pipeline_mode = #tpu.pipeline_mode<synchronous>, transform_indices = @transform_4, window_bounds = array<i64: 2, 64>}, {pipeline_mode = #tpu.pipeline_mode<synchronous>, transform_indices = @transform_5, window_bounds = array<i64: 1, 64>}, {pipeline_mode = #tpu.pipeline_mode<synchronous>, transform_indices = @transform_6, window_bounds = array<i64: 1, 64>}, {pipeline_mode = #tpu.pipeline_mode<synchronous>, transform_indices = @transform_7, window_bounds = array<i64: 2, 64, 192>}, {pipeline_mode = #tpu.pipeline_mode<synchronous>, transform_indices = @transform_8, window_bounds = array<i64: 2, 1, 192>}, {pipeline_mode = #tpu.pipeline_mode<synchronous>, transform_indices = @transform_9, window_bounds = array<i64: 2, 64, 64>}, {pipeline_mode = #tpu.pipeline_mode<synchronous>, transform_indices = @transform_10, window_bounds = array<i64: 2, 1, 64>}, {pipeline_mode = #tpu.pipeline_mode<synchronous>, transform_indices = @transform_11, window_bounds = array<i64: 2, 1, 64>}, {pipeline_mode = #tpu.pipeline_mode<synchronous>, transform_indices = @transform_12, window_bounds = array<i64: 2, 1, 64>}, {pipeline_mode = #tpu.pipeline_mode<synchronous>, transform_indices = @transform_13, window_bounds = array<i64: 2, 64, 128>}, {pipeline_mode = #tpu.pipeline_mode<synchronous>, transform_indices = @transform_14, window_bounds = array<i64: 2, 1, 128>}, {pipeline_mode = #tpu.pipeline_mode<synchronous>, transform_indices = @transform_15, window_bounds = array<i64: 2, 128, 64>}, {pipeline_mode = #tpu.pipeline_mode<synchronous>, transform_indices = @transform_16, window_bounds = array<i64: 2, 1, 64>}, {pipeline_mode = #tpu.pipeline_mode<synchronous>, transform_indices = @transform_17, window_bounds = array<i64: 2, 1, 64>}, {pipeline_mode = #tpu.pipeline_mode<synchronous>, transform_indices = @transform_18, window_bounds = array<i64: 2, 1, 64>}, {pipeline_mode = #tpu.pipeline_mode<synchronous>, transform_indices = @transform_19, window_bounds = array<i64: 64, 64>}, {pipeline_mode = #tpu.pipeline_mode<synchronous>, transform_indices = @transform_20, window_bounds = array<i64: 1, 64>}, {pipeline_mode = #tpu.pipeline_mode<synchronous>, transform_indices = @transform_21, window_bounds = array<i64: 64, 32>}, {pipeline_mode = #tpu.pipeline_mode<synchronous>, transform_indices = @transform_22, window_bounds = array<i64: 1, 32>}, {pipeline_mode = #tpu.pipeline_mode<synchronous>, transform_indices = @transform_23, window_bounds = array<i64: 32, 4>}, {pipeline_mode = #tpu.pipeline_mode<synchronous>, transform_indices = @transform_24, window_bounds = array<i64: 1, 4>}, {pipeline_mode = #tpu.pipeline_mode<synchronous>, transform_indices = @transform_25, window_bounds = array<i64: 2, 64>}, {pipeline_mode = #tpu.pipeline_mode<synchronous>, transform_indices = @transform_26, window_bounds = array<i64: 2, 32>}, {pipeline_mode = #tpu.pipeline_mode<synchronous>, transform_indices = @transform_27, window_bounds = array<i64: 2, 4>}]} {
    %c0 = arith.constant 0 : index
    %c0_0 = arith.constant 0 : index
    %0 = vector.load %arg1[%c0, %c0_0] : memref<16x1xi32, #tpu.memory_space<vmem>>, vector<16x1xi32>
    %1 = tpu.iota {dimensions = array<i32: 1>} : vector<16x100xi32>
    %2 = vector.broadcast %0 : vector<16x1xi32> to vector<16x100xi32>
    %3 = arith.cmpi eq, %1, %2 : vector<16x100xi32>
    %4 = arith.extui %3 : vector<16x100xi1> to vector<16x100xi32>
    %5 = arith.sitofp %4 : vector<16x100xi32> to vector<16x100xf32>
    %6 = arith.truncf %5 : vector<16x100xf32> to vector<16x100xbf16>
    %c0_1 = arith.constant 0 : index
    %c0_2 = arith.constant 0 : index
    %7 = vector.load %arg3[%c0_1, %c0_2] : memref<100x64xbf16, #tpu.memory_space<vmem>>, vector<100x64xbf16>
    %cst = arith.constant dense<0.000000e+00> : vector<16x64xf32>
    %8 = tpu.matmul %6, %7, %cst {dimension_numbers = #tpu.dot_dimension_numbers<[1], [0], [0], [1], [0, 0, 1, 1], [], []>} : vector<16x100xbf16>, vector<100x64xbf16>, vector<16x64xf32> -> vector<16x64xf32>
    %c0_3 = arith.constant 0 : index
    %c0_4 = arith.constant 0 : index
    %9 = vector.load %arg4[%c0_3, %c0_4] : memref<8x64xbf16, #tpu.memory_space<vmem>>, vector<8x64xbf16>
    %10 = arith.extf %9 : vector<8x64xbf16> to vector<8x64xf32>
    %11 = vector.shape_cast %8 : vector<16x64xf32> to vector<2x8x64xf32>
    %12 = vector.shape_cast %10 : vector<8x64xf32> to vector<1x8x64xf32>
    %13 = vector.broadcast %12 : vector<1x8x64xf32> to vector<2x8x64xf32>
    %14 = arith.addf %11, %13 : vector<2x8x64xf32>
    %15 = vector.shape_cast %14 : vector<2x8x64xf32> to vector<16x64xf32>
    %c0_5 = arith.constant 0 : index
    %c0_6 = arith.constant 0 : index
    %16 = vector.load %arg5[%c0_5, %c0_6] : memref<2x64xbf16, #tpu.memory_space<vmem>>, vector<1x64xbf16>
    %17 = arith.extf %16 : vector<1x64xbf16> to vector<1x64xf32>
    %18 = vector.broadcast %17 : vector<1x64xf32> to vector<16x64xf32>
    %19 = arith.addf %15, %18 : vector<16x64xf32>
    %c0_7 = arith.constant 0 : index
    %c0_8 = arith.constant 0 : index
    %20 = vector.load %arg6[%c0_7, %c0_8] : memref<1x64xf32, #tpu.memory_space<vmem>>, vector<1x64xf32>
    %c0_9 = arith.constant 0 : index
    %c0_10 = arith.constant 0 : index
    %21 = vector.load %arg7[%c0_9, %c0_10] : memref<1x64xf32, #tpu.memory_space<vmem>>, vector<1x64xf32>
    %cst_11 = arith.constant dense<0.000000e+00> : vector<16xf32>
    %22 = vector.multi_reduction <add>, %19, %cst_11 [1] : vector<16x64xf32> to vector<16xf32>
    %23 = vector.shape_cast %22 : vector<16xf32> to vector<16x1xf32>
    %cst_12 = arith.constant 6.400000e+01 : f32
    %24 = vector.broadcast %cst_12 : f32 to vector<16x1xf32>
    %25 = arith.divf %23, %24 : vector<16x1xf32>
    %26 = vector.broadcast %25 : vector<16x1xf32> to vector<16x64xf32>
    %27 = arith.subf %19, %26 : vector<16x64xf32>
    %28 = arith.mulf %27, %27 : vector<16x64xf32>
    %cst_13 = arith.constant dense<0.000000e+00> : vector<16xf32>
    %29 = vector.multi_reduction <add>, %28, %cst_13 [1] : vector<16x64xf32> to vector<16xf32>
    %30 = vector.shape_cast %29 : vector<16xf32> to vector<16x1xf32>
    %cst_14 = arith.constant 6.400000e+01 : f32
    %31 = vector.broadcast %cst_14 : f32 to vector<16x1xf32>
    %32 = arith.divf %30, %31 : vector<16x1xf32>
    %33 = vector.broadcast %25 : vector<16x1xf32> to vector<16x64xf32>
    %34 = arith.subf %19, %33 : vector<16x64xf32>
    %cst_15 = arith.constant 9.99999996E-13 : f32
    %35 = vector.broadcast %cst_15 : f32 to vector<16x1xf32>
    %36 = arith.addf %32, %35 : vector<16x1xf32>
    %37 = math.rsqrt %36 : vector<16x1xf32>
    %38 = vector.broadcast %37 : vector<16x1xf32> to vector<16x64xf32>
    %39 = arith.mulf %34, %38 : vector<16x64xf32>
    %40 = vector.broadcast %20 : vector<1x64xf32> to vector<16x64xf32>
    %41 = arith.mulf %39, %40 : vector<16x64xf32>
    %42 = vector.broadcast %21 : vector<1x64xf32> to vector<16x64xf32>
    %43 = arith.addf %41, %42 : vector<16x64xf32>
    %c0_16 = arith.constant 0 : index
    %c0_17 = arith.constant 0 : index
    %44 = vector.load %arg2[%c0_16, %c0_17] : memref<2x8xi32, #tpu.memory_space<vmem>>, vector<2x8xi32>
    %45 = arith.sitofp %44 : vector<2x8xi32> to vector<2x8xf32>
    %cst_18 = arith.constant 1.000000e+00 : f32
    %46 = vector.broadcast %cst_18 : f32 to vector<2x8xf32>
    %47 = arith.subf %46, %45 : vector<2x8xf32>
    %cst_19 = arith.constant -1.000000e+09 : f32
    %48 = vector.broadcast %cst_19 : f32 to vector<2x8xf32>
    %49 = arith.mulf %47, %48 : vector<2x8xf32>
    %50 = vector.shape_cast %49 : vector<2x8xf32> to vector<2x1x8xf32>
    %51 = vector.shape_cast %50 : vector<2x1x8xf32> to vector<2x1x8xf32>
    %52 = vector.broadcast %51 : vector<2x1x8xf32> to vector<2x8x8xf32>
    %c0_20 = arith.constant 0 : index
    %c0_21 = arith.constant 0 : index
    %c0_22 = arith.constant 0 : index
    %53 = vector.load %arg8[%c0_20, %c0_21, %c0_22] : memref<2x64x192xbf16, #tpu.memory_space<vmem>>, vector<1x64x192xbf16>
    %54 = vector.shape_cast %53 : vector<1x64x192xbf16> to vector<64x192xbf16>
    %55 = arith.truncf %43 : vector<16x64xf32> to vector<16x64xbf16>
    %cst_23 = arith.constant dense<0.000000e+00> : vector<16x192xf32>
    %56 = tpu.matmul %55, %54, %cst_23 {dimension_numbers = #tpu.dot_dimension_numbers<[1], [0], [0], [1], [0, 0, 1, 1], [], []>} : vector<16x64xbf16>, vector<64x192xbf16>, vector<16x192xf32> -> vector<16x192xf32>
    %c0_24 = arith.constant 0 : index
    %c0_25 = arith.constant 0 : index
    %c0_26 = arith.constant 0 : index
    %57 = vector.load %arg9[%c0_24, %c0_25, %c0_26] : memref<2x1x192xf32, #tpu.memory_space<vmem>>, vector<1x1x192xf32>
    %58 = vector.shape_cast %57 : vector<1x1x192xf32> to vector<1x192xf32>
    %59 = vector.broadcast %58 : vector<1x192xf32> to vector<16x192xf32>
    %60 = arith.addf %56, %59 : vector<16x192xf32>
    %61 = vector.extract_strided_slice %60 {offsets = [0, 0], sizes = [16, 64], strides = [1, 1]} : vector<16x192xf32> to vector<16x64xf32>
    %62 = vector.shape_cast %61 : vector<16x64xf32> to vector<2x8x64xf32>
    %63 = vector.extract_strided_slice %60 {offsets = [0, 64], sizes = [16, 64], strides = [1, 1]} : vector<16x192xf32> to vector<16x64xf32>
    %64 = vector.shape_cast %63 : vector<16x64xf32> to vector<2x8x64xf32>
    %65 = vector.extract_strided_slice %60 {offsets = [0, 128], sizes = [16, 64], strides = [1, 1]} : vector<16x192xf32> to vector<16x64xf32>
    %66 = vector.shape_cast %65 : vector<16x64xf32> to vector<2x8x64xf32>
    %67 = vector.extract_strided_slice %62 {offsets = [0, 0, 0], sizes = [2, 8, 16], strides = [1, 1, 1]} : vector<2x8x64xf32> to vector<2x8x16xf32>
    %68 = arith.truncf %67 : vector<2x8x16xf32> to vector<2x8x16xbf16>
    %69 = vector.extract_strided_slice %64 {offsets = [0, 0, 0], sizes = [2, 8, 16], strides = [1, 1, 1]} : vector<2x8x64xf32> to vector<2x8x16xf32>
    %70 = arith.truncf %69 : vector<2x8x16xf32> to vector<2x8x16xbf16>
    %71 = vector.extract_strided_slice %66 {offsets = [0, 0, 0], sizes = [2, 8, 16], strides = [1, 1, 1]} : vector<2x8x64xf32> to vector<2x8x16xf32>
    %72 = arith.truncf %71 : vector<2x8x16xf32> to vector<2x8x16xbf16>
    "tpu.trace_start"() <{level = 10 : i32, message = "bqd,bkd->bqk"}> : () -> ()
    %cst_27 = arith.constant dense<0.000000e+00> : vector<2x8x8xf32>
    %73 = tpu.matmul %68, %70, %cst_27 {dimension_numbers = #tpu.dot_dimension_numbers<[2], [2], [1], [1], [0, 0, 0, 1, 1, 1], [0], [0]>} : vector<2x8x16xbf16>, vector<2x8x16xbf16>, vector<2x8x8xf32> -> vector<2x8x8xf32>
    "tpu.trace_stop"() : () -> ()
    %cst_28 = arith.constant 2.500000e-01 : f32
    %74 = vector.broadcast %cst_28 : f32 to vector<2x8x8xf32>
    %75 = arith.mulf %73, %74 : vector<2x8x8xf32>
    %76 = arith.addf %75, %52 : vector<2x8x8xf32>
    %cst_29 = arith.constant dense<0xFF800000> : vector<2x8xf32>
    %77 = vector.multi_reduction <maximumf>, %76, %cst_29 [2] : vector<2x8x8xf32> to vector<2x8xf32>
    %78 = vector.shape_cast %77 : vector<2x8xf32> to vector<2x8x1xf32>
    %79 = vector.broadcast %78 : vector<2x8x1xf32> to vector<2x8x8xf32>
    %80 = arith.subf %76, %79 : vector<2x8x8xf32>
    %81 = math.exp %80 : vector<2x8x8xf32>
    %cst_30 = arith.constant dense<0.000000e+00> : vector<2x8xf32>
    %82 = vector.multi_reduction <add>, %81, %cst_30 [2] : vector<2x8x8xf32> to vector<2x8xf32>
    %83 = vector.shape_cast %82 : vector<2x8xf32> to vector<2x8x1xf32>
    %84 = tpu.reciprocal %83 {approx = true} : vector<2x8x1xf32> -> vector<2x8x1xf32>
    %85 = vector.broadcast %84 : vector<2x8x1xf32> to vector<2x8x8xf32>
    %86 = arith.mulf %81, %85 : vector<2x8x8xf32>
    %87 = arith.truncf %86 : vector<2x8x8xf32> to vector<2x8x8xbf16>
    "tpu.trace_start"() <{level = 10 : i32, message = "bqk,bkd->bqd"}> : () -> ()
    %cst_31 = arith.constant dense<0.000000e+00> : vector<2x8x16xf32>
    %88 = tpu.matmul %87, %72, %cst_31 {dimension_numbers = #tpu.dot_dimension_numbers<[2], [1], [1], [2], [0, 0, 0, 1, 1, 2], [0], [0]>} : vector<2x8x8xbf16>, vector<2x8x16xbf16>, vector<2x8x16xf32> -> vector<2x8x16xf32>
    "tpu.trace_stop"() : () -> ()
    %89 = vector.extract_strided_slice %62 {offsets = [0, 0, 16], sizes = [2, 8, 16], strides = [1, 1, 1]} : vector<2x8x64xf32> to vector<2x8x16xf32>
    %90 = arith.truncf %89 : vector<2x8x16xf32> to vector<2x8x16xbf16>
    %91 = vector.extract_strided_slice %64 {offsets = [0, 0, 16], sizes = [2, 8, 16], strides = [1, 1, 1]} : vector<2x8x64xf32> to vector<2x8x16xf32>
    %92 = arith.truncf %91 : vector<2x8x16xf32> to vector<2x8x16xbf16>
    %93 = vector.extract_strided_slice %66 {offsets = [0, 0, 16], sizes = [2, 8, 16], strides = [1, 1, 1]} : vector<2x8x64xf32> to vector<2x8x16xf32>
    %94 = arith.truncf %93 : vector<2x8x16xf32> to vector<2x8x16xbf16>
    "tpu.trace_start"() <{level = 10 : i32, message = "bqd,bkd->bqk"}> : () -> ()
    %cst_32 = arith.constant dense<0.000000e+00> : vector<2x8x8xf32>
    %95 = tpu.matmul %90, %92, %cst_32 {dimension_numbers = #tpu.dot_dimension_numbers<[2], [2], [1], [1], [0, 0, 0, 1, 1, 1], [0], [0]>} : vector<2x8x16xbf16>, vector<2x8x16xbf16>, vector<2x8x8xf32> -> vector<2x8x8xf32>
    "tpu.trace_stop"() : () -> ()
    %cst_33 = arith.constant 2.500000e-01 : f32
    %96 = vector.broadcast %cst_33 : f32 to vector<2x8x8xf32>
    %97 = arith.mulf %95, %96 : vector<2x8x8xf32>
    %98 = arith.addf %97, %52 : vector<2x8x8xf32>
    %cst_34 = arith.constant dense<0xFF800000> : vector<2x8xf32>
    %99 = vector.multi_reduction <maximumf>, %98, %cst_34 [2] : vector<2x8x8xf32> to vector<2x8xf32>
    %100 = vector.shape_cast %99 : vector<2x8xf32> to vector<2x8x1xf32>
    %101 = vector.broadcast %100 : vector<2x8x1xf32> to vector<2x8x8xf32>
    %102 = arith.subf %98, %101 : vector<2x8x8xf32>
    %103 = math.exp %102 : vector<2x8x8xf32>
    %cst_35 = arith.constant dense<0.000000e+00> : vector<2x8xf32>
    %104 = vector.multi_reduction <add>, %103, %cst_35 [2] : vector<2x8x8xf32> to vector<2x8xf32>
    %105 = vector.shape_cast %104 : vector<2x8xf32> to vector<2x8x1xf32>
    %106 = tpu.reciprocal %105 {approx = true} : vector<2x8x1xf32> -> vector<2x8x1xf32>
    %107 = vector.broadcast %106 : vector<2x8x1xf32> to vector<2x8x8xf32>
    %108 = arith.mulf %103, %107 : vector<2x8x8xf32>
    %109 = arith.truncf %108 : vector<2x8x8xf32> to vector<2x8x8xbf16>
    "tpu.trace_start"() <{level = 10 : i32, message = "bqk,bkd->bqd"}> : () -> ()
    %cst_36 = arith.constant dense<0.000000e+00> : vector<2x8x16xf32>
    %110 = tpu.matmul %109, %94, %cst_36 {dimension_numbers = #tpu.dot_dimension_numbers<[2], [1], [1], [2], [0, 0, 0, 1, 1, 2], [0], [0]>} : vector<2x8x8xbf16>, vector<2x8x16xbf16>, vector<2x8x16xf32> -> vector<2x8x16xf32>
    "tpu.trace_stop"() : () -> ()
    %111 = vector.extract_strided_slice %62 {offsets = [0, 0, 32], sizes = [2, 8, 16], strides = [1, 1, 1]} : vector<2x8x64xf32> to vector<2x8x16xf32>
    %112 = arith.truncf %111 : vector<2x8x16xf32> to vector<2x8x16xbf16>
    %113 = vector.extract_strided_slice %64 {offsets = [0, 0, 32], sizes = [2, 8, 16], strides = [1, 1, 1]} : vector<2x8x64xf32> to vector<2x8x16xf32>
    %114 = arith.truncf %113 : vector<2x8x16xf32> to vector<2x8x16xbf16>
    %115 = vector.extract_strided_slice %66 {offsets = [0, 0, 32], sizes = [2, 8, 16], strides = [1, 1, 1]} : vector<2x8x64xf32> to vector<2x8x16xf32>
    %116 = arith.truncf %115 : vector<2x8x16xf32> to vector<2x8x16xbf16>
    "tpu.trace_start"() <{level = 10 : i32, message = "bqd,bkd->bqk"}> : () -> ()
    %cst_37 = arith.constant dense<0.000000e+00> : vector<2x8x8xf32>
    %117 = tpu.matmul %112, %114, %cst_37 {dimension_numbers = #tpu.dot_dimension_numbers<[2], [2], [1], [1], [0, 0, 0, 1, 1, 1], [0], [0]>} : vector<2x8x16xbf16>, vector<2x8x16xbf16>, vector<2x8x8xf32> -> vector<2x8x8xf32>
    "tpu.trace_stop"() : () -> ()
    %cst_38 = arith.constant 2.500000e-01 : f32
    %118 = vector.broadcast %cst_38 : f32 to vector<2x8x8xf32>
    %119 = arith.mulf %117, %118 : vector<2x8x8xf32>
    %120 = arith.addf %119, %52 : vector<2x8x8xf32>
    %cst_39 = arith.constant dense<0xFF800000> : vector<2x8xf32>
    %121 = vector.multi_reduction <maximumf>, %120, %cst_39 [2] : vector<2x8x8xf32> to vector<2x8xf32>
    %122 = vector.shape_cast %121 : vector<2x8xf32> to vector<2x8x1xf32>
    %123 = vector.broadcast %122 : vector<2x8x1xf32> to vector<2x8x8xf32>
    %124 = arith.subf %120, %123 : vector<2x8x8xf32>
    %125 = math.exp %124 : vector<2x8x8xf32>
    %cst_40 = arith.constant dense<0.000000e+00> : vector<2x8xf32>
    %126 = vector.multi_reduction <add>, %125, %cst_40 [2] : vector<2x8x8xf32> to vector<2x8xf32>
    %127 = vector.shape_cast %126 : vector<2x8xf32> to vector<2x8x1xf32>
    %128 = tpu.reciprocal %127 {approx = true} : vector<2x8x1xf32> -> vector<2x8x1xf32>
    %129 = vector.broadcast %128 : vector<2x8x1xf32> to vector<2x8x8xf32>
    %130 = arith.mulf %125, %129 : vector<2x8x8xf32>
    %131 = arith.truncf %130 : vector<2x8x8xf32> to vector<2x8x8xbf16>
    "tpu.trace_start"() <{level = 10 : i32, message = "bqk,bkd->bqd"}> : () -> ()
    %cst_41 = arith.constant dense<0.000000e+00> : vector<2x8x16xf32>
    %132 = tpu.matmul %131, %116, %cst_41 {dimension_numbers = #tpu.dot_dimension_numbers<[2], [1], [1], [2], [0, 0, 0, 1, 1, 2], [0], [0]>} : vector<2x8x8xbf16>, vector<2x8x16xbf16>, vector<2x8x16xf32> -> vector<2x8x16xf32>
    "tpu.trace_stop"() : () -> ()
    %133 = vector.extract_strided_slice %62 {offsets = [0, 0, 48], sizes = [2, 8, 16], strides = [1, 1, 1]} : vector<2x8x64xf32> to vector<2x8x16xf32>
    %134 = arith.truncf %133 : vector<2x8x16xf32> to vector<2x8x16xbf16>
    %135 = vector.extract_strided_slice %64 {offsets = [0, 0, 48], sizes = [2, 8, 16], strides = [1, 1, 1]} : vector<2x8x64xf32> to vector<2x8x16xf32>
    %136 = arith.truncf %135 : vector<2x8x16xf32> to vector<2x8x16xbf16>
    %137 = vector.extract_strided_slice %66 {offsets = [0, 0, 48], sizes = [2, 8, 16], strides = [1, 1, 1]} : vector<2x8x64xf32> to vector<2x8x16xf32>
    %138 = arith.truncf %137 : vector<2x8x16xf32> to vector<2x8x16xbf16>
    "tpu.trace_start"() <{level = 10 : i32, message = "bqd,bkd->bqk"}> : () -> ()
    %cst_42 = arith.constant dense<0.000000e+00> : vector<2x8x8xf32>
    %139 = tpu.matmul %134, %136, %cst_42 {dimension_numbers = #tpu.dot_dimension_numbers<[2], [2], [1], [1], [0, 0, 0, 1, 1, 1], [0], [0]>} : vector<2x8x16xbf16>, vector<2x8x16xbf16>, vector<2x8x8xf32> -> vector<2x8x8xf32>
    "tpu.trace_stop"() : () -> ()
    %cst_43 = arith.constant 2.500000e-01 : f32
    %140 = vector.broadcast %cst_43 : f32 to vector<2x8x8xf32>
    %141 = arith.mulf %139, %140 : vector<2x8x8xf32>
    %142 = arith.addf %141, %52 : vector<2x8x8xf32>
    %cst_44 = arith.constant dense<0xFF800000> : vector<2x8xf32>
    %143 = vector.multi_reduction <maximumf>, %142, %cst_44 [2] : vector<2x8x8xf32> to vector<2x8xf32>
    %144 = vector.shape_cast %143 : vector<2x8xf32> to vector<2x8x1xf32>
    %145 = vector.broadcast %144 : vector<2x8x1xf32> to vector<2x8x8xf32>
    %146 = arith.subf %142, %145 : vector<2x8x8xf32>
    %147 = math.exp %146 : vector<2x8x8xf32>
    %cst_45 = arith.constant dense<0.000000e+00> : vector<2x8xf32>
    %148 = vector.multi_reduction <add>, %147, %cst_45 [2] : vector<2x8x8xf32> to vector<2x8xf32>
    %149 = vector.shape_cast %148 : vector<2x8xf32> to vector<2x8x1xf32>
    %150 = tpu.reciprocal %149 {approx = true} : vector<2x8x1xf32> -> vector<2x8x1xf32>
    %151 = vector.broadcast %150 : vector<2x8x1xf32> to vector<2x8x8xf32>
    %152 = arith.mulf %147, %151 : vector<2x8x8xf32>
    %153 = arith.truncf %152 : vector<2x8x8xf32> to vector<2x8x8xbf16>
    "tpu.trace_start"() <{level = 10 : i32, message = "bqk,bkd->bqd"}> : () -> ()
    %cst_46 = arith.constant dense<0.000000e+00> : vector<2x8x16xf32>
    %154 = tpu.matmul %153, %138, %cst_46 {dimension_numbers = #tpu.dot_dimension_numbers<[2], [1], [1], [2], [0, 0, 0, 1, 1, 2], [0], [0]>} : vector<2x8x8xbf16>, vector<2x8x16xbf16>, vector<2x8x16xf32> -> vector<2x8x16xf32>
    "tpu.trace_stop"() : () -> ()
    %155 = tpu.concatenate %88, %110, %132, %154 in 2 : vector<2x8x16xf32>, vector<2x8x16xf32>, vector<2x8x16xf32>, vector<2x8x16xf32> -> vector<2x8x64xf32>
    %156 = vector.shape_cast %155 : vector<2x8x64xf32> to vector<16x64xf32>
    %c0_47 = arith.constant 0 : index
    %c0_48 = arith.constant 0 : index
    %c0_49 = arith.constant 0 : index
    %157 = vector.load %arg10[%c0_47, %c0_48, %c0_49] : memref<2x64x64xbf16, #tpu.memory_space<vmem>>, vector<1x64x64xbf16>
    %158 = vector.shape_cast %157 : vector<1x64x64xbf16> to vector<64x64xbf16>
    %159 = arith.truncf %156 : vector<16x64xf32> to vector<16x64xbf16>
    %cst_50 = arith.constant dense<0.000000e+00> : vector<16x64xf32>
    %160 = tpu.matmul %159, %158, %cst_50 {dimension_numbers = #tpu.dot_dimension_numbers<[1], [0], [0], [1], [0, 0, 1, 1], [], []>} : vector<16x64xbf16>, vector<64x64xbf16>, vector<16x64xf32> -> vector<16x64xf32>
    %c0_51 = arith.constant 0 : index
    %c0_52 = arith.constant 0 : index
    %c0_53 = arith.constant 0 : index
    %161 = vector.load %arg11[%c0_51, %c0_52, %c0_53] : memref<2x1x64xf32, #tpu.memory_space<vmem>>, vector<1x1x64xf32>
    %162 = vector.shape_cast %161 : vector<1x1x64xf32> to vector<1x64xf32>
    %163 = vector.broadcast %162 : vector<1x64xf32> to vector<16x64xf32>
    %164 = arith.addf %160, %163 : vector<16x64xf32>
    %165 = arith.addf %43, %164 : vector<16x64xf32>
    %c0_54 = arith.constant 0 : index
    %c0_55 = arith.constant 0 : index
    %c0_56 = arith.constant 0 : index
    %166 = vector.load %arg12[%c0_54, %c0_55, %c0_56] : memref<2x1x64xf32, #tpu.memory_space<vmem>>, vector<1x1x64xf32>
    %167 = vector.shape_cast %166 : vector<1x1x64xf32> to vector<1x64xf32>
    %c0_57 = arith.constant 0 : index
    %c0_58 = arith.constant 0 : index
    %c0_59 = arith.constant 0 : index
    %168 = vector.load %arg13[%c0_57, %c0_58, %c0_59] : memref<2x1x64xf32, #tpu.memory_space<vmem>>, vector<1x1x64xf32>
    %169 = vector.shape_cast %168 : vector<1x1x64xf32> to vector<1x64xf32>
    %cst_60 = arith.constant dense<0.000000e+00> : vector<16xf32>
    %170 = vector.multi_reduction <add>, %165, %cst_60 [1] : vector<16x64xf32> to vector<16xf32>
    %171 = vector.shape_cast %170 : vector<16xf32> to vector<16x1xf32>
    %cst_61 = arith.constant 6.400000e+01 : f32
    %172 = vector.broadcast %cst_61 : f32 to vector<16x1xf32>
    %173 = arith.divf %171, %172 : vector<16x1xf32>
    %174 = vector.broadcast %173 : vector<16x1xf32> to vector<16x64xf32>
    %175 = arith.subf %165, %174 : vector<16x64xf32>
    %176 = arith.mulf %175, %175 : vector<16x64xf32>
    %cst_62 = arith.constant dense<0.000000e+00> : vector<16xf32>
    %177 = vector.multi_reduction <add>, %176, %cst_62 [1] : vector<16x64xf32> to vector<16xf32>
    %178 = vector.shape_cast %177 : vector<16xf32> to vector<16x1xf32>
    %cst_63 = arith.constant 6.400000e+01 : f32
    %179 = vector.broadcast %cst_63 : f32 to vector<16x1xf32>
    %180 = arith.divf %178, %179 : vector<16x1xf32>
    %181 = vector.broadcast %173 : vector<16x1xf32> to vector<16x64xf32>
    %182 = arith.subf %165, %181 : vector<16x64xf32>
    %cst_64 = arith.constant 9.99999996E-13 : f32
    %183 = vector.broadcast %cst_64 : f32 to vector<16x1xf32>
    %184 = arith.addf %180, %183 : vector<16x1xf32>
    %185 = math.rsqrt %184 : vector<16x1xf32>
    %186 = vector.broadcast %185 : vector<16x1xf32> to vector<16x64xf32>
    %187 = arith.mulf %182, %186 : vector<16x64xf32>
    %188 = vector.broadcast %167 : vector<1x64xf32> to vector<16x64xf32>
    %189 = arith.mulf %187, %188 : vector<16x64xf32>
    %190 = vector.broadcast %169 : vector<1x64xf32> to vector<16x64xf32>
    %191 = arith.addf %189, %190 : vector<16x64xf32>
    %c0_65 = arith.constant 0 : index
    %c0_66 = arith.constant 0 : index
    %c0_67 = arith.constant 0 : index
    %192 = vector.load %arg14[%c0_65, %c0_66, %c0_67] : memref<2x64x128xbf16, #tpu.memory_space<vmem>>, vector<1x64x128xbf16>
    %193 = vector.shape_cast %192 : vector<1x64x128xbf16> to vector<64x128xbf16>
    %194 = arith.truncf %191 : vector<16x64xf32> to vector<16x64xbf16>
    %cst_68 = arith.constant dense<0.000000e+00> : vector<16x128xf32>
    %195 = tpu.matmul %194, %193, %cst_68 {dimension_numbers = #tpu.dot_dimension_numbers<[1], [0], [0], [1], [0, 0, 1, 1], [], []>} : vector<16x64xbf16>, vector<64x128xbf16>, vector<16x128xf32> -> vector<16x128xf32>
    %c0_69 = arith.constant 0 : index
    %c0_70 = arith.constant 0 : index
    %c0_71 = arith.constant 0 : index
    %196 = vector.load %arg15[%c0_69, %c0_70, %c0_71] : memref<2x1x128xf32, #tpu.memory_space<vmem>>, vector<1x1x128xf32>
    %197 = vector.shape_cast %196 : vector<1x1x128xf32> to vector<1x128xf32>
    %198 = vector.broadcast %197 : vector<1x128xf32> to vector<16x128xf32>
    %199 = arith.addf %195, %198 : vector<16x128xf32>
    %200 = arith.mulf %199, %199 : vector<16x128xf32>
    %201 = arith.mulf %199, %200 : vector<16x128xf32>
    %cst_72 = arith.constant 4.471500e-02 : f32
    %202 = vector.broadcast %cst_72 : f32 to vector<16x128xf32>
    %203 = arith.mulf %202, %201 : vector<16x128xf32>
    %204 = arith.addf %199, %203 : vector<16x128xf32>
    %cst_73 = arith.constant 0.797884583 : f32
    %205 = vector.broadcast %cst_73 : f32 to vector<16x128xf32>
    %206 = arith.mulf %205, %204 : vector<16x128xf32>
    %207 = math.tanh %206 : vector<16x128xf32>
    %cst_74 = arith.constant 1.000000e+00 : f32
    %208 = vector.broadcast %cst_74 : f32 to vector<16x128xf32>
    %209 = arith.addf %208, %207 : vector<16x128xf32>
    %cst_75 = arith.constant 5.000000e-01 : f32
    %210 = vector.broadcast %cst_75 : f32 to vector<16x128xf32>
    %211 = arith.mulf %210, %209 : vector<16x128xf32>
    %212 = arith.mulf %199, %211 : vector<16x128xf32>
    %c0_76 = arith.constant 0 : index
    %c0_77 = arith.constant 0 : index
    %c0_78 = arith.constant 0 : index
    %213 = vector.load %arg16[%c0_76, %c0_77, %c0_78] : memref<2x128x64xbf16, #tpu.memory_space<vmem>>, vector<1x128x64xbf16>
    %214 = vector.shape_cast %213 : vector<1x128x64xbf16> to vector<128x64xbf16>
    %215 = arith.truncf %212 : vector<16x128xf32> to vector<16x128xbf16>
    %cst_79 = arith.constant dense<0.000000e+00> : vector<16x64xf32>
    %216 = tpu.matmul %215, %214, %cst_79 {dimension_numbers = #tpu.dot_dimension_numbers<[1], [0], [0], [1], [0, 0, 1, 1], [], []>} : vector<16x128xbf16>, vector<128x64xbf16>, vector<16x64xf32> -> vector<16x64xf32>
    %c0_80 = arith.constant 0 : index
    %c0_81 = arith.constant 0 : index
    %c0_82 = arith.constant 0 : index
    %217 = vector.load %arg17[%c0_80, %c0_81, %c0_82] : memref<2x1x64xf32, #tpu.memory_space<vmem>>, vector<1x1x64xf32>
    %218 = vector.shape_cast %217 : vector<1x1x64xf32> to vector<1x64xf32>
    %219 = vector.broadcast %218 : vector<1x64xf32> to vector<16x64xf32>
    %220 = arith.addf %216, %219 : vector<16x64xf32>
    %221 = arith.addf %191, %220 : vector<16x64xf32>
    %c0_83 = arith.constant 0 : index
    %c0_84 = arith.constant 0 : index
    %c0_85 = arith.constant 0 : index
    %222 = vector.load %arg18[%c0_83, %c0_84, %c0_85] : memref<2x1x64xf32, #tpu.memory_space<vmem>>, vector<1x1x64xf32>
    %223 = vector.shape_cast %222 : vector<1x1x64xf32> to vector<1x64xf32>
    %c0_86 = arith.constant 0 : index
    %c0_87 = arith.constant 0 : index
    %c0_88 = arith.constant 0 : index
    %224 = vector.load %arg19[%c0_86, %c0_87, %c0_88] : memref<2x1x64xf32, #tpu.memory_space<vmem>>, vector<1x1x64xf32>
    %225 = vector.shape_cast %224 : vector<1x1x64xf32> to vector<1x64xf32>
    %cst_89 = arith.constant dense<0.000000e+00> : vector<16xf32>
    %226 = vector.multi_reduction <add>, %221, %cst_89 [1] : vector<16x64xf32> to vector<16xf32>
    %227 = vector.shape_cast %226 : vector<16xf32> to vector<16x1xf32>
    %cst_90 = arith.constant 6.400000e+01 : f32
    %228 = vector.broadcast %cst_90 : f32 to vector<16x1xf32>
    %229 = arith.divf %227, %228 : vector<16x1xf32>
    %230 = vector.broadcast %229 : vector<16x1xf32> to vector<16x64xf32>
    %231 = arith.subf %221, %230 : vector<16x64xf32>
    %232 = arith.mulf %231, %231 : vector<16x64xf32>
    %cst_91 = arith.constant dense<0.000000e+00> : vector<16xf32>
    %233 = vector.multi_reduction <add>, %232, %cst_91 [1] : vector<16x64xf32> to vector<16xf32>
    %234 = vector.shape_cast %233 : vector<16xf32> to vector<16x1xf32>
    %cst_92 = arith.constant 6.400000e+01 : f32
    %235 = vector.broadcast %cst_92 : f32 to vector<16x1xf32>
    %236 = arith.divf %234, %235 : vector<16x1xf32>
    %237 = vector.broadcast %229 : vector<16x1xf32> to vector<16x64xf32>
    %238 = arith.subf %221, %237 : vector<16x64xf32>
    %cst_93 = arith.constant 9.99999996E-13 : f32
    %239 = vector.broadcast %cst_93 : f32 to vector<16x1xf32>
    %240 = arith.addf %236, %239 : vector<16x1xf32>
    %241 = math.rsqrt %240 : vector<16x1xf32>
    %242 = vector.broadcast %241 : vector<16x1xf32> to vector<16x64xf32>
    %243 = arith.mulf %238, %242 : vector<16x64xf32>
    %244 = vector.broadcast %223 : vector<1x64xf32> to vector<16x64xf32>
    %245 = arith.mulf %243, %244 : vector<16x64xf32>
    %246 = vector.broadcast %225 : vector<1x64xf32> to vector<16x64xf32>
    %247 = arith.addf %245, %246 : vector<16x64xf32>
    %c1 = arith.constant 1 : index
    %c0_94 = arith.constant 0 : index
    %c0_95 = arith.constant 0 : index
    %248 = vector.load %arg8[%c1, %c0_94, %c0_95] : memref<2x64x192xbf16, #tpu.memory_space<vmem>>, vector<1x64x192xbf16>
    %249 = vector.shape_cast %248 : vector<1x64x192xbf16> to vector<64x192xbf16>
    %250 = arith.truncf %247 : vector<16x64xf32> to vector<16x64xbf16>
    %cst_96 = arith.constant dense<0.000000e+00> : vector<16x192xf32>
    %251 = tpu.matmul %250, %249, %cst_96 {dimension_numbers = #tpu.dot_dimension_numbers<[1], [0], [0], [1], [0, 0, 1, 1], [], []>} : vector<16x64xbf16>, vector<64x192xbf16>, vector<16x192xf32> -> vector<16x192xf32>
    %c1_97 = arith.constant 1 : index
    %c0_98 = arith.constant 0 : index
    %c0_99 = arith.constant 0 : index
    %252 = vector.load %arg9[%c1_97, %c0_98, %c0_99] : memref<2x1x192xf32, #tpu.memory_space<vmem>>, vector<1x1x192xf32>
    %253 = vector.shape_cast %252 : vector<1x1x192xf32> to vector<1x192xf32>
    %254 = vector.broadcast %253 : vector<1x192xf32> to vector<16x192xf32>
    %255 = arith.addf %251, %254 : vector<16x192xf32>
    %256 = vector.extract_strided_slice %255 {offsets = [0, 0], sizes = [16, 64], strides = [1, 1]} : vector<16x192xf32> to vector<16x64xf32>
    %257 = vector.shape_cast %256 : vector<16x64xf32> to vector<2x8x64xf32>
    %258 = vector.extract_strided_slice %255 {offsets = [0, 64], sizes = [16, 64], strides = [1, 1]} : vector<16x192xf32> to vector<16x64xf32>
    %259 = vector.shape_cast %258 : vector<16x64xf32> to vector<2x8x64xf32>
    %260 = vector.extract_strided_slice %255 {offsets = [0, 128], sizes = [16, 64], strides = [1, 1]} : vector<16x192xf32> to vector<16x64xf32>
    %261 = vector.shape_cast %260 : vector<16x64xf32> to vector<2x8x64xf32>
    %262 = vector.extract_strided_slice %257 {offsets = [0, 0, 0], sizes = [2, 8, 16], strides = [1, 1, 1]} : vector<2x8x64xf32> to vector<2x8x16xf32>
    %263 = arith.truncf %262 : vector<2x8x16xf32> to vector<2x8x16xbf16>
    %264 = vector.extract_strided_slice %259 {offsets = [0, 0, 0], sizes = [2, 8, 16], strides = [1, 1, 1]} : vector<2x8x64xf32> to vector<2x8x16xf32>
    %265 = arith.truncf %264 : vector<2x8x16xf32> to vector<2x8x16xbf16>
    %266 = vector.extract_strided_slice %261 {offsets = [0, 0, 0], sizes = [2, 8, 16], strides = [1, 1, 1]} : vector<2x8x64xf32> to vector<2x8x16xf32>
    %267 = arith.truncf %266 : vector<2x8x16xf32> to vector<2x8x16xbf16>
    "tpu.trace_start"() <{level = 10 : i32, message = "bqd,bkd->bqk"}> : () -> ()
    %cst_100 = arith.constant dense<0.000000e+00> : vector<2x8x8xf32>
    %268 = tpu.matmul %263, %265, %cst_100 {dimension_numbers = #tpu.dot_dimension_numbers<[2], [2], [1], [1], [0, 0, 0, 1, 1, 1], [0], [0]>} : vector<2x8x16xbf16>, vector<2x8x16xbf16>, vector<2x8x8xf32> -> vector<2x8x8xf32>
    "tpu.trace_stop"() : () -> ()
    %cst_101 = arith.constant 2.500000e-01 : f32
    %269 = vector.broadcast %cst_101 : f32 to vector<2x8x8xf32>
    %270 = arith.mulf %268, %269 : vector<2x8x8xf32>
    %271 = arith.addf %270, %52 : vector<2x8x8xf32>
    %cst_102 = arith.constant dense<0xFF800000> : vector<2x8xf32>
    %272 = vector.multi_reduction <maximumf>, %271, %cst_102 [2] : vector<2x8x8xf32> to vector<2x8xf32>
    %273 = vector.shape_cast %272 : vector<2x8xf32> to vector<2x8x1xf32>
    %274 = vector.broadcast %273 : vector<2x8x1xf32> to vector<2x8x8xf32>
    %275 = arith.subf %271, %274 : vector<2x8x8xf32>
    %276 = math.exp %275 : vector<2x8x8xf32>
    %cst_103 = arith.constant dense<0.000000e+00> : vector<2x8xf32>
    %277 = vector.multi_reduction <add>, %276, %cst_103 [2] : vector<2x8x8xf32> to vector<2x8xf32>
    %278 = vector.shape_cast %277 : vector<2x8xf32> to vector<2x8x1xf32>
    %279 = tpu.reciprocal %278 {approx = true} : vector<2x8x1xf32> -> vector<2x8x1xf32>
    %280 = vector.broadcast %279 : vector<2x8x1xf32> to vector<2x8x8xf32>
    %281 = arith.mulf %276, %280 : vector<2x8x8xf32>
    %282 = arith.truncf %281 : vector<2x8x8xf32> to vector<2x8x8xbf16>
    "tpu.trace_start"() <{level = 10 : i32, message = "bqk,bkd->bqd"}> : () -> ()
    %cst_104 = arith.constant dense<0.000000e+00> : vector<2x8x16xf32>
    %283 = tpu.matmul %282, %267, %cst_104 {dimension_numbers = #tpu.dot_dimension_numbers<[2], [1], [1], [2], [0, 0, 0, 1, 1, 2], [0], [0]>} : vector<2x8x8xbf16>, vector<2x8x16xbf16>, vector<2x8x16xf32> -> vector<2x8x16xf32>
    "tpu.trace_stop"() : () -> ()
    %284 = vector.extract_strided_slice %257 {offsets = [0, 0, 16], sizes = [2, 8, 16], strides = [1, 1, 1]} : vector<2x8x64xf32> to vector<2x8x16xf32>
    %285 = arith.truncf %284 : vector<2x8x16xf32> to vector<2x8x16xbf16>
    %286 = vector.extract_strided_slice %259 {offsets = [0, 0, 16], sizes = [2, 8, 16], strides = [1, 1, 1]} : vector<2x8x64xf32> to vector<2x8x16xf32>
    %287 = arith.truncf %286 : vector<2x8x16xf32> to vector<2x8x16xbf16>
    %288 = vector.extract_strided_slice %261 {offsets = [0, 0, 16], sizes = [2, 8, 16], strides = [1, 1, 1]} : vector<2x8x64xf32> to vector<2x8x16xf32>
    %289 = arith.truncf %288 : vector<2x8x16xf32> to vector<2x8x16xbf16>
    "tpu.trace_start"() <{level = 10 : i32, message = "bqd,bkd->bqk"}> : () -> ()
    %cst_105 = arith.constant dense<0.000000e+00> : vector<2x8x8xf32>
    %290 = tpu.matmul %285, %287, %cst_105 {dimension_numbers = #tpu.dot_dimension_numbers<[2], [2], [1], [1], [0, 0, 0, 1, 1, 1], [0], [0]>} : vector<2x8x16xbf16>, vector<2x8x16xbf16>, vector<2x8x8xf32> -> vector<2x8x8xf32>
    "tpu.trace_stop"() : () -> ()
    %cst_106 = arith.constant 2.500000e-01 : f32
    %291 = vector.broadcast %cst_106 : f32 to vector<2x8x8xf32>
    %292 = arith.mulf %290, %291 : vector<2x8x8xf32>
    %293 = arith.addf %292, %52 : vector<2x8x8xf32>
    %cst_107 = arith.constant dense<0xFF800000> : vector<2x8xf32>
    %294 = vector.multi_reduction <maximumf>, %293, %cst_107 [2] : vector<2x8x8xf32> to vector<2x8xf32>
    %295 = vector.shape_cast %294 : vector<2x8xf32> to vector<2x8x1xf32>
    %296 = vector.broadcast %295 : vector<2x8x1xf32> to vector<2x8x8xf32>
    %297 = arith.subf %293, %296 : vector<2x8x8xf32>
    %298 = math.exp %297 : vector<2x8x8xf32>
    %cst_108 = arith.constant dense<0.000000e+00> : vector<2x8xf32>
    %299 = vector.multi_reduction <add>, %298, %cst_108 [2] : vector<2x8x8xf32> to vector<2x8xf32>
    %300 = vector.shape_cast %299 : vector<2x8xf32> to vector<2x8x1xf32>
    %301 = tpu.reciprocal %300 {approx = true} : vector<2x8x1xf32> -> vector<2x8x1xf32>
    %302 = vector.broadcast %301 : vector<2x8x1xf32> to vector<2x8x8xf32>
    %303 = arith.mulf %298, %302 : vector<2x8x8xf32>
    %304 = arith.truncf %303 : vector<2x8x8xf32> to vector<2x8x8xbf16>
    "tpu.trace_start"() <{level = 10 : i32, message = "bqk,bkd->bqd"}> : () -> ()
    %cst_109 = arith.constant dense<0.000000e+00> : vector<2x8x16xf32>
    %305 = tpu.matmul %304, %289, %cst_109 {dimension_numbers = #tpu.dot_dimension_numbers<[2], [1], [1], [2], [0, 0, 0, 1, 1, 2], [0], [0]>} : vector<2x8x8xbf16>, vector<2x8x16xbf16>, vector<2x8x16xf32> -> vector<2x8x16xf32>
    "tpu.trace_stop"() : () -> ()
    %306 = vector.extract_strided_slice %257 {offsets = [0, 0, 32], sizes = [2, 8, 16], strides = [1, 1, 1]} : vector<2x8x64xf32> to vector<2x8x16xf32>
    %307 = arith.truncf %306 : vector<2x8x16xf32> to vector<2x8x16xbf16>
    %308 = vector.extract_strided_slice %259 {offsets = [0, 0, 32], sizes = [2, 8, 16], strides = [1, 1, 1]} : vector<2x8x64xf32> to vector<2x8x16xf32>
    %309 = arith.truncf %308 : vector<2x8x16xf32> to vector<2x8x16xbf16>
    %310 = vector.extract_strided_slice %261 {offsets = [0, 0, 32], sizes = [2, 8, 16], strides = [1, 1, 1]} : vector<2x8x64xf32> to vector<2x8x16xf32>
    %311 = arith.truncf %310 : vector<2x8x16xf32> to vector<2x8x16xbf16>
    "tpu.trace_start"() <{level = 10 : i32, message = "bqd,bkd->bqk"}> : () -> ()
    %cst_110 = arith.constant dense<0.000000e+00> : vector<2x8x8xf32>
    %312 = tpu.matmul %307, %309, %cst_110 {dimension_numbers = #tpu.dot_dimension_numbers<[2], [2], [1], [1], [0, 0, 0, 1, 1, 1], [0], [0]>} : vector<2x8x16xbf16>, vector<2x8x16xbf16>, vector<2x8x8xf32> -> vector<2x8x8xf32>
    "tpu.trace_stop"() : () -> ()
    %cst_111 = arith.constant 2.500000e-01 : f32
    %313 = vector.broadcast %cst_111 : f32 to vector<2x8x8xf32>
    %314 = arith.mulf %312, %313 : vector<2x8x8xf32>
    %315 = arith.addf %314, %52 : vector<2x8x8xf32>
    %cst_112 = arith.constant dense<0xFF800000> : vector<2x8xf32>
    %316 = vector.multi_reduction <maximumf>, %315, %cst_112 [2] : vector<2x8x8xf32> to vector<2x8xf32>
    %317 = vector.shape_cast %316 : vector<2x8xf32> to vector<2x8x1xf32>
    %318 = vector.broadcast %317 : vector<2x8x1xf32> to vector<2x8x8xf32>
    %319 = arith.subf %315, %318 : vector<2x8x8xf32>
    %320 = math.exp %319 : vector<2x8x8xf32>
    %cst_113 = arith.constant dense<0.000000e+00> : vector<2x8xf32>
    %321 = vector.multi_reduction <add>, %320, %cst_113 [2] : vector<2x8x8xf32> to vector<2x8xf32>
    %322 = vector.shape_cast %321 : vector<2x8xf32> to vector<2x8x1xf32>
    %323 = tpu.reciprocal %322 {approx = true} : vector<2x8x1xf32> -> vector<2x8x1xf32>
    %324 = vector.broadcast %323 : vector<2x8x1xf32> to vector<2x8x8xf32>
    %325 = arith.mulf %320, %324 : vector<2x8x8xf32>
    %326 = arith.truncf %325 : vector<2x8x8xf32> to vector<2x8x8xbf16>
    "tpu.trace_start"() <{level = 10 : i32, message = "bqk,bkd->bqd"}> : () -> ()
    %cst_114 = arith.constant dense<0.000000e+00> : vector<2x8x16xf32>
    %327 = tpu.matmul %326, %311, %cst_114 {dimension_numbers = #tpu.dot_dimension_numbers<[2], [1], [1], [2], [0, 0, 0, 1, 1, 2], [0], [0]>} : vector<2x8x8xbf16>, vector<2x8x16xbf16>, vector<2x8x16xf32> -> vector<2x8x16xf32>
    "tpu.trace_stop"() : () -> ()
    %328 = vector.extract_strided_slice %257 {offsets = [0, 0, 48], sizes = [2, 8, 16], strides = [1, 1, 1]} : vector<2x8x64xf32> to vector<2x8x16xf32>
    %329 = arith.truncf %328 : vector<2x8x16xf32> to vector<2x8x16xbf16>
    %330 = vector.extract_strided_slice %259 {offsets = [0, 0, 48], sizes = [2, 8, 16], strides = [1, 1, 1]} : vector<2x8x64xf32> to vector<2x8x16xf32>
    %331 = arith.truncf %330 : vector<2x8x16xf32> to vector<2x8x16xbf16>
    %332 = vector.extract_strided_slice %261 {offsets = [0, 0, 48], sizes = [2, 8, 16], strides = [1, 1, 1]} : vector<2x8x64xf32> to vector<2x8x16xf32>
    %333 = arith.truncf %332 : vector<2x8x16xf32> to vector<2x8x16xbf16>
    "tpu.trace_start"() <{level = 10 : i32, message = "bqd,bkd->bqk"}> : () -> ()
    %cst_115 = arith.constant dense<0.000000e+00> : vector<2x8x8xf32>
    %334 = tpu.matmul %329, %331, %cst_115 {dimension_numbers = #tpu.dot_dimension_numbers<[2], [2], [1], [1], [0, 0, 0, 1, 1, 1], [0], [0]>} : vector<2x8x16xbf16>, vector<2x8x16xbf16>, vector<2x8x8xf32> -> vector<2x8x8xf32>
    "tpu.trace_stop"() : () -> ()
    %cst_116 = arith.constant 2.500000e-01 : f32
    %335 = vector.broadcast %cst_116 : f32 to vector<2x8x8xf32>
    %336 = arith.mulf %334, %335 : vector<2x8x8xf32>
    %337 = arith.addf %336, %52 : vector<2x8x8xf32>
    %cst_117 = arith.constant dense<0xFF800000> : vector<2x8xf32>
    %338 = vector.multi_reduction <maximumf>, %337, %cst_117 [2] : vector<2x8x8xf32> to vector<2x8xf32>
    %339 = vector.shape_cast %338 : vector<2x8xf32> to vector<2x8x1xf32>
    %340 = vector.broadcast %339 : vector<2x8x1xf32> to vector<2x8x8xf32>
    %341 = arith.subf %337, %340 : vector<2x8x8xf32>
    %342 = math.exp %341 : vector<2x8x8xf32>
    %cst_118 = arith.constant dense<0.000000e+00> : vector<2x8xf32>
    %343 = vector.multi_reduction <add>, %342, %cst_118 [2] : vector<2x8x8xf32> to vector<2x8xf32>
    %344 = vector.shape_cast %343 : vector<2x8xf32> to vector<2x8x1xf32>
    %345 = tpu.reciprocal %344 {approx = true} : vector<2x8x1xf32> -> vector<2x8x1xf32>
    %346 = vector.broadcast %345 : vector<2x8x1xf32> to vector<2x8x8xf32>
    %347 = arith.mulf %342, %346 : vector<2x8x8xf32>
    %348 = arith.truncf %347 : vector<2x8x8xf32> to vector<2x8x8xbf16>
    "tpu.trace_start"() <{level = 10 : i32, message = "bqk,bkd->bqd"}> : () -> ()
    %cst_119 = arith.constant dense<0.000000e+00> : vector<2x8x16xf32>
    %349 = tpu.matmul %348, %333, %cst_119 {dimension_numbers = #tpu.dot_dimension_numbers<[2], [1], [1], [2], [0, 0, 0, 1, 1, 2], [0], [0]>} : vector<2x8x8xbf16>, vector<2x8x16xbf16>, vector<2x8x16xf32> -> vector<2x8x16xf32>
    "tpu.trace_stop"() : () -> ()
    %350 = tpu.concatenate %283, %305, %327, %349 in 2 : vector<2x8x16xf32>, vector<2x8x16xf32>, vector<2x8x16xf32>, vector<2x8x16xf32> -> vector<2x8x64xf32>
    %351 = vector.shape_cast %350 : vector<2x8x64xf32> to vector<16x64xf32>
    %c1_120 = arith.constant 1 : index
    %c0_121 = arith.constant 0 : index
    %c0_122 = arith.constant 0 : index
    %352 = vector.load %arg10[%c1_120, %c0_121, %c0_122] : memref<2x64x64xbf16, #tpu.memory_space<vmem>>, vector<1x64x64xbf16>
    %353 = vector.shape_cast %352 : vector<1x64x64xbf16> to vector<64x64xbf16>
    %354 = arith.truncf %351 : vector<16x64xf32> to vector<16x64xbf16>
    %cst_123 = arith.constant dense<0.000000e+00> : vector<16x64xf32>
    %355 = tpu.matmul %354, %353, %cst_123 {dimension_numbers = #tpu.dot_dimension_numbers<[1], [0], [0], [1], [0, 0, 1, 1], [], []>} : vector<16x64xbf16>, vector<64x64xbf16>, vector<16x64xf32> -> vector<16x64xf32>
    %c1_124 = arith.constant 1 : index
    %c0_125 = arith.constant 0 : index
    %c0_126 = arith.constant 0 : index
    %356 = vector.load %arg11[%c1_124, %c0_125, %c0_126] : memref<2x1x64xf32, #tpu.memory_space<vmem>>, vector<1x1x64xf32>
    %357 = vector.shape_cast %356 : vector<1x1x64xf32> to vector<1x64xf32>
    %358 = vector.broadcast %357 : vector<1x64xf32> to vector<16x64xf32>
    %359 = arith.addf %355, %358 : vector<16x64xf32>
    %360 = arith.addf %247, %359 : vector<16x64xf32>
    %c1_127 = arith.constant 1 : index
    %c0_128 = arith.constant 0 : index
    %c0_129 = arith.constant 0 : index
    %361 = vector.load %arg12[%c1_127, %c0_128, %c0_129] : memref<2x1x64xf32, #tpu.memory_space<vmem>>, vector<1x1x64xf32>
    %362 = vector.shape_cast %361 : vector<1x1x64xf32> to vector<1x64xf32>
    %c1_130 = arith.constant 1 : index
    %c0_131 = arith.constant 0 : index
    %c0_132 = arith.constant 0 : index
    %363 = vector.load %arg13[%c1_130, %c0_131, %c0_132] : memref<2x1x64xf32, #tpu.memory_space<vmem>>, vector<1x1x64xf32>
    %364 = vector.shape_cast %363 : vector<1x1x64xf32> to vector<1x64xf32>
    %cst_133 = arith.constant dense<0.000000e+00> : vector<16xf32>
    %365 = vector.multi_reduction <add>, %360, %cst_133 [1] : vector<16x64xf32> to vector<16xf32>
    %366 = vector.shape_cast %365 : vector<16xf32> to vector<16x1xf32>
    %cst_134 = arith.constant 6.400000e+01 : f32
    %367 = vector.broadcast %cst_134 : f32 to vector<16x1xf32>
    %368 = arith.divf %366, %367 : vector<16x1xf32>
    %369 = vector.broadcast %368 : vector<16x1xf32> to vector<16x64xf32>
    %370 = arith.subf %360, %369 : vector<16x64xf32>
    %371 = arith.mulf %370, %370 : vector<16x64xf32>
    %cst_135 = arith.constant dense<0.000000e+00> : vector<16xf32>
    %372 = vector.multi_reduction <add>, %371, %cst_135 [1] : vector<16x64xf32> to vector<16xf32>
    %373 = vector.shape_cast %372 : vector<16xf32> to vector<16x1xf32>
    %cst_136 = arith.constant 6.400000e+01 : f32
    %374 = vector.broadcast %cst_136 : f32 to vector<16x1xf32>
    %375 = arith.divf %373, %374 : vector<16x1xf32>
    %376 = vector.broadcast %368 : vector<16x1xf32> to vector<16x64xf32>
    %377 = arith.subf %360, %376 : vector<16x64xf32>
    %cst_137 = arith.constant 9.99999996E-13 : f32
    %378 = vector.broadcast %cst_137 : f32 to vector<16x1xf32>
    %379 = arith.addf %375, %378 : vector<16x1xf32>
    %380 = math.rsqrt %379 : vector<16x1xf32>
    %381 = vector.broadcast %380 : vector<16x1xf32> to vector<16x64xf32>
    %382 = arith.mulf %377, %381 : vector<16x64xf32>
    %383 = vector.broadcast %362 : vector<1x64xf32> to vector<16x64xf32>
    %384 = arith.mulf %382, %383 : vector<16x64xf32>
    %385 = vector.broadcast %364 : vector<1x64xf32> to vector<16x64xf32>
    %386 = arith.addf %384, %385 : vector<16x64xf32>
    %c1_138 = arith.constant 1 : index
    %c0_139 = arith.constant 0 : index
    %c0_140 = arith.constant 0 : index
    %387 = vector.load %arg14[%c1_138, %c0_139, %c0_140] : memref<2x64x128xbf16, #tpu.memory_space<vmem>>, vector<1x64x128xbf16>
    %388 = vector.shape_cast %387 : vector<1x64x128xbf16> to vector<64x128xbf16>
    %389 = arith.truncf %386 : vector<16x64xf32> to vector<16x64xbf16>
    %cst_141 = arith.constant dense<0.000000e+00> : vector<16x128xf32>
    %390 = tpu.matmul %389, %388, %cst_141 {dimension_numbers = #tpu.dot_dimension_numbers<[1], [0], [0], [1], [0, 0, 1, 1], [], []>} : vector<16x64xbf16>, vector<64x128xbf16>, vector<16x128xf32> -> vector<16x128xf32>
    %c1_142 = arith.constant 1 : index
    %c0_143 = arith.constant 0 : index
    %c0_144 = arith.constant 0 : index
    %391 = vector.load %arg15[%c1_142, %c0_143, %c0_144] : memref<2x1x128xf32, #tpu.memory_space<vmem>>, vector<1x1x128xf32>
    %392 = vector.shape_cast %391 : vector<1x1x128xf32> to vector<1x128xf32>
    %393 = vector.broadcast %392 : vector<1x128xf32> to vector<16x128xf32>
    %394 = arith.addf %390, %393 : vector<16x128xf32>
    %395 = arith.mulf %394, %394 : vector<16x128xf32>
    %396 = arith.mulf %394, %395 : vector<16x128xf32>
    %cst_145 = arith.constant 4.471500e-02 : f32
    %397 = vector.broadcast %cst_145 : f32 to vector<16x128xf32>
    %398 = arith.mulf %397, %396 : vector<16x128xf32>
    %399 = arith.addf %394, %398 : vector<16x128xf32>
    %cst_146 = arith.constant 0.797884583 : f32
    %400 = vector.broadcast %cst_146 : f32 to vector<16x128xf32>
    %401 = arith.mulf %400, %399 : vector<16x128xf32>
    %402 = math.tanh %401 : vector<16x128xf32>
    %cst_147 = arith.constant 1.000000e+00 : f32
    %403 = vector.broadcast %cst_147 : f32 to vector<16x128xf32>
    %404 = arith.addf %403, %402 : vector<16x128xf32>
    %cst_148 = arith.constant 5.000000e-01 : f32
    %405 = vector.broadcast %cst_148 : f32 to vector<16x128xf32>
    %406 = arith.mulf %405, %404 : vector<16x128xf32>
    %407 = arith.mulf %394, %406 : vector<16x128xf32>
    %c1_149 = arith.constant 1 : index
    %c0_150 = arith.constant 0 : index
    %c0_151 = arith.constant 0 : index
    %408 = vector.load %arg16[%c1_149, %c0_150, %c0_151] : memref<2x128x64xbf16, #tpu.memory_space<vmem>>, vector<1x128x64xbf16>
    %409 = vector.shape_cast %408 : vector<1x128x64xbf16> to vector<128x64xbf16>
    %410 = arith.truncf %407 : vector<16x128xf32> to vector<16x128xbf16>
    %cst_152 = arith.constant dense<0.000000e+00> : vector<16x64xf32>
    %411 = tpu.matmul %410, %409, %cst_152 {dimension_numbers = #tpu.dot_dimension_numbers<[1], [0], [0], [1], [0, 0, 1, 1], [], []>} : vector<16x128xbf16>, vector<128x64xbf16>, vector<16x64xf32> -> vector<16x64xf32>
    %c1_153 = arith.constant 1 : index
    %c0_154 = arith.constant 0 : index
    %c0_155 = arith.constant 0 : index
    %412 = vector.load %arg17[%c1_153, %c0_154, %c0_155] : memref<2x1x64xf32, #tpu.memory_space<vmem>>, vector<1x1x64xf32>
    %413 = vector.shape_cast %412 : vector<1x1x64xf32> to vector<1x64xf32>
    %414 = vector.broadcast %413 : vector<1x64xf32> to vector<16x64xf32>
    %415 = arith.addf %411, %414 : vector<16x64xf32>
    %416 = arith.addf %386, %415 : vector<16x64xf32>
    %c1_156 = arith.constant 1 : index
    %c0_157 = arith.constant 0 : index
    %c0_158 = arith.constant 0 : index
    %417 = vector.load %arg18[%c1_156, %c0_157, %c0_158] : memref<2x1x64xf32, #tpu.memory_space<vmem>>, vector<1x1x64xf32>
    %418 = vector.shape_cast %417 : vector<1x1x64xf32> to vector<1x64xf32>
    %c1_159 = arith.constant 1 : index
    %c0_160 = arith.constant 0 : index
    %c0_161 = arith.constant 0 : index
    %419 = vector.load %arg19[%c1_159, %c0_160, %c0_161] : memref<2x1x64xf32, #tpu.memory_space<vmem>>, vector<1x1x64xf32>
    %420 = vector.shape_cast %419 : vector<1x1x64xf32> to vector<1x64xf32>
    %cst_162 = arith.constant dense<0.000000e+00> : vector<16xf32>
    %421 = vector.multi_reduction <add>, %416, %cst_162 [1] : vector<16x64xf32> to vector<16xf32>
    %422 = vector.shape_cast %421 : vector<16xf32> to vector<16x1xf32>
    %cst_163 = arith.constant 6.400000e+01 : f32
    %423 = vector.broadcast %cst_163 : f32 to vector<16x1xf32>
    %424 = arith.divf %422, %423 : vector<16x1xf32>
    %425 = vector.broadcast %424 : vector<16x1xf32> to vector<16x64xf32>
    %426 = arith.subf %416, %425 : vector<16x64xf32>
    %427 = arith.mulf %426, %426 : vector<16x64xf32>
    %cst_164 = arith.constant dense<0.000000e+00> : vector<16xf32>
    %428 = vector.multi_reduction <add>, %427, %cst_164 [1] : vector<16x64xf32> to vector<16xf32>
    %429 = vector.shape_cast %428 : vector<16xf32> to vector<16x1xf32>
    %cst_165 = arith.constant 6.400000e+01 : f32
    %430 = vector.broadcast %cst_165 : f32 to vector<16x1xf32>
    %431 = arith.divf %429, %430 : vector<16x1xf32>
    %432 = vector.broadcast %424 : vector<16x1xf32> to vector<16x64xf32>
    %433 = arith.subf %416, %432 : vector<16x64xf32>
    %cst_166 = arith.constant 9.99999996E-13 : f32
    %434 = vector.broadcast %cst_166 : f32 to vector<16x1xf32>
    %435 = arith.addf %431, %434 : vector<16x1xf32>
    %436 = math.rsqrt %435 : vector<16x1xf32>
    %437 = vector.broadcast %436 : vector<16x1xf32> to vector<16x64xf32>
    %438 = arith.mulf %433, %437 : vector<16x64xf32>
    %439 = vector.broadcast %418 : vector<1x64xf32> to vector<16x64xf32>
    %440 = arith.mulf %438, %439 : vector<16x64xf32>
    %441 = vector.broadcast %420 : vector<1x64xf32> to vector<16x64xf32>
    %442 = arith.addf %440, %441 : vector<16x64xf32>
    %443 = vector.extract_strided_slice %442 {offsets = [0, 0], sizes = [1, 64], strides = [1, 1]} : vector<16x64xf32> to vector<1x64xf32>
    %444 = vector.extract_strided_slice %442 {offsets = [8, 0], sizes = [1, 64], strides = [1, 1]} : vector<16x64xf32> to vector<1x64xf32>
    %445 = tpu.concatenate %443, %444 in 0 : vector<1x64xf32>, vector<1x64xf32> -> vector<2x64xf32>
    %c0_167 = arith.constant 0 : index
    %c0_168 = arith.constant 0 : index
    %446 = vector.load %arg20[%c0_167, %c0_168] : memref<64x64xbf16, #tpu.memory_space<vmem>>, vector<64x64xbf16>
    %447 = arith.truncf %445 : vector<2x64xf32> to vector<2x64xbf16>
    %cst_169 = arith.constant dense<0.000000e+00> : vector<2x64xf32>
    %448 = tpu.matmul %447, %446, %cst_169 {dimension_numbers = #tpu.dot_dimension_numbers<[1], [0], [0], [1], [0, 0, 1, 1], [], []>} : vector<2x64xbf16>, vector<64x64xbf16>, vector<2x64xf32> -> vector<2x64xf32>
    %c0_170 = arith.constant 0 : index
    %c0_171 = arith.constant 0 : index
    %449 = vector.load %arg21[%c0_170, %c0_171] : memref<1x64xf32, #tpu.memory_space<vmem>>, vector<1x64xf32>
    %450 = vector.broadcast %449 : vector<1x64xf32> to vector<2x64xf32>
    %451 = arith.addf %448, %450 : vector<2x64xf32>
    %452 = math.tanh %451 : vector<2x64xf32>
    %c0_172 = arith.constant 0 : index
    %c0_173 = arith.constant 0 : index
    %453 = vector.load %arg22[%c0_172, %c0_173] : memref<64x32xbf16, #tpu.memory_space<vmem>>, vector<64x32xbf16>
    %454 = arith.truncf %452 : vector<2x64xf32> to vector<2x64xbf16>
    %cst_174 = arith.constant dense<0.000000e+00> : vector<2x32xf32>
    %455 = tpu.matmul %454, %453, %cst_174 {dimension_numbers = #tpu.dot_dimension_numbers<[1], [0], [0], [1], [0, 0, 1, 1], [], []>} : vector<2x64xbf16>, vector<64x32xbf16>, vector<2x32xf32> -> vector<2x32xf32>
    %c0_175 = arith.constant 0 : index
    %c0_176 = arith.constant 0 : index
    %456 = vector.load %arg23[%c0_175, %c0_176] : memref<1x32xf32, #tpu.memory_space<vmem>>, vector<1x32xf32>
    %457 = vector.broadcast %456 : vector<1x32xf32> to vector<2x32xf32>
    %458 = arith.addf %455, %457 : vector<2x32xf32>
    %c0_177 = arith.constant 0 : index
    %c0_178 = arith.constant 0 : index
    %459 = vector.load %arg24[%c0_177, %c0_178] : memref<32x4xbf16, #tpu.memory_space<vmem>>, vector<32x4xbf16>
    %460 = arith.truncf %458 : vector<2x32xf32> to vector<2x32xbf16>
    %cst_179 = arith.constant dense<0.000000e+00> : vector<2x4xf32>
    %461 = tpu.matmul %460, %459, %cst_179 {dimension_numbers = #tpu.dot_dimension_numbers<[1], [0], [0], [1], [0, 0, 1, 1], [], []>} : vector<2x32xbf16>, vector<32x4xbf16>, vector<2x4xf32> -> vector<2x4xf32>
    %c0_180 = arith.constant 0 : index
    %c0_181 = arith.constant 0 : index
    %462 = vector.load %arg25[%c0_180, %c0_181] : memref<1x4xf32, #tpu.memory_space<vmem>>, vector<1x4xf32>
    %463 = vector.broadcast %462 : vector<1x4xf32> to vector<2x4xf32>
    %464 = arith.addf %461, %463 : vector<2x4xf32>
    %c0_182 = arith.constant 0 : index
    %c0_183 = arith.constant 0 : index
    %465 = vector.load %arg26[%c0_182, %c0_183] : memref<2x64xf32, #tpu.memory_space<vmem>>, vector<2x64xf32>
    tpu.vector_store %arg26[%c0_182, %c0_183], %452 {strides = array<i32>} : memref<2x64xf32, #tpu.memory_space<vmem>>, vector<2x64xf32>,
    %c0_184 = arith.constant 0 : index
    %c0_185 = arith.constant 0 : index
    %466 = vector.load %arg27[%c0_184, %c0_185] : memref<2x32xf32, #tpu.memory_space<vmem>>, vector<2x32xf32>
    tpu.vector_store %arg27[%c0_184, %c0_185], %458 {strides = array<i32>} : memref<2x32xf32, #tpu.memory_space<vmem>>, vector<2x32xf32>,
    %c0_186 = arith.constant 0 : index
    %c0_187 = arith.constant 0 : index
    %467 = vector.load %arg28[%c0_186, %c0_187] : memref<2x4xf32, #tpu.memory_space<vmem>>, vector<2x4xf32>
    tpu.vector_store %arg28[%c0_186, %c0_187], %464 {strides = array<i32>} : memref<2x4xf32, #tpu.memory_space<vmem>>, vector<2x4xf32>,
    return
  }
  func.func @transform_0(%arg0: i32) -> (i32, i32) {
    %c0_i32 = arith.constant 0 : i32
    %c0_i32_0 = arith.constant 0 : i32
    %c0_i32_1 = arith.constant 0 : i32
    return %c0_i32, %c0_i32_0 : i32, i32
  }
  func.func @transform_1(%arg0: i32) -> (i32, i32) {
    %c0_i32 = arith.constant 0 : i32
    %c0_i32_0 = arith.constant 0 : i32
    %c0_i32_1 = arith.constant 0 : i32
    return %c0_i32, %c0_i32_0 : i32, i32
  }
  func.func @transform_2(%arg0: i32) -> (i32, i32) {
    %c0_i32 = arith.constant 0 : i32
    %c0_i32_0 = arith.constant 0 : i32
    %c0_i32_1 = arith.constant 0 : i32
    return %c0_i32, %c0_i32_0 : i32, i32
  }
  func.func @transform_3(%arg0: i32) -> (i32, i32) {
    %c0_i32 = arith.constant 0 : i32
    %c0_i32_0 = arith.constant 0 : i32
    %c0_i32_1 = arith.constant 0 : i32
    return %c0_i32, %c0_i32_0 : i32, i32
  }
  func.func @transform_4(%arg0: i32) -> (i32, i32) {
    %c0_i32 = arith.constant 0 : i32
    %c0_i32_0 = arith.constant 0 : i32
    %c0_i32_1 = arith.constant 0 : i32
    return %c0_i32, %c0_i32_0 : i32, i32
  }
  func.func @transform_5(%arg0: i32) -> (i32, i32) {
    %c0_i32 = arith.constant 0 : i32
    %c0_i32_0 = arith.constant 0 : i32
    %c0_i32_1 = arith.constant 0 : i32
    return %c0_i32, %c0_i32_0 : i32, i32
  }
  func.func @transform_6(%arg0: i32) -> (i32, i32) {
    %c0_i32 = arith.constant 0 : i32
    %c0_i32_0 = arith.constant 0 : i32
    %c0_i32_1 = arith.constant 0 : i32
    return %c0_i32, %c0_i32_0 : i32, i32
  }
  func.func @transform_7(%arg0: i32) -> (i32, i32, i32) {
    %c0_i32 = arith.constant 0 : i32
    %c0_i32_0 = arith.constant 0 : i32
    %c0_i32_1 = arith.constant 0 : i32
    %c0_i32_2 = arith.constant 0 : i32
    return %c0_i32, %c0_i32_0, %c0_i32_1 : i32, i32, i32
  }
  func.func @transform_8(%arg0: i32) -> (i32, i32, i32) {
    %c0_i32 = arith.constant 0 : i32
    %c0_i32_0 = arith.constant 0 : i32
    %c0_i32_1 = arith.constant 0 : i32
    %c0_i32_2 = arith.constant 0 : i32
    return %c0_i32, %c0_i32_0, %c0_i32_1 : i32, i32, i32
  }
  func.func @transform_9(%arg0: i32) -> (i32, i32, i32) {
    %c0_i32 = arith.constant 0 : i32
    %c0_i32_0 = arith.constant 0 : i32
    %c0_i32_1 = arith.constant 0 : i32
    %c0_i32_2 = arith.constant 0 : i32
    return %c0_i32, %c0_i32_0, %c0_i32_1 : i32, i32, i32
  }
  func.func @transform_10(%arg0: i32) -> (i32, i32, i32) {
    %c0_i32 = arith.constant 0 : i32
    %c0_i32_0 = arith.constant 0 : i32
    %c0_i32_1 = arith.constant 0 : i32
    %c0_i32_2 = arith.constant 0 : i32
    return %c0_i32, %c0_i32_0, %c0_i32_1 : i32, i32, i32
  }
  func.func @transform_11(%arg0: i32) -> (i32, i32, i32) {
    %c0_i32 = arith.constant 0 : i32
    %c0_i32_0 = arith.constant 0 : i32
    %c0_i32_1 = arith.constant 0 : i32
    %c0_i32_2 = arith.constant 0 : i32
    return %c0_i32, %c0_i32_0, %c0_i32_1 : i32, i32, i32
  }
  func.func @transform_12(%arg0: i32) -> (i32, i32, i32) {
    %c0_i32 = arith.constant 0 : i32
    %c0_i32_0 = arith.constant 0 : i32
    %c0_i32_1 = arith.constant 0 : i32
    %c0_i32_2 = arith.constant 0 : i32
    return %c0_i32, %c0_i32_0, %c0_i32_1 : i32, i32, i32
  }
  func.func @transform_13(%arg0: i32) -> (i32, i32, i32) {
    %c0_i32 = arith.constant 0 : i32
    %c0_i32_0 = arith.constant 0 : i32
    %c0_i32_1 = arith.constant 0 : i32
    %c0_i32_2 = arith.constant 0 : i32
    return %c0_i32, %c0_i32_0, %c0_i32_1 : i32, i32, i32
  }
  func.func @transform_14(%arg0: i32) -> (i32, i32, i32) {
    %c0_i32 = arith.constant 0 : i32
    %c0_i32_0 = arith.constant 0 : i32
    %c0_i32_1 = arith.constant 0 : i32
    %c0_i32_2 = arith.constant 0 : i32
    return %c0_i32, %c0_i32_0, %c0_i32_1 : i32, i32, i32
  }
  func.func @transform_15(%arg0: i32) -> (i32, i32, i32) {
    %c0_i32 = arith.constant 0 : i32
    %c0_i32_0 = arith.constant 0 : i32
    %c0_i32_1 = arith.constant 0 : i32
    %c0_i32_2 = arith.constant 0 : i32
    return %c0_i32, %c0_i32_0, %c0_i32_1 : i32, i32, i32
  }
  func.func @transform_16(%arg0: i32) -> (i32, i32, i32) {
    %c0_i32 = arith.constant 0 : i32
    %c0_i32_0 = arith.constant 0 : i32
    %c0_i32_1 = arith.constant 0 : i32
    %c0_i32_2 = arith.constant 0 : i32
    return %c0_i32, %c0_i32_0, %c0_i32_1 : i32, i32, i32
  }
  func.func @transform_17(%arg0: i32) -> (i32, i32, i32) {
    %c0_i32 = arith.constant 0 : i32
    %c0_i32_0 = arith.constant 0 : i32
    %c0_i32_1 = arith.constant 0 : i32
    %c0_i32_2 = arith.constant 0 : i32
    return %c0_i32, %c0_i32_0, %c0_i32_1 : i32, i32, i32
  }
  func.func @transform_18(%arg0: i32) -> (i32, i32, i32) {
    %c0_i32 = arith.constant 0 : i32
    %c0_i32_0 = arith.constant 0 : i32
    %c0_i32_1 = arith.constant 0 : i32
    %c0_i32_2 = arith.constant 0 : i32
    return %c0_i32, %c0_i32_0, %c0_i32_1 : i32, i32, i32
  }
  func.func @transform_19(%arg0: i32) -> (i32, i32) {
    %c0_i32 = arith.constant 0 : i32
    %c0_i32_0 = arith.constant 0 : i32
    %c0_i32_1 = arith.constant 0 : i32
    return %c0_i32, %c0_i32_0 : i32, i32
  }
  func.func @transform_20(%arg0: i32) -> (i32, i32) {
    %c0_i32 = arith.constant 0 : i32
    %c0_i32_0 = arith.constant 0 : i32
    %c0_i32_1 = arith.constant 0 : i32
    return %c0_i32, %c0_i32_0 : i32, i32
  }
  func.func @transform_21(%arg0: i32) -> (i32, i32) {
    %c0_i32 = arith.constant 0 : i32
    %c0_i32_0 = arith.constant 0 : i32
    %c0_i32_1 = arith.constant 0 : i32
    return %c0_i32, %c0_i32_0 : i32, i32
  }
  func.func @transform_22(%arg0: i32) -> (i32, i32) {
    %c0_i32 = arith.constant 0 : i32
    %c0_i32_0 = arith.constant 0 : i32
    %c0_i32_1 = arith.constant 0 : i32
    return %c0_i32, %c0_i32_0 : i32, i32
  }
  func.func @transform_23(%arg0: i32) -> (i32, i32) {
    %c0_i32 = arith.constant 0 : i32
    %c0_i32_0 = arith.constant 0 : i32
    %c0_i32_1 = arith.constant 0 : i32
    return %c0_i32, %c0_i32_0 : i32, i32
  }
  func.func @transform_24(%arg0: i32) -> (i32, i32) {
    %c0_i32 = arith.constant 0 : i32
    %c0_i32_0 = arith.constant 0 : i32
    %c0_i32_1 = arith.constant 0 : i32
    return %c0_i32, %c0_i32_0 : i32, i32
  }
  func.func @transform_25(%arg0: i32) -> (i32, i32) {
    %c0_i32 = arith.constant 0 : i32
    %c0_i32_0 = arith.constant 0 : i32
    %c0_i32_1 = arith.constant 0 : i32
    return %c0_i32, %c0_i32_0 : i32, i32
  }
  func.func @transform_26(%arg0: i32) -> (i32, i32) {
    %c0_i32 = arith.constant 0 : i32
    %c0_i32_0 = arith.constant 0 : i32
    %c0_i32_1 = arith.constant 0 : i32
    return %c0_i32, %c0_i32_0 : i32, i32
  }
  func.func @transform_27(%arg0: i32) -> (i32, i32) {
    %c0_i32 = arith.constant 0 : i32
    %c0_i32_0 = arith.constant 0 : i32
    %c0_i32_1 = arith.constant 0 : i32
    return %c0_i32, %c0_i32_0 : i32, i32
  }
}

</mosaic_0001>

<llo_original>
// kernel: tpu_custom_call.1
$region0: #{tpu_custom_call.1}
  #allocation0 [shape = 'u32[]', space=smem, size = 0x4, offset = 0x4, fixed_abs, tag = 'smem constant byte address 0x4 - core index']
  #allocation1 [shape = 'u32[72,128]{1,0:T(1,128)}', space=vmem, size = 0x9000, scoped, tag = 'internal scratch']
  %s0 = inlined_call_operand.vmem [shape: s32[16,1], index: 0, kind: input, shape index: {}]
  %s1 = inlined_call_operand.vmem [shape: s32[2,8], index: 1, kind: input, shape index: {}]
  %s2 = inlined_call_operand.vmem [shape: bf16[100,64], index: 2, kind: input, shape index: {}]
  %s3 = inlined_call_operand.vmem [shape: bf16[8,64], index: 3, kind: input, shape index: {}]
  %s4 = inlined_call_operand.hbm [shape: bf16[2,64], index: 4, kind: input, shape index: {}]
  %s5 = inlined_call_operand.hbm [shape: f32[1,64], index: 5, kind: input, shape index: {}]
  %s6 = inlined_call_operand.hbm [shape: f32[1,64], index: 6, kind: input, shape index: {}]
  %s7 = inlined_call_operand.vmem [shape: bf16[2,64,192], index: 7, kind: input, shape index: {}]
  %s8 = inlined_call_operand.vmem [shape: f32[2,1,192], index: 8, kind: input, shape index: {}]
  %s9 = inlined_call_operand.vmem [shape: bf16[2,64,64], index: 9, kind: input, shape index: {}]
  %s10 = inlined_call_operand.vmem [shape: f32[2,1,64], index: 10, kind: input, shape index: {}]
  %s11 = inlined_call_operand.vmem [shape: f32[2,1,64], index: 11, kind: input, shape index: {}]
  %s12 = inlined_call_operand.vmem [shape: f32[2,1,64], index: 12, kind: input, shape index: {}]
  %s13 = inlined_call_operand.hbm [shape: bf16[2,64,128], index: 13, kind: input, shape index: {}]
  %s14 = inlined_call_operand.vmem [shape: f32[2,1,128], index: 14, kind: input, shape index: {}]
  %s15 = inlined_call_operand.vmem [shape: bf16[2,128,64], index: 15, kind: input, shape index: {}]
  %s16 = inlined_call_operand.vmem [shape: f32[2,1,64], index: 16, kind: input, shape index: {}]
  %s17 = inlined_call_operand.vmem [shape: f32[2,1,64], index: 17, kind: input, shape index: {}]
  %s18 = inlined_call_operand.vmem [shape: f32[2,1,64], index: 18, kind: input, shape index: {}]
  %s19 = inlined_call_operand.vmem [shape: bf16[64,64], index: 19, kind: input, shape index: {}]
  %s20 = inlined_call_operand.vmem [shape: f32[1,64], index: 20, kind: input, shape index: {}]
  %s21 = inlined_call_operand.vmem [shape: bf16[64,32], index: 21, kind: input, shape index: {}]
  %s22 = inlined_call_operand.vmem [shape: f32[1,32], index: 22, kind: input, shape index: {}]
  %s23 = inlined_call_operand.vmem [shape: bf16[32,4], index: 23, kind: input, shape index: {}]
  %s24 = inlined_call_operand.vmem [shape: f32[1,4], index: 24, kind: input, shape index: {}]
  %s25 = inlined_call_operand.hbm [shape: f32[2,64], index: 25, kind: output, shape index: {0}]
  %s26 = inlined_call_operand.hbm [shape: f32[2,32], index: 26, kind: output, shape index: {1}]
  %s27 = inlined_call_operand.hbm [shape: f32[2,4], index: 27, kind: output, shape index: {2}]
  %28 = xla_tuple %s25, %s26, %s27
  %s29 = sld [smem:[#allocation0]]
  $region142: #{tpu_custom_call.1} parent=0
    _
  %s31 = ssub.s32 1, %s29
  %s32 = scalar_select 0, %s31, %s29
  $region1: #{tpu_custom_call.1} parent=0
    #allocation2 [shape = 'u8[512]{0}', space=vmem, size = 0x400, scoped, tag = 'input window, operand 4, single buffered']
    #allocation3 [shape = 's32[1]{0}', space=sflag, size = 0x4, scoped, tag = 'scoped memory for tpu_custom_call.1']
    #allocation4 [shape = 's32[1]{0}', space=sflag, size = 0x4, scoped, tag = 'scoped memory for tpu_custom_call.1']
    #allocation5 [shape = 'u8[512]{0}', space=vmem, size = 0x400, scoped, tag = 'input window, operand 5, single buffered']
    #allocation6 [shape = 's32[1]{0}', space=sflag, size = 0x4, scoped, tag = 'scoped memory for tpu_custom_call.1']
    #allocation7 [shape = 'u8[512]{0}', space=vmem, size = 0x400, scoped, tag = 'input window, operand 6, single buffered']
    #allocation8 [shape = 'u8[32768]{0}', space=vmem, size = 0x8000, scoped, tag = 'input window, operand 13, single buffered']
    #allocation9 [shape = 's32[1]{0}', space=sflag, size = 0x4, scoped, tag = 'scoped memory for tpu_custom_call.1']
    #allocation10 [shape = 'u8[1024]{0}', space=vmem, size = 0x400, scoped, tag = 'output window, operand 0, single buffered']
    #allocation11 [shape = 'u8[1024]{0}', space=vmem, size = 0x400, scoped, tag = 'output window, operand 1, single buffered']
    #allocation12 [shape = 's32[1]{0}', space=sflag, size = 0x4, scoped, tag = 'scoped memory for tpu_custom_call.1']
    #allocation13 [shape = 'u8[1024]{0}', space=vmem, size = 0x400, scoped, tag = 'output window, operand 2, single buffered']
    %33 = vsyncpa [#allocation3], 0
    %34 = vsyncpa [#allocation6], 0
    %35 = vsyncpa [#allocation9], 0
    %36 = vsyncpa [#allocation4], 0
    %37 = vsyncpa [#allocation12], 0
    // Predicated region
    $region2: #{tpu_custom_call.1} parent=1 // pred_check
      _
    $region3: #{tpu_custom_call.1} parent=1 // pred_check_branch
      %39 = sbr.rel (0) target = $region5
    $region4: #{tpu_custom_call.1} parent=1 // pred_region
      _
    $region5: #{tpu_custom_call.1} parent=1 // pred_fallthru
      _
    // Predicated region
    $region6: #{tpu_custom_call.1} parent=1 // pred_check
      _
    $region7: #{tpu_custom_call.1} parent=1 // pred_check_branch
      %41 = sbr.rel (0) target = $region9
    $region8: #{tpu_custom_call.1} parent=1 // pred_region
      _
    $region9: #{tpu_custom_call.1} parent=1 // pred_fallthru
      _
    // Predicated region
    $region10: #{tpu_custom_call.1} parent=1 // pred_check
      _
    $region11: #{tpu_custom_call.1} parent=1 // pred_check_branch
      %43 = sbr.rel (0) target = $region13
    $region12: #{tpu_custom_call.1} parent=1 // pred_region
      _
    $region13: #{tpu_custom_call.1} parent=1 // pred_fallthru
      _
    // Predicated region
    $region14: #{tpu_custom_call.1} parent=1 // pred_check
      _
    $region15: #{tpu_custom_call.1} parent=1 // pred_check_branch
      %45 = sbr.rel (0) target = $region17
    $region16: #{tpu_custom_call.1} parent=1 // pred_region
      _
    $region17: #{tpu_custom_call.1} parent=1 // pred_fallthru
      _
    // Predicated region
    $region18: #{tpu_custom_call.1} parent=1 // pred_check
      _
    $region19: #{tpu_custom_call.1} parent=1 // pred_check_branch
      %47 = sbr.rel (0) target = $region21
    $region20: #{tpu_custom_call.1} parent=1 // pred_region
      %49 = vsyncadd [#allocation3], 0
      %s51 = sshll.u32 %s4, 4
      %s52 = int_to_ptr.hbm [resolvable:$true] %s51
      %s53 = sshll.u32 [#allocation2], 4
      %s54 = int_to_ptr.vmem [resolvable:$true] %s53
      %56 = dma.hbm_to_vmem [thread:$0]  %s52, 16, %s54, [#allocation3]
    $region21: #{tpu_custom_call.1} parent=1 // pred_fallthru
      _
    // Predicated region
    $region22: #{tpu_custom_call.1} parent=1 // pred_check
      _
    $region23: #{tpu_custom_call.1} parent=1 // pred_check_branch
      %58 = sbr.rel (0) target = $region25
    $region24: #{tpu_custom_call.1} parent=1 // pred_region
      %60 = vsyncadd [#allocation6], 0
      %s62 = sshll.u32 %s5, 4
      %s63 = int_to_ptr.hbm [resolvable:$true] %s62
      %s64 = sshll.u32 [#allocation5], 4
      %s65 = int_to_ptr.vmem [resolvable:$true] %s64
      %67 = dma.hbm_to_vmem [thread:$0]  %s63, 16, %s65, [#allocation6]
    $region25: #{tpu_custom_call.1} parent=1 // pred_fallthru
      _
    // Predicated region
    $region26: #{tpu_custom_call.1} parent=1 // pred_check
      _
    $region27: #{tpu_custom_call.1} parent=1 // pred_check_branch
      %69 = sbr.rel (0) target = $region29
    $region28: #{tpu_custom_call.1} parent=1 // pred_region
      %71 = vsyncadd [#allocation6], 0
      %s73 = sshll.u32 %s6, 4
      %s74 = int_to_ptr.hbm [resolvable:$true] %s73
      %s75 = sshll.u32 [#allocation7], 4
      %s76 = int_to_ptr.vmem [resolvable:$true] %s75
      %78 = dma.hbm_to_vmem [thread:$0]  %s74, 16, %s76, [#allocation6]
    $region29: #{tpu_custom_call.1} parent=1 // pred_fallthru
      _
    // Predicated region
    $region30: #{tpu_custom_call.1} parent=1 // pred_check
      _
    $region31: #{tpu_custom_call.1} parent=1 // pred_check_branch
      %80 = sbr.rel (0) target = $region33
    $region32: #{tpu_custom_call.1} parent=1 // pred_region
      _
    $region33: #{tpu_custom_call.1} parent=1 // pred_fallthru
      _
    // Predicated region
    $region34: #{tpu_custom_call.1} parent=1 // pred_check
      _
    $region35: #{tpu_custom_call.1} parent=1 // pred_check_branch
      %82 = sbr.rel (0) target = $region37
    $region36: #{tpu_custom_call.1} parent=1 // pred_region
      _
    $region37: #{tpu_custom_call.1} parent=1 // pred_fallthru
      _
    // Predicated region
    $region38: #{tpu_custom_call.1} parent=1 // pred_check
      _
    $region39: #{tpu_custom_call.1} parent=1 // pred_check_branch
      %84 = sbr.rel (0) target = $region41
    $region40: #{tpu_custom_call.1} parent=1 // pred_region
      _
    $region41: #{tpu_custom_call.1} parent=1 // pred_fallthru
      _
    // Predicated region
    $region42: #{tpu_custom_call.1} parent=1 // pred_check
      _
    $region43: #{tpu_custom_call.1} parent=1 // pred_check_branch
      %86 = sbr.rel (0) target = $region45
    $region44: #{tpu_custom_call.1} parent=1 // pred_region
      _
    $region45: #{tpu_custom_call.1} parent=1 // pred_fallthru
      _
    // Predicated region
    $region46: #{tpu_custom_call.1} parent=1 // pred_check
      _
    $region47: #{tpu_custom_call.1} parent=1 // pred_check_branch
      %88 = sbr.rel (0) target = $region49
    $region48: #{tpu_custom_call.1} parent=1 // pred_region
      _
    $region49: #{tpu_custom_call.1} parent=1 // pred_fallthru
      _
    // Predicated region
    $region50: #{tpu_custom_call.1} parent=1 // pred_check
      _
    $region51: #{tpu_custom_call.1} parent=1 // pred_check_branch
      %90 = sbr.rel (0) target = $region53
    $region52: #{tpu_custom_call.1} parent=1 // pred_region
      _
    $region53: #{tpu_custom_call.1} parent=1 // pred_fallthru
      _
    // Predicated region
    $region54: #{tpu_custom_call.1} parent=1 // pred_check
      _
    $region55: #{tpu_custom_call.1} parent=1 // pred_check_branch
      %92 = sbr.rel (0) target = $region57
    $region56: #{tpu_custom_call.1} parent=1 // pred_region
      %94 = vsyncadd [#allocation9], 0
      %s95 = sshll.u32 %s13, 4
      %s96 = int_to_ptr.hbm [resolvable:$true] %s95
      %s97 = sshll.u32 [#allocation8], 4
      %s98 = int_to_ptr.vmem [resolvable:$true] %s97
      %103 = dma.hbm_to_vmem [thread:$0]  %s96, 1024, %s98, [#allocation9], 64, 64, 4
    $region57: #{tpu_custom_call.1} parent=1 // pred_fallthru
      _
    // Predicated region
    $region58: #{tpu_custom_call.1} parent=1 // pred_check
      _
    $region59: #{tpu_custom_call.1} parent=1 // pred_check_branch
      %105 = sbr.rel (0) target = $region61
    $region60: #{tpu_custom_call.1} parent=1 // pred_region
      _
    $region61: #{tpu_custom_call.1} parent=1 // pred_fallthru
      _
    // Predicated region
    $region62: #{tpu_custom_call.1} parent=1 // pred_check
      _
    $region63: #{tpu_custom_call.1} parent=1 // pred_check_branch
      %107 = sbr.rel (0) target = $region65
    $region64: #{tpu_custom_call.1} parent=1 // pred_region
      _
    $region65: #{tpu_custom_call.1} parent=1 // pred_fallthru
      _
    // Predicated region
    $region66: #{tpu_custom_call.1} parent=1 // pred_check
      _
    $region67: #{tpu_custom_call.1} parent=1 // pred_check_branch
      %109 = sbr.rel (0) target = $region69
    $region68: #{tpu_custom_call.1} parent=1 // pred_region
      _
    $region69: #{tpu_custom_call.1} parent=1 // pred_fallthru
      _
    // Predicated region
    $region70: #{tpu_custom_call.1} parent=1 // pred_check
      _
    $region71: #{tpu_custom_call.1} parent=1 // pred_check_branch
      %111 = sbr.rel (0) target = $region73
    $region72: #{tpu_custom_call.1} parent=1 // pred_region
      _
    $region73: #{tpu_custom_call.1} parent=1 // pred_fallthru
      _
    // Predicated region
    $region74: #{tpu_custom_call.1} parent=1 // pred_check
      _
    $region75: #{tpu_custom_call.1} parent=1 // pred_check_branch
      %113 = sbr.rel (0) target = $region77
    $region76: #{tpu_custom_call.1} parent=1 // pred_region
      _
    $region77: #{tpu_custom_call.1} parent=1 // pred_fallthru
      _
    // Predicated region
    $region78: #{tpu_custom_call.1} parent=1 // pred_check
      _
    $region79: #{tpu_custom_call.1} parent=1 // pred_check_branch
      %115 = sbr.rel (0) target = $region81
    $region80: #{tpu_custom_call.1} parent=1 // pred_region
      _
    $region81: #{tpu_custom_call.1} parent=1 // pred_fallthru
      _
    // Predicated region
    $region82: #{tpu_custom_call.1} parent=1 // pred_check
      _
    $region83: #{tpu_custom_call.1} parent=1 // pred_check_branch
      %117 = sbr.rel (0) target = $region85
    $region84: #{tpu_custom_call.1} parent=1 // pred_region
      _
    $region85: #{tpu_custom_call.1} parent=1 // pred_fallthru
      _
    // Predicated region
    $region86: #{tpu_custom_call.1} parent=1 // pred_check
      _
    $region87: #{tpu_custom_call.1} parent=1 // pred_check_branch
      %119 = sbr.rel (0) target = $region89
    $region88: #{tpu_custom_call.1} parent=1 // pred_region
      _
    $region89: #{tpu_custom_call.1} parent=1 // pred_fallthru
      _
    // Predicated region
    $region90: #{tpu_custom_call.1} parent=1 // pred_check
      _
    $region91: #{tpu_custom_call.1} parent=1 // pred_check_branch
      %121 = sbr.rel (0) target = $region93
    $region92: #{tpu_custom_call.1} parent=1 // pred_region
      _
    $region93: #{tpu_custom_call.1} parent=1 // pred_fallthru
      _
    // Predicated region
    $region94: #{tpu_custom_call.1} parent=1 // pred_check
      _
    $region95: #{tpu_custom_call.1} parent=1 // pred_check_branch
      %123 = sbr.rel (0) target = $region97
    $region96: #{tpu_custom_call.1} parent=1 // pred_region
      _
    $region97: #{tpu_custom_call.1} parent=1 // pred_fallthru
      _
    // Predicated region
    $region98: #{tpu_custom_call.1} parent=1 // pred_check
      _
    $region99: #{tpu_custom_call.1} parent=1 // pred_check_branch
      %125 = sbr.rel (0) target = $region101
    $region100: #{tpu_custom_call.1} parent=1 // pred_region
      _
    $region101: #{tpu_custom_call.1} parent=1 // pred_fallthru
      _
    // Predicated region
    $region102: #{tpu_custom_call.1} parent=1 // pred_check
      _
    $region103: #{tpu_custom_call.1} parent=1 // pred_check_branch
      %127 = sbr.rel (0) target = $region105
    $region104: #{tpu_custom_call.1} parent=1 // pred_region
      %129 = dma.done [#allocation3], 16
    $region105: #{tpu_custom_call.1} parent=1 // pred_fallthru
      _
    // Predicated region
    $region106: #{tpu_custom_call.1} parent=1 // pred_check
      _
    $region107: #{tpu_custom_call.1} parent=1 // pred_check_branch
      %131 = sbr.rel (0) target = $region109
    $region108: #{tpu_custom_call.1} parent=1 // pred_region
      %133 = dma.done [#allocation6], 16
    $region109: #{tpu_custom_call.1} parent=1 // pred_fallthru
      _
    // Predicated region
    $region110: #{tpu_custom_call.1} parent=1 // pred_check
      _
    $region111: #{tpu_custom_call.1} parent=1 // pred_check_branch
      %135 = sbr.rel (0) target = $region113
    $region112: #{tpu_custom_call.1} parent=1 // pred_region
      %137 = dma.done [#allocation6], 16
    $region113: #{tpu_custom_call.1} parent=1 // pred_fallthru
      _
    // Predicated region
    $region114: #{tpu_custom_call.1} parent=1 // pred_check
      _
    $region115: #{tpu_custom_call.1} parent=1 // pred_check_branch
      %139 = sbr.rel (0) target = $region117
    $region116: #{tpu_custom_call.1} parent=1 // pred_region
      %141 = dma.done [#allocation9], 1024
    $region117: #{tpu_custom_call.1} parent=1 // pred_fallthru
      _
    %v143 = vld [vmem:[%s0] sm:$0xff]
    %v144 = vld [vmem:[%s0 + $0x8] sm:$0xff]
    %v145 = vlaneseq
    %v146 = vand.u32 %v145, 127
    %147 = vset.pattern.permute.xlu0 0
    %148 = vperm.xlu0 %147, %v143
    %v149 = vpop.permute.xlu0 %148
    %150 = vset.pattern.permute.xlu0 0
    %151 = vperm.xlu0 %150, %v144
    %v152 = vpop.permute.xlu0 %151
    %vm153 = vcmp.eq.s32.totalorder %v146, %v149
    %vm154 = vcmp.eq.s32.totalorder %v146, %v152
    %v155 = vsel %vm153, 1, 0
    %v156 = vsel %vm154, 1, 0
    %v157 = vcvt.s32.f32 %v155
    %v158 = vcvt.s32.f32 %v156
    %v159 = vpack.c.bf16 %v158, %v157
    %v160 = vld [vmem:[%s2] sm:$0xf]
    %v161 = vld [vmem:[%s2 + $0x4] sm:$0xf]
    %v162 = vld [vmem:[%s2 + $0x8] sm:$0xf]
    %v163 = vld [vmem:[%s2 + $0xc] sm:$0xf]
    %v164 = vld [vmem:[%s2 + $0x10] sm:$0xf]
    %v165 = vld [vmem:[%s2 + $0x14] sm:$0xf]
    %v166 = vld [vmem:[%s2 + $0x18] sm:$0xf]
    %v167 = vld [vmem:[%s2 + $0x1c] sm:$0xf]
    %v168 = vld [vmem:[%s2 + $0x20] sm:$0xf]
    %v169 = vld [vmem:[%s2 + $0x24] sm:$0xf]
    %v170 = vld [vmem:[%s2 + $0x28] sm:$0xf]
    %v171 = vld [vmem:[%s2 + $0x2c] sm:$0xf]
    %v172 = vld [vmem:[%s2 + $0x30] sm:$0x3]
    %v186 = vunpack.c.l.b16 %v160
    %v187 = vunpack.c.l.b16 %v161
    %v188 = vunpack.c.l.b16 %v162
    %v189 = vunpack.c.l.b16 %v163
    %v190 = vunpack.c.l.b16 %v164
    %v191 = vunpack.c.l.b16 %v165
    %v192 = vunpack.c.l.b16 %v166
    %v193 = vunpack.c.l.b16 %v167
    %v194 = vunpack.c.l.b16 %v168
    %v195 = vunpack.c.l.b16 %v169
    %v196 = vunpack.c.l.b16 %v170
    %v197 = vunpack.c.l.b16 %v171
    %v198 = vunpack.c.l.b16 %v172
    %v199 = vpack.c.b16 %v187, %v186
    %v200 = vpack.c.b16 %v189, %v188
    %v201 = vpack.c.b16 %v191, %v190
    %v202 = vpack.c.b16 %v193, %v192
    %v203 = vpack.c.b16 %v195, %v194
    %v204 = vpack.c.b16 %v197, %v196
    %v205 = vpack.c.b16 %v198, %v198
    %vm212 = vcmask 818176
    %v214 = vsel %vm212, %v159, 0
    %vm216 = vcmask 1041408
    %v218 = vsel %vm216, %v205, 0
    %220 = vmatpush.bf16.msra.mxu0 0
    %221 = vmatpush.bf16.msra.mxu0 %v218
    %222 = vmatpush.bf16.msra.mxu0 %v204
    %223 = vmatpush.bf16.msra.mxu0 %v203
    %224 = vmatpush.bf16.msra.mxu0 %v202
    %225 = vmatpush.bf16.msra.mxu0 %v201
    %226 = vmatpush.bf16.msra.mxu0 %v200
    %227 = vmatpush.bf16.msra.mxu0 %v199
    %228 = vmatmul.bf16.gmra.mxu0 %v214
    %v229 = vpop.f32.mrf.mxu0
    %v230 = vadd.f32 0.0, %v229
    %v231 = vpop.f32.mrf.mxu0
    %v232 = vadd.f32 0.0, %v231
    %233 = vdwg.mxu0
    %v234 = vld [vmem:[%s3] sm:$0xf]
    %v235 = vunpack.c.l.bf16 %v234
    %v236 = vadd.f32 %v230, %v235
    %v237 = vadd.f32 %v232, %v235
    %v238 = vld [vmem:[#allocation2] sm:$0x1]
    %v239 = vunpack.c.l.bf16 %v238
    %v240 = vperm.slane %v239, 0
    %v241 = vadd.f32 %v236, %v240
    %v242 = vadd.f32 %v237, %v240
    %v243 = vld [vmem:[#allocation5] sm:$0x1]
    %v244 = vld [vmem:[#allocation7] sm:$0x1]
    %vm245 = vcmask 523264
    %v246 = vsel %vm245, %v241, 0.0
    %247 = vadd.xlane.f32.xlu0 %v246
    %v248 = vpop.xlane.xlu0 %247
    %v249 = vsel %vm245, %v242, 0.0
    %250 = vadd.xlane.f32.xlu0 %v249
    %v251 = vpop.xlane.xlu0 %250
    %v252 = vrcp.pop 64.0
    %v253 = vmul.f32 64.0, %v252
    %v254 = vsub.f32 1.0, %v253
    %v255 = vmul.f32 %v252, %v254
    %v256 = vadd.f32 %v252, %v255
    %vm257 = vweird.f32 %v252
    %v258 = vsel %vm257, %v252, %v256
    %v259 = vmul.f32 %v248, %v258
    %v260 = vmul.f32 %v251, %v258
    %v261 = vsub.f32 %v241, %v259
    %v262 = vsub.f32 %v242, %v260
    %v263 = vmul.f32 %v261, %v261
    %v264 = vmul.f32 %v262, %v262
    %v265 = vsel %vm245, %v263, 0.0
    %266 = vadd.xlane.f32.xlu0 %v265
    %v267 = vpop.xlane.xlu0 %266
    %v268 = vsel %vm245, %v264, 0.0
    %269 = vadd.xlane.f32.xlu0 %v268
    %v270 = vpop.xlane.xlu0 %269
    %v271 = vmul.f32 %v267, %v258
    %v272 = vmul.f32 %v270, %v258
    %v273 = vadd.f32 %v271, 1e-12
    %v274 = vadd.f32 %v272, 1e-12
    %v275 = vrsqrt.pop %v273
    %v276 = vmul.f32 %v275, %v273
    %v277 = vmul.f32 %v276, %v275
    %v278 = vmul.f32 0.5, %v277
    %v279 = vsub.f32 1.5, %v278
    %v280 = vmul.f32 %v275, %v279
    %vm281 = vweird.f32 %v273
    %vm282 = vweird.f32 %v275
    %vm283 = vmor %vm281, %vm282
    %v284 = vsel %vm283, %v275, %v280
    %v285 = vrsqrt.pop %v274
    %v286 = vmul.f32 %v285, %v274
    %v287 = vmul.f32 %v286, %v285
    %v288 = vmul.f32 0.5, %v287
    %v289 = vsub.f32 1.5, %v288
    %v290 = vmul.f32 %v285, %v289
    %vm291 = vweird.f32 %v274
    %vm292 = vweird.f32 %v285
    %vm293 = vmor %vm291, %vm292
    %v294 = vsel %vm293, %v285, %v290
    %v295 = vmul.f32 %v261, %v284
    %v296 = vmul.f32 %v262, %v294
    %v298 = vperm.slane %v243, 0
    %v300 = vmul.f32 %v295, %v298
    %v301 = vmul.f32 %v296, %v298
    %v303 = vperm.slane %v244, 0
    %v305 = vadd.f32 %v300, %v303
    %v306 = vadd.f32 %v301, %v303
    %v307 = vld [vmem:[%s1] sm:$0x3]
    %v308 = vcvt.s32.f32 %v307
    %v309 = vsub.f32 1.0, %v308
    %v310 = vmul.f32 %v309, -1e+09
    %v312 = vrot.slane %v310, 1
    %v313 = vperm.slane %v310, 0
    %v314 = vperm.slane %v312, 0
    %v317 = vld [vmem:[%s7] sm:$0xff]
    %v318 = vld [vmem:[%s7 + $0x8] sm:$0xff]
    %v319 = vld [vmem:[%s7 + $0x10] sm:$0xff]
    %v320 = vld [vmem:[%s7 + $0x18] sm:$0xff]
    %v321 = vld [vmem:[%s7 + $0x20] sm:$0xff]
    %v322 = vld [vmem:[%s7 + $0x28] sm:$0xff]
    %v323 = vld [vmem:[%s7 + $0x30] sm:$0xff]
    %v324 = vld [vmem:[%s7 + $0x38] sm:$0xff]
    %v325 = vpack.c.bf16 %v306, %v305
    %v326 = vld [vmem:[%s8] sm:$0x3]
    %v328 = vperm.slane %v326, 0
    %v329 = vperm.slane %v326, 1
    %v340 = vunpack.c.l.b16 %v317
    %v341 = vunpack.c.h.b16 %v317
    %v342 = vunpack.c.l.b16 %v318
    %v343 = vunpack.c.h.b16 %v318
    %v344 = vunpack.c.l.b16 %v319
    %v345 = vunpack.c.h.b16 %v319
    %v346 = vunpack.c.l.b16 %v320
    %v347 = vunpack.c.h.b16 %v320
    %v348 = vunpack.c.l.b16 %v321
    %v349 = vunpack.c.h.b16 %v321
    %v350 = vunpack.c.l.b16 %v322
    %v351 = vunpack.c.h.b16 %v322
    %v352 = vunpack.c.l.b16 %v323
    %v353 = vunpack.c.h.b16 %v323
    %v354 = vunpack.c.l.b16 %v324
    %v355 = vunpack.c.h.b16 %v324
    %v356 = vpack.c.b16 %v342, %v340
    %v357 = vpack.c.b16 %v343, %v341
    %v358 = vpack.c.b16 %v346, %v344
    %v359 = vpack.c.b16 %v347, %v345
    %v360 = vpack.c.b16 %v350, %v348
    %v361 = vpack.c.b16 %v351, %v349
    %v362 = vpack.c.b16 %v354, %v352
    %v363 = vpack.c.b16 %v355, %v353
    %v373 = vsel %vm245, %v325, 0
    %375 = vmatpush.bf16.msra.mxu0 0
    %376 = vmatpush.bf16.msra.mxu0 0
    %377 = vmatpush.bf16.msra.mxu0 0
    %378 = vmatpush.bf16.msra.mxu0 0
    %379 = vmatpush.bf16.msra.mxu0 %v362
    %380 = vmatpush.bf16.msra.mxu0 %v360
    %381 = vmatpush.bf16.msra.mxu0 %v358
    %382 = vmatpush.bf16.msra.mxu0 %v356
    %383 = vmatmul.bf16.gmra.mxu0 %v373
    %v384 = vpop.f32.mrf.mxu0
    %v385 = vadd.f32 %v328, %v384
    %v386 = vpop.f32.mrf.mxu0
    %v387 = vadd.f32 %v328, %v386
    %388 = vdwg.mxu0
    %389 = vmatpush.bf16.msra.mxu0 0
    %390 = vmatpush.bf16.msra.mxu0 0
    %391 = vmatpush.bf16.msra.mxu0 0
    %392 = vmatpush.bf16.msra.mxu0 0
    %393 = vmatpush.bf16.msra.mxu0 %v363
    %394 = vmatpush.bf16.msra.mxu0 %v361
    %395 = vmatpush.bf16.msra.mxu0 %v359
    %396 = vmatpush.bf16.msra.mxu0 %v357
    %397 = vmatmul.bf16.gmra.mxu0 %v373
    %v398 = vpop.f32.mrf.mxu0
    %v399 = vadd.f32 %v329, %v398
    %v400 = vpop.f32.mrf.mxu0
    %v401 = vadd.f32 %v329, %v400
    %402 = vdwg.mxu0
    %v403 = vpack.c.bf16 %v385, %v385
    %v404 = vpack.c.bf16 %v387, %v387
    %v405 = vpack.c.bf16 %v399, %v399
    %v406 = vpack.c.bf16 %v401, %v401
    %v408 = vunpack.c.l.b16 %v403
    %v409 = vpack.c.b16 %v408, %v408
    %410 = vrot.lane.b32.xlu0 %v409, 64
    %v411 = vpop.permute.xlu0 %410
    %vm412 = vcmask 130048
    %v414 = vsel %vm412, %v403, 0
    %v417 = vsel %vm412, %v411, 0
    %419 = vmatpush.bf16.xpose.msra.mxu0 0
    %420 = vmatpush.bf16.xpose.msra.mxu0 0
    %421 = vmatpush.bf16.xpose.msra.mxu0 0
    %422 = vmatpush.bf16.xpose.msra.mxu0 0
    %423 = vmatpush.bf16.xpose.msra.mxu0 0
    %424 = vmatpush.bf16.xpose.msra.mxu0 0
    %425 = vmatpush.bf16.xpose.msra.mxu0 0
    %426 = vmatpush.bf16.xpose.msra.mxu0 %v417
    %427 = vmatmul.bf16.gmra.mxu0 %v414
    %v428 = vpop.f32.mrf.mxu0
    %v429 = vadd.f32 0.0, %v428
    %v430 = vpop.f32.mrf.mxu0
    %431 = vdwg.mxu0
    %v433 = vunpack.c.l.b16 %v404
    %v434 = vpack.c.b16 %v433, %v433
    %435 = vrot.lane.b32.xlu0 %v434, 64
    %v436 = vpop.permute.xlu0 %435
    %v438 = vsel %vm412, %v404, 0
    %v441 = vsel %vm412, %v436, 0
    %443 = vmatpush.bf16.xpose.msra.mxu0 0
    %444 = vmatpush.bf16.xpose.msra.mxu0 0
    %445 = vmatpush.bf16.xpose.msra.mxu0 0
    %446 = vmatpush.bf16.xpose.msra.mxu0 0
    %447 = vmatpush.bf16.xpose.msra.mxu0 0
    %448 = vmatpush.bf16.xpose.msra.mxu0 0
    %449 = vmatpush.bf16.xpose.msra.mxu0 0
    %450 = vmatpush.bf16.xpose.msra.mxu0 %v441
    %451 = vmatmul.bf16.gmra.mxu0 %v438
    %v452 = vpop.f32.mrf.mxu0
    %v453 = vadd.f32 0.0, %v452
    %v454 = vpop.f32.mrf.mxu0
    %455 = vdwg.mxu0
    %v456 = vmul.f32 %v429, 0.25
    %v457 = vmul.f32 %v453, 0.25
    %v458 = vadd.f32 %v456, %v313
    %v459 = vadd.f32 %v457, %v314
    %vm460 = vcmask 64512
    %v461 = vsel %vm460, %v458, -inf
    %462 = vmax.xlane.f32.xlu0 %v461
    %v463 = vpop.xlane.xlu0 %462
    %v464 = vsel %vm460, %v459, -inf
    %465 = vmax.xlane.f32.xlu0 %v464
    %v466 = vpop.xlane.xlu0 %465
    %v467 = vsub.f32 %v458, %v463
    %v468 = vsub.f32 %v459, %v466
    %v469 = vmul.f32 %v467, 1.442695
    %v470 = vpow.pop %v469
    %v471 = vmul.f32 %v468, 1.442695
    %v472 = vpow.pop %v471
    %v473 = vsel %vm460, %v470, 0.0
    %474 = vadd.xlane.f32.xlu0 %v473
    %v475 = vpop.xlane.xlu0 %474
    %v476 = vsel %vm460, %v472, 0.0
    %477 = vadd.xlane.f32.xlu0 %v476
    %v478 = vpop.xlane.xlu0 %477
    %v479 = vrcp.pop %v475
    %v480 = vrcp.pop %v478
    %v481 = vmul.f32 %v470, %v479
    %v482 = vmul.f32 %v472, %v480
    %v483 = vpack.c.bf16 %v481, %v481
    %v484 = vpack.c.bf16 %v482, %v482
    %v486 = vsel %vm460, %v483, 0
    %vm488 = vcmask 1043456
    %v490 = vsel %vm488, %v405, 0
    %492 = vmatpush.bf16.msra.mxu0 0
    %493 = vmatpush.bf16.msra.mxu0 0
    %494 = vmatpush.bf16.msra.mxu0 0
    %495 = vmatpush.bf16.msra.mxu0 0
    %496 = vmatpush.bf16.msra.mxu0 0
    %497 = vmatpush.bf16.msra.mxu0 0
    %498 = vmatpush.bf16.msra.mxu0 0
    %499 = vmatpush.bf16.msra.mxu0 %v490
    %500 = vmatmul.bf16.gmra.mxu0 %v486
    %v501 = vpop.f32.mrf.mxu0
    %v502 = vadd.f32 0.0, %v501
    %v503 = vpop.f32.mrf.mxu0
    %504 = vdwg.mxu0
    %v506 = vsel %vm460, %v484, 0
    %v509 = vsel %vm488, %v406, 0
    %511 = vmatpush.bf16.msra.mxu0 0
    %512 = vmatpush.bf16.msra.mxu0 0
    %513 = vmatpush.bf16.msra.mxu0 0
    %514 = vmatpush.bf16.msra.mxu0 0
    %515 = vmatpush.bf16.msra.mxu0 0
    %516 = vmatpush.bf16.msra.mxu0 0
    %517 = vmatpush.bf16.msra.mxu0 0
    %518 = vmatpush.bf16.msra.mxu0 %v509
    %519 = vmatmul.bf16.gmra.mxu0 %v506
    %v520 = vpop.f32.mrf.mxu0
    %v521 = vadd.f32 0.0, %v520
    %v522 = vpop.f32.mrf.mxu0
    %523 = vdwg.mxu0
    %524 = vrot.lane.b32.xlu0 %v409, 112
    %v525 = vpop.permute.xlu0 %524
    %526 = vrot.lane.b32.xlu0 %v409, 48
    %v527 = vpop.permute.xlu0 %526
    %v529 = vsel %vm412, %v525, 0
    %v532 = vsel %vm412, %v527, 0
    %534 = vmatpush.bf16.xpose.msra.mxu0 0
    %535 = vmatpush.bf16.xpose.msra.mxu0 0
    %536 = vmatpush.bf16.xpose.msra.mxu0 0
    %537 = vmatpush.bf16.xpose.msra.mxu0 0
    %538 = vmatpush.bf16.xpose.msra.mxu0 0
    %539 = vmatpush.bf16.xpose.msra.mxu0 0
    %540 = vmatpush.bf16.xpose.msra.mxu0 0
    %541 = vmatpush.bf16.xpose.msra.mxu0 %v532
    %542 = vmatmul.bf16.gmra.mxu0 %v529
    %v543 = vpop.f32.mrf.mxu0
    %v544 = vadd.f32 0.0, %v543
    %v545 = vpop.f32.mrf.mxu0
    %546 = vdwg.mxu0
    %547 = vrot.lane.b32.xlu0 %v434, 112
    %v548 = vpop.permute.xlu0 %547
    %549 = vrot.lane.b32.xlu0 %v434, 48
    %v550 = vpop.permute.xlu0 %549
    %v552 = vsel %vm412, %v548, 0
    %v555 = vsel %vm412, %v550, 0
    %557 = vmatpush.bf16.xpose.msra.mxu0 0
    %558 = vmatpush.bf16.xpose.msra.mxu0 0
    %559 = vmatpush.bf16.xpose.msra.mxu0 0
    %560 = vmatpush.bf16.xpose.msra.mxu0 0
    %561 = vmatpush.bf16.xpose.msra.mxu0 0
    %562 = vmatpush.bf16.xpose.msra.mxu0 0
    %563 = vmatpush.bf16.xpose.msra.mxu0 0
    %564 = vmatpush.bf16.xpose.msra.mxu0 %v555
    %565 = vmatmul.bf16.gmra.mxu0 %v552
    %v566 = vpop.f32.mrf.mxu0
    %v567 = vadd.f32 0.0, %v566
    %v568 = vpop.f32.mrf.mxu0
    %569 = vdwg.mxu0
    %v570 = vmul.f32 %v544, 0.25
    %v571 = vmul.f32 %v567, 0.25
    %v572 = vadd.f32 %v570, %v313
    %v573 = vadd.f32 %v571, %v314
    %v574 = vsel %vm460, %v572, -inf
    %575 = vmax.xlane.f32.xlu0 %v574
    %v576 = vpop.xlane.xlu0 %575
    %v577 = vsel %vm460, %v573, -inf
    %578 = vmax.xlane.f32.xlu0 %v577
    %v579 = vpop.xlane.xlu0 %578
    %v580 = vsub.f32 %v572, %v576
    %v581 = vsub.f32 %v573, %v579
    %v582 = vmul.f32 %v580, 1.442695
    %v583 = vpow.pop %v582
    %v584 = vmul.f32 %v581, 1.442695
    %v585 = vpow.pop %v584
    %v586 = vsel %vm460, %v583, 0.0
    %587 = vadd.xlane.f32.xlu0 %v586
    %v588 = vpop.xlane.xlu0 %587
    %v589 = vsel %vm460, %v585, 0.0
    %590 = vadd.xlane.f32.xlu0 %v589
    %v591 = vpop.xlane.xlu0 %590
    %v592 = vrcp.pop %v588
    %v593 = vrcp.pop %v591
    %v594 = vmul.f32 %v583, %v592
    %v595 = vmul.f32 %v585, %v593
    %v596 = vpack.c.bf16 %v594, %v594
    %v597 = vpack.c.bf16 %v595, %v595
    %v599 = vunpack.c.l.b16 %v405
    %v600 = vpack.c.b16 %v599, %v599
    %601 = vrot.lane.b32.xlu0 %v600, 112
    %v602 = vpop.permute.xlu0 %601
    %v604 = vsel %vm460, %v596, 0
    %v607 = vsel %vm488, %v602, 0
    %609 = vmatpush.bf16.msra.mxu0 0
    %610 = vmatpush.bf16.msra.mxu0 0
    %611 = vmatpush.bf16.msra.mxu0 0
    %612 = vmatpush.bf16.msra.mxu0 0
    %613 = vmatpush.bf16.msra.mxu0 0
    %614 = vmatpush.bf16.msra.mxu0 0
    %615 = vmatpush.bf16.msra.mxu0 0
    %616 = vmatpush.bf16.msra.mxu0 %v607
    %617 = vmatmul.bf16.gmra.mxu0 %v604
    %v618 = vpop.f32.mrf.mxu0
    %v619 = vadd.f32 0.0, %v618
    %v620 = vpop.f32.mrf.mxu0
    %621 = vdwg.mxu0
    %v623 = vunpack.c.l.b16 %v406
    %v624 = vpack.c.b16 %v623, %v623
    %625 = vrot.lane.b32.xlu0 %v624, 112
    %v626 = vpop.permute.xlu0 %625
    %v628 = vsel %vm460, %v597, 0
    %v631 = vsel %vm488, %v626, 0
    %633 = vmatpush.bf16.msra.mxu0 0
    %634 = vmatpush.bf16.msra.mxu0 0
    %635 = vmatpush.bf16.msra.mxu0 0
    %636 = vmatpush.bf16.msra.mxu0 0
    %637 = vmatpush.bf16.msra.mxu0 0
    %638 = vmatpush.bf16.msra.mxu0 0
    %639 = vmatpush.bf16.msra.mxu0 0
    %640 = vmatpush.bf16.msra.mxu0 %v631
    %641 = vmatmul.bf16.gmra.mxu0 %v628
    %v642 = vpop.f32.mrf.mxu0
    %v643 = vadd.f32 0.0, %v642
    %v644 = vpop.f32.mrf.mxu0
    %645 = vdwg.mxu0
    %646 = vrot.lane.b32.xlu0 %v409, 96
    %v647 = vpop.permute.xlu0 %646
    %648 = vrot.lane.b32.xlu0 %v409, 32
    %v649 = vpop.permute.xlu0 %648
    %v651 = vsel %vm412, %v647, 0
    %v654 = vsel %vm412, %v649, 0
    %656 = vmatpush.bf16.xpose.msra.mxu0 0
    %657 = vmatpush.bf16.xpose.msra.mxu0 0
    %658 = vmatpush.bf16.xpose.msra.mxu0 0
    %659 = vmatpush.bf16.xpose.msra.mxu0 0
    %660 = vmatpush.bf16.xpose.msra.mxu0 0
    %661 = vmatpush.bf16.xpose.msra.mxu0 0
    %662 = vmatpush.bf16.xpose.msra.mxu0 0
    %663 = vmatpush.bf16.xpose.msra.mxu0 %v654
    %664 = vmatmul.bf16.gmra.mxu0 %v651
    %v665 = vpop.f32.mrf.mxu0
    %v666 = vadd.f32 0.0, %v665
    %v667 = vpop.f32.mrf.mxu0
    %668 = vdwg.mxu0
    %669 = vrot.lane.b32.xlu0 %v434, 96
    %v670 = vpop.permute.xlu0 %669
    %671 = vrot.lane.b32.xlu0 %v434, 32
    %v672 = vpop.permute.xlu0 %671
    %v674 = vsel %vm412, %v670, 0
    %v677 = vsel %vm412, %v672, 0
    %679 = vmatpush.bf16.xpose.msra.mxu0 0
    %680 = vmatpush.bf16.xpose.msra.mxu0 0
    %681 = vmatpush.bf16.xpose.msra.mxu0 0
    %682 = vmatpush.bf16.xpose.msra.mxu0 0
    %683 = vmatpush.bf16.xpose.msra.mxu0 0
    %684 = vmatpush.bf16.xpose.msra.mxu0 0
    %685 = vmatpush.bf16.xpose.msra.mxu0 0
    %686 = vmatpush.bf16.xpose.msra.mxu0 %v677
    %687 = vmatmul.bf16.gmra.mxu0 %v674
    %v688 = vpop.f32.mrf.mxu0
    %v689 = vadd.f32 0.0, %v688
    %v690 = vpop.f32.mrf.mxu0
    %691 = vdwg.mxu0
    %v692 = vmul.f32 %v666, 0.25
    %v693 = vmul.f32 %v689, 0.25
    %v694 = vadd.f32 %v692, %v313
    %v695 = vadd.f32 %v693, %v314
    %v696 = vsel %vm460, %v694, -inf
    %697 = vmax.xlane.f32.xlu0 %v696
    %v698 = vpop.xlane.xlu0 %697
    %v699 = vsel %vm460, %v695, -inf
    %700 = vmax.xlane.f32.xlu0 %v699
    %v701 = vpop.xlane.xlu0 %700
    %v702 = vsub.f32 %v694, %v698
    %v703 = vsub.f32 %v695, %v701
    %v704 = vmul.f32 %v702, 1.442695
    %v705 = vpow.pop %v704
    %v706 = vmul.f32 %v703, 1.442695
    %v707 = vpow.pop %v706
    %v708 = vsel %vm460, %v705, 0.0
    %709 = vadd.xlane.f32.xlu0 %v708
    %v710 = vpop.xlane.xlu0 %709
    %v711 = vsel %vm460, %v707, 0.0
    %712 = vadd.xlane.f32.xlu0 %v711
    %v713 = vpop.xlane.xlu0 %712
    %v714 = vrcp.pop %v710
    %v715 = vrcp.pop %v713
    %v716 = vmul.f32 %v705, %v714
    %v717 = vmul.f32 %v707, %v715
    %v718 = vpack.c.bf16 %v716, %v716
    %v719 = vpack.c.bf16 %v717, %v717
    %720 = vrot.lane.b32.xlu0 %v600, 96
    %v721 = vpop.permute.xlu0 %720
    %v723 = vsel %vm460, %v718, 0
    %v726 = vsel %vm488, %v721, 0
    %728 = vmatpush.bf16.msra.mxu0 0
    %729 = vmatpush.bf16.msra.mxu0 0
    %730 = vmatpush.bf16.msra.mxu0 0
    %731 = vmatpush.bf16.msra.mxu0 0
    %732 = vmatpush.bf16.msra.mxu0 0
    %733 = vmatpush.bf16.msra.mxu0 0
    %734 = vmatpush.bf16.msra.mxu0 0
    %735 = vmatpush.bf16.msra.mxu0 %v726
    %736 = vmatmul.bf16.gmra.mxu0 %v723
    %v737 = vpop.f32.mrf.mxu0
    %v738 = vadd.f32 0.0, %v737
    %v739 = vpop.f32.mrf.mxu0
    %740 = vdwg.mxu0
    %741 = vrot.lane.b32.xlu0 %v624, 96
    %v742 = vpop.permute.xlu0 %741
    %v744 = vsel %vm460, %v719, 0
    %v747 = vsel %vm488, %v742, 0
    %749 = vmatpush.bf16.msra.mxu0 0
    %750 = vmatpush.bf16.msra.mxu0 0
    %751 = vmatpush.bf16.msra.mxu0 0
    %752 = vmatpush.bf16.msra.mxu0 0
    %753 = vmatpush.bf16.msra.mxu0 0
    %754 = vmatpush.bf16.msra.mxu0 0
    %755 = vmatpush.bf16.msra.mxu0 0
    %756 = vmatpush.bf16.msra.mxu0 %v747
    %757 = vmatmul.bf16.gmra.mxu0 %v744
    %v758 = vpop.f32.mrf.mxu0
    %v759 = vadd.f32 0.0, %v758
    %v760 = vpop.f32.mrf.mxu0
    %761 = vdwg.mxu0
    %762 = vrot.lane.b32.xlu0 %v409, 80
    %v763 = vpop.permute.xlu0 %762
    %764 = vrot.lane.b32.xlu0 %v409, 16
    %v765 = vpop.permute.xlu0 %764
    %v767 = vsel %vm412, %v763, 0
    %v770 = vsel %vm412, %v765, 0
    %772 = vmatpush.bf16.xpose.msra.mxu0 0
    %773 = vmatpush.bf16.xpose.msra.mxu0 0
    %774 = vmatpush.bf16.xpose.msra.mxu0 0
    %775 = vmatpush.bf16.xpose.msra.mxu0 0
    %776 = vmatpush.bf16.xpose.msra.mxu0 0
    %777 = vmatpush.bf16.xpose.msra.mxu0 0
    %778 = vmatpush.bf16.xpose.msra.mxu0 0
    %779 = vmatpush.bf16.xpose.msra.mxu0 %v770
    %780 = vmatmul.bf16.gmra.mxu0 %v767
    %v781 = vpop.f32.mrf.mxu0
    %v782 = vadd.f32 0.0, %v781
    %v783 = vpop.f32.mrf.mxu0
    %784 = vdwg.mxu0
    %785 = vrot.lane.b32.xlu0 %v434, 80
    %v786 = vpop.permute.xlu0 %785
    %787 = vrot.lane.b32.xlu0 %v434, 16
    %v788 = vpop.permute.xlu0 %787
    %v790 = vsel %vm412, %v786, 0
    %v793 = vsel %vm412, %v788, 0
    %795 = vmatpush.bf16.xpose.msra.mxu0 0
    %796 = vmatpush.bf16.xpose.msra.mxu0 0
    %797 = vmatpush.bf16.xpose.msra.mxu0 0
    %798 = vmatpush.bf16.xpose.msra.mxu0 0
    %799 = vmatpush.bf16.xpose.msra.mxu0 0
    %800 = vmatpush.bf16.xpose.msra.mxu0 0
    %801 = vmatpush.bf16.xpose.msra.mxu0 0
    %802 = vmatpush.bf16.xpose.msra.mxu0 %v793
    %803 = vmatmul.bf16.gmra.mxu0 %v790
    %v804 = vpop.f32.mrf.mxu0
    %v805 = vadd.f32 0.0, %v804
    %v806 = vpop.f32.mrf.mxu0
    %807 = vdwg.mxu0
    %v808 = vmul.f32 %v782, 0.25
    %v809 = vmul.f32 %v805, 0.25
    %v810 = vadd.f32 %v808, %v313
    %v811 = vadd.f32 %v809, %v314
    %v812 = vsel %vm460, %v810, -inf
    %813 = vmax.xlane.f32.xlu0 %v812
    %v814 = vpop.xlane.xlu0 %813
    %v815 = vsel %vm460, %v811, -inf
    %816 = vmax.xlane.f32.xlu0 %v815
    %v817 = vpop.xlane.xlu0 %816
    %v818 = vsub.f32 %v810, %v814
    %v819 = vsub.f32 %v811, %v817
    %v820 = vmul.f32 %v818, 1.442695
    %v821 = vpow.pop %v820
    %v822 = vmul.f32 %v819, 1.442695
    %v823 = vpow.pop %v822
    %v824 = vsel %vm460, %v821, 0.0
    %825 = vadd.xlane.f32.xlu0 %v824
    %v826 = vpop.xlane.xlu0 %825
    %v827 = vsel %vm460, %v823, 0.0
    %828 = vadd.xlane.f32.xlu0 %v827
    %v829 = vpop.xlane.xlu0 %828
    %v830 = vrcp.pop %v826
    %v831 = vrcp.pop %v829
    %v832 = vmul.f32 %v821, %v830
    %v833 = vmul.f32 %v823, %v831
    %v834 = vpack.c.bf16 %v832, %v832
    %v835 = vpack.c.bf16 %v833, %v833
    %836 = vrot.lane.b32.xlu0 %v600, 80
    %v837 = vpop.permute.xlu0 %836
    %v839 = vsel %vm460, %v834, 0
    %v842 = vsel %vm488, %v837, 0
    %844 = vmatpush.bf16.msra.mxu0 0
    %845 = vmatpush.bf16.msra.mxu0 0
    %846 = vmatpush.bf16.msra.mxu0 0
    %847 = vmatpush.bf16.msra.mxu0 0
    %848 = vmatpush.bf16.msra.mxu0 0
    %849 = vmatpush.bf16.msra.mxu0 0
    %850 = vmatpush.bf16.msra.mxu0 0
    %851 = vmatpush.bf16.msra.mxu0 %v842
    %852 = vmatmul.bf16.gmra.mxu0 %v839
    %v853 = vpop.f32.mrf.mxu0
    %v854 = vadd.f32 0.0, %v853
    %v855 = vpop.f32.mrf.mxu0
    %856 = vdwg.mxu0
    %857 = vrot.lane.b32.xlu0 %v624, 80
    %v858 = vpop.permute.xlu0 %857
    %v860 = vsel %vm460, %v835, 0
    %v863 = vsel %vm488, %v858, 0
    %865 = vmatpush.bf16.msra.mxu0 0
    %866 = vmatpush.bf16.msra.mxu0 0
    %867 = vmatpush.bf16.msra.mxu0 0
    %868 = vmatpush.bf16.msra.mxu0 0
    %869 = vmatpush.bf16.msra.mxu0 0
    %870 = vmatpush.bf16.msra.mxu0 0
    %871 = vmatpush.bf16.msra.mxu0 0
    %872 = vmatpush.bf16.msra.mxu0 %v863
    %873 = vmatmul.bf16.gmra.mxu0 %v860
    %v874 = vpop.f32.mrf.mxu0
    %v875 = vadd.f32 0.0, %v874
    %v876 = vpop.f32.mrf.mxu0
    %877 = vdwg.mxu0
    %880 = vrot.lane.b32.xlu0 %v619, 16
    %v881 = vpop.permute.xlu0 %880
    %882 = vrot.lane.b32.xlu0 %v643, 16
    %v883 = vpop.permute.xlu0 %882
    %888 = vrot.lane.b32.xlu0 %v738, 32
    %v889 = vpop.permute.xlu0 %888
    %890 = vrot.lane.b32.xlu0 %v759, 32
    %v891 = vpop.permute.xlu0 %890
    %896 = vrot.lane.b32.xlu0 %v854, 48
    %v897 = vpop.permute.xlu0 %896
    %898 = vrot.lane.b32.xlu0 %v875, 48
    %v899 = vpop.permute.xlu0 %898
    %v902 = vsel %vm412, %v502, %v881
    %v903 = vsel %vm412, %v521, %v883
    %vm904 = vcmask 261120
    %v905 = vsel %vm904, %v902, %v889
    %v906 = vsel %vm904, %v903, %v891
    %vm907 = vcmask 392192
    %v908 = vsel %vm907, %v905, %v897
    %v909 = vsel %vm907, %v906, %v899
    %v910 = vld [vmem:[%s9] sm:$0xf]
    %v911 = vld [vmem:[%s9 + $0x4] sm:$0xf]
    %v912 = vld [vmem:[%s9 + $0x8] sm:$0xf]
    %v913 = vld [vmem:[%s9 + $0xc] sm:$0xf]
    %v914 = vld [vmem:[%s9 + $0x10] sm:$0xf]
    %v915 = vld [vmem:[%s9 + $0x14] sm:$0xf]
    %v916 = vld [vmem:[%s9 + $0x18] sm:$0xf]
    %v917 = vld [vmem:[%s9 + $0x1c] sm:$0xf]
    %v918 = vpack.c.bf16 %v909, %v908
    %v919 = vld [vmem:[%s10] sm:$0x1]
    %v921 = vperm.slane %v919, 0
    %v931 = vunpack.c.l.b16 %v910
    %v932 = vunpack.c.l.b16 %v911
    %v933 = vunpack.c.l.b16 %v912
    %v934 = vunpack.c.l.b16 %v913
    %v935 = vunpack.c.l.b16 %v914
    %v936 = vunpack.c.l.b16 %v915
    %v937 = vunpack.c.l.b16 %v916
    %v938 = vunpack.c.l.b16 %v917
    %v939 = vpack.c.b16 %v932, %v931
    %v940 = vpack.c.b16 %v934, %v933
    %v941 = vpack.c.b16 %v936, %v935
    %v942 = vpack.c.b16 %v938, %v937
    %v948 = vsel %vm245, %v918, 0
    %950 = vmatpush.bf16.msra.mxu0 0
    %951 = vmatpush.bf16.msra.mxu0 0
    %952 = vmatpush.bf16.msra.mxu0 0
    %953 = vmatpush.bf16.msra.mxu0 0
    %954 = vmatpush.bf16.msra.mxu0 %v942
    %955 = vmatpush.bf16.msra.mxu0 %v941
    %956 = vmatpush.bf16.msra.mxu0 %v940
    %957 = vmatpush.bf16.msra.mxu0 %v939
    %958 = vmatmul.bf16.gmra.mxu0 %v948
    %v959 = vpop.f32.mrf.mxu0
    %v960 = vadd.f32 %v921, %v959
    %v961 = vpop.f32.mrf.mxu0
    %v962 = vadd.f32 %v921, %v961
    %963 = vdwg.mxu0
    %v964 = vadd.f32 %v305, %v960
    %v965 = vadd.f32 %v306, %v962
    %v966 = vld [vmem:[%s11] sm:$0x1]
    %v967 = vld [vmem:[%s12] sm:$0x1]
    %v968 = vsel %vm245, %v964, 0.0
    %969 = vadd.xlane.f32.xlu0 %v968
    %v970 = vpop.xlane.xlu0 %969
    %v971 = vsel %vm245, %v965, 0.0
    %972 = vadd.xlane.f32.xlu0 %v971
    %v973 = vpop.xlane.xlu0 %972
    %v974 = vmul.f32 %v970, %v258
    %v975 = vmul.f32 %v973, %v258
    %v976 = vsub.f32 %v964, %v974
    %v977 = vsub.f32 %v965, %v975
    %v978 = vmul.f32 %v976, %v976
    %v979 = vmul.f32 %v977, %v977
    %v980 = vsel %vm245, %v978, 0.0
    %981 = vadd.xlane.f32.xlu0 %v980
    %v982 = vpop.xlane.xlu0 %981
    %v983 = vsel %vm245, %v979, 0.0
    %984 = vadd.xlane.f32.xlu0 %v983
    %v985 = vpop.xlane.xlu0 %984
    %v986 = vmul.f32 %v982, %v258
    %v987 = vmul.f32 %v985, %v258
    %v988 = vadd.f32 %v986, 1e-12
    %v989 = vadd.f32 %v987, 1e-12
    %v990 = vrsqrt.pop %v988
    %v991 = vmul.f32 %v990, %v988
    %v992 = vmul.f32 %v991, %v990
    %v993 = vmul.f32 0.5, %v992
    %v994 = vsub.f32 1.5, %v993
    %v995 = vmul.f32 %v990, %v994
    %vm996 = vweird.f32 %v988
    %vm997 = vweird.f32 %v990
    %vm998 = vmor %vm996, %vm997
    %v999 = vsel %vm998, %v990, %v995
    %v1000 = vrsqrt.pop %v989
    %v1001 = vmul.f32 %v1000, %v989
    %v1002 = vmul.f32 %v1001, %v1000
    %v1003 = vmul.f32 0.5, %v1002
    %v1004 = vsub.f32 1.5, %v1003
    %v1005 = vmul.f32 %v1000, %v1004
    %vm1006 = vweird.f32 %v989
    %vm1007 = vweird.f32 %v1000
    %vm1008 = vmor %vm1006, %vm1007
    %v1009 = vsel %vm1008, %v1000, %v1005
    %v1010 = vmul.f32 %v976, %v999
    %v1011 = vmul.f32 %v977, %v1009
    %v1013 = vperm.slane %v966, 0
    %v1015 = vmul.f32 %v1010, %v1013
    %v1016 = vmul.f32 %v1011, %v1013
    %v1018 = vperm.slane %v967, 0
    %v1020 = vadd.f32 %v1015, %v1018
    %v1021 = vadd.f32 %v1016, %v1018
    %v1022 = vld [vmem:[#allocation8] sm:$0xf]
    %v1023 = vld [vmem:[#allocation8 + $0x4] sm:$0xf]
    %v1024 = vld [vmem:[#allocation8 + $0x8] sm:$0xf]
    %v1025 = vld [vmem:[#allocation8 + $0xc] sm:$0xf]
    %v1026 = vld [vmem:[#allocation8 + $0x10] sm:$0xf]
    %v1027 = vld [vmem:[#allocation8 + $0x14] sm:$0xf]
    %v1028 = vld [vmem:[#allocation8 + $0x18] sm:$0xf]
    %v1029 = vld [vmem:[#allocation8 + $0x1c] sm:$0xf]
    %v1030 = vpack.c.bf16 %v1021, %v1020
    %v1031 = vld [vmem:[%s14] sm:$0x1]
    %v1033 = vperm.slane %v1031, 0
    %v1043 = vunpack.c.l.b16 %v1022
    %v1044 = vunpack.c.l.b16 %v1023
    %v1045 = vunpack.c.l.b16 %v1024
    %v1046 = vunpack.c.l.b16 %v1025
    %v1047 = vunpack.c.l.b16 %v1026
    %v1048 = vunpack.c.l.b16 %v1027
    %v1049 = vunpack.c.l.b16 %v1028
    %v1050 = vunpack.c.l.b16 %v1029
    %v1051 = vpack.c.b16 %v1044, %v1043
    %v1052 = vpack.c.b16 %v1046, %v1045
    %v1053 = vpack.c.b16 %v1048, %v1047
    %v1054 = vpack.c.b16 %v1050, %v1049
    %v1060 = vsel %vm245, %v1030, 0
    %1062 = vmatpush.bf16.msra.mxu0 0
    %1063 = vmatpush.bf16.msra.mxu0 0
    %1064 = vmatpush.bf16.msra.mxu0 0
    %1065 = vmatpush.bf16.msra.mxu0 0
    %1066 = vmatpush.bf16.msra.mxu0 %v1054
    %1067 = vmatpush.bf16.msra.mxu0 %v1053
    %1068 = vmatpush.bf16.msra.mxu0 %v1052
    %1069 = vmatpush.bf16.msra.mxu0 %v1051
    %1070 = vmatmul.bf16.gmra.mxu0 %v1060
    %v1071 = vpop.f32.mrf.mxu0
    %v1072 = vadd.f32 %v1033, %v1071
    %v1073 = vpop.f32.mrf.mxu0
    %v1074 = vadd.f32 %v1033, %v1073
    %1075 = vdwg.mxu0
    %v1076 = vmul.f32 %v1072, %v1072
    %v1077 = vmul.f32 %v1074, %v1074
    %v1078 = vmul.f32 %v1072, %v1076
    %v1079 = vmul.f32 %v1074, %v1077
    %v1080 = vmul.f32 %v1078, 0.044715
    %v1081 = vmul.f32 %v1079, 0.044715
    %v1082 = vadd.f32 %v1072, %v1080
    %v1083 = vadd.f32 %v1074, %v1081
    %v1084 = vmul.f32 %v1082, 0.7978846
    %v1085 = vmul.f32 %v1083, 0.7978846
    %v1086 = vtanh.pop %v1084
    %v1087 = vtanh.pop %v1085
    %v1088 = vadd.f32 %v1086, 1.0
    %v1089 = vadd.f32 %v1087, 1.0
    %v1090 = vmul.f32 %v1088, 0.5
    %v1091 = vmul.f32 %v1089, 0.5
    %v1092 = vmul.f32 %v1072, %v1090
    %v1093 = vmul.f32 %v1074, %v1091
    %v1094 = vld [vmem:[%s15] sm:$0xf]
    %v1095 = vld [vmem:[%s15 + $0x4] sm:$0xf]
    %v1096 = vld [vmem:[%s15 + $0x8] sm:$0xf]
    %v1097 = vld [vmem:[%s15 + $0xc] sm:$0xf]
    %v1098 = vld [vmem:[%s15 + $0x10] sm:$0xf]
    %v1099 = vld [vmem:[%s15 + $0x14] sm:$0xf]
    %v1100 = vld [vmem:[%s15 + $0x18] sm:$0xf]
    %v1101 = vld [vmem:[%s15 + $0x1c] sm:$0xf]
    %v1102 = vld [vmem:[%s15 + $0x20] sm:$0xf]
    %v1103 = vld [vmem:[%s15 + $0x24] sm:$0xf]
    %v1104 = vld [vmem:[%s15 + $0x28] sm:$0xf]
    %v1105 = vld [vmem:[%s15 + $0x2c] sm:$0xf]
    %v1106 = vld [vmem:[%s15 + $0x30] sm:$0xf]
    %v1107 = vld [vmem:[%s15 + $0x34] sm:$0xf]
    %v1108 = vld [vmem:[%s15 + $0x38] sm:$0xf]
    %v1109 = vld [vmem:[%s15 + $0x3c] sm:$0xf]
    %v1110 = vpack.c.bf16 %v1093, %v1092
    %v1111 = vld [vmem:[%s16] sm:$0x1]
    %v1113 = vperm.slane %v1111, 0
    %v1131 = vunpack.c.l.b16 %v1094
    %v1132 = vunpack.c.l.b16 %v1095
    %v1133 = vunpack.c.l.b16 %v1096
    %v1134 = vunpack.c.l.b16 %v1097
    %v1135 = vunpack.c.l.b16 %v1098
    %v1136 = vunpack.c.l.b16 %v1099
    %v1137 = vunpack.c.l.b16 %v1100
    %v1138 = vunpack.c.l.b16 %v1101
    %v1139 = vunpack.c.l.b16 %v1102
    %v1140 = vunpack.c.l.b16 %v1103
    %v1141 = vunpack.c.l.b16 %v1104
    %v1142 = vunpack.c.l.b16 %v1105
    %v1143 = vunpack.c.l.b16 %v1106
    %v1144 = vunpack.c.l.b16 %v1107
    %v1145 = vunpack.c.l.b16 %v1108
    %v1146 = vunpack.c.l.b16 %v1109
    %v1147 = vpack.c.b16 %v1132, %v1131
    %v1148 = vpack.c.b16 %v1134, %v1133
    %v1149 = vpack.c.b16 %v1136, %v1135
    %v1150 = vpack.c.b16 %v1138, %v1137
    %v1151 = vpack.c.b16 %v1140, %v1139
    %v1152 = vpack.c.b16 %v1142, %v1141
    %v1153 = vpack.c.b16 %v1144, %v1143
    %v1154 = vpack.c.b16 %v1146, %v1145
    %1163 = vmatpush.bf16.msra.mxu0 %v1154
    %1164 = vmatpush.bf16.msra.mxu0 %v1153
    %1165 = vmatpush.bf16.msra.mxu0 %v1152
    %1166 = vmatpush.bf16.msra.mxu0 %v1151
    %1167 = vmatpush.bf16.msra.mxu0 %v1150
    %1168 = vmatpush.bf16.msra.mxu0 %v1149
    %1169 = vmatpush.bf16.msra.mxu0 %v1148
    %1170 = vmatpush.bf16.msra.mxu0 %v1147
    %1171 = vmatmul.bf16.gmra.mxu0 %v1110
    %v1172 = vpop.f32.mrf.mxu0
    %v1173 = vadd.f32 %v1113, %v1172
    %v1174 = vpop.f32.mrf.mxu0
    %v1175 = vadd.f32 %v1113, %v1174
    %1176 = vdwg.mxu0
    %v1177 = vadd.f32 %v1020, %v1173
    %v1178 = vadd.f32 %v1021, %v1175
    %v1179 = vld [vmem:[%s17] sm:$0x1]
    %v1180 = vld [vmem:[%s18] sm:$0x1]
    %v1181 = vsel %vm245, %v1177, 0.0
    %1182 = vadd.xlane.f32.xlu0 %v1181
    %v1183 = vpop.xlane.xlu0 %1182
    %v1184 = vsel %vm245, %v1178, 0.0
    %1185 = vadd.xlane.f32.xlu0 %v1184
    %v1186 = vpop.xlane.xlu0 %1185
    %v1187 = vmul.f32 %v1183, %v258
    %v1188 = vmul.f32 %v1186, %v258
    %v1189 = vsub.f32 %v1177, %v1187
    %v1190 = vsub.f32 %v1178, %v1188
    %v1191 = vmul.f32 %v1189, %v1189
    %v1192 = vmul.f32 %v1190, %v1190
    %v1193 = vsel %vm245, %v1191, 0.0
    %1194 = vadd.xlane.f32.xlu0 %v1193
    %v1195 = vpop.xlane.xlu0 %1194
    %v1196 = vsel %vm245, %v1192, 0.0
    %1197 = vadd.xlane.f32.xlu0 %v1196
    %v1198 = vpop.xlane.xlu0 %1197
    %v1199 = vmul.f32 %v1195, %v258
    %v1200 = vmul.f32 %v1198, %v258
    %v1201 = vadd.f32 %v1199, 1e-12
    %v1202 = vadd.f32 %v1200, 1e-12
    %v1203 = vrsqrt.pop %v1201
    %v1204 = vmul.f32 %v1203, %v1201
    %v1205 = vmul.f32 %v1204, %v1203
    %v1206 = vmul.f32 0.5, %v1205
    %v1207 = vsub.f32 1.5, %v1206
    %v1208 = vmul.f32 %v1203, %v1207
    %vm1209 = vweird.f32 %v1201
    %vm1210 = vweird.f32 %v1203
    %vm1211 = vmor %vm1209, %vm1210
    %v1212 = vsel %vm1211, %v1203, %v1208
    %v1213 = vrsqrt.pop %v1202
    %v1214 = vmul.f32 %v1213, %v1202
    %v1215 = vmul.f32 %v1214, %v1213
    %v1216 = vmul.f32 0.5, %v1215
    %v1217 = vsub.f32 1.5, %v1216
    %v1218 = vmul.f32 %v1213, %v1217
    %vm1219 = vweird.f32 %v1202
    %vm1220 = vweird.f32 %v1213
    %vm1221 = vmor %vm1219, %vm1220
    %v1222 = vsel %vm1221, %v1213, %v1218
    %v1223 = vmul.f32 %v1189, %v1212
    %v1224 = vmul.f32 %v1190, %v1222
    %v1226 = vperm.slane %v1179, 0
    %v1228 = vmul.f32 %v1223, %v1226
    %v1229 = vmul.f32 %v1224, %v1226
    %v1231 = vperm.slane %v1180, 0
    %v1233 = vadd.f32 %v1228, %v1231
    %v1234 = vadd.f32 %v1229, %v1231
    %s1235 = scalar_lea.vmem %s7, 64
    %v1236 = vld [vmem:[%s1235] sm:$0xff]
    %v1237 = vld [vmem:[%s1235 + $0x8] sm:$0xff]
    %v1238 = vld [vmem:[%s1235 + $0x10] sm:$0xff]
    %v1239 = vld [vmem:[%s1235 + $0x18] sm:$0xff]
    %v1240 = vld [vmem:[%s1235 + $0x20] sm:$0xff]
    %v1241 = vld [vmem:[%s1235 + $0x28] sm:$0xff]
    %v1242 = vld [vmem:[%s1235 + $0x30] sm:$0xff]
    %v1243 = vld [vmem:[%s1235 + $0x38] sm:$0xff]
    %v1244 = vpack.c.bf16 %v1234, %v1233
    %s1245 = scalar_lea.vmem %s8, 2
    %v1246 = vld [vmem:[%s1245] sm:$0x3]
    %v1248 = vperm.slane %v1246, 0
    %v1249 = vperm.slane %v1246, 1
    %v1260 = vunpack.c.l.b16 %v1236
    %v1261 = vunpack.c.h.b16 %v1236
    %v1262 = vunpack.c.l.b16 %v1237
    %v1263 = vunpack.c.h.b16 %v1237
    %v1264 = vunpack.c.l.b16 %v1238
    %v1265 = vunpack.c.h.b16 %v1238
    %v1266 = vunpack.c.l.b16 %v1239
    %v1267 = vunpack.c.h.b16 %v1239
    %v1268 = vunpack.c.l.b16 %v1240
    %v1269 = vunpack.c.h.b16 %v1240
    %v1270 = vunpack.c.l.b16 %v1241
    %v1271 = vunpack.c.h.b16 %v1241
    %v1272 = vunpack.c.l.b16 %v1242
    %v1273 = vunpack.c.h.b16 %v1242
    %v1274 = vunpack.c.l.b16 %v1243
    %v1275 = vunpack.c.h.b16 %v1243
    %v1276 = vpack.c.b16 %v1262, %v1260
    %v1277 = vpack.c.b16 %v1263, %v1261
    %v1278 = vpack.c.b16 %v1266, %v1264
    %v1279 = vpack.c.b16 %v1267, %v1265
    %v1280 = vpack.c.b16 %v1270, %v1268
    %v1281 = vpack.c.b16 %v1271, %v1269
    %v1282 = vpack.c.b16 %v1274, %v1272
    %v1283 = vpack.c.b16 %v1275, %v1273
    %v1293 = vsel %vm245, %v1244, 0
    %1295 = vmatpush.bf16.msra.mxu0 0
    %1296 = vmatpush.bf16.msra.mxu0 0
    %1297 = vmatpush.bf16.msra.mxu0 0
    %1298 = vmatpush.bf16.msra.mxu0 0
    %1299 = vmatpush.bf16.msra.mxu0 %v1282
    %1300 = vmatpush.bf16.msra.mxu0 %v1280
    %1301 = vmatpush.bf16.msra.mxu0 %v1278
    %1302 = vmatpush.bf16.msra.mxu0 %v1276
    %1303 = vmatmul.bf16.gmra.mxu0 %v1293
    %v1304 = vpop.f32.mrf.mxu0
    %v1305 = vadd.f32 %v1248, %v1304
    %v1306 = vpop.f32.mrf.mxu0
    %v1307 = vadd.f32 %v1248, %v1306
    %1308 = vdwg.mxu0
    %1309 = vmatpush.bf16.msra.mxu0 0
    %1310 = vmatpush.bf16.msra.mxu0 0
    %1311 = vmatpush.bf16.msra.mxu0 0
    %1312 = vmatpush.bf16.msra.mxu0 0
    %1313 = vmatpush.bf16.msra.mxu0 %v1283
    %1314 = vmatpush.bf16.msra.mxu0 %v1281
    %1315 = vmatpush.bf16.msra.mxu0 %v1279
    %1316 = vmatpush.bf16.msra.mxu0 %v1277
    %1317 = vmatmul.bf16.gmra.mxu0 %v1293
    %v1318 = vpop.f32.mrf.mxu0
    %v1319 = vadd.f32 %v1249, %v1318
    %v1320 = vpop.f32.mrf.mxu0
    %v1321 = vadd.f32 %v1249, %v1320
    %1322 = vdwg.mxu0
    %v1323 = vpack.c.bf16 %v1305, %v1305
    %v1324 = vpack.c.bf16 %v1307, %v1307
    %v1325 = vpack.c.bf16 %v1319, %v1319
    %v1326 = vpack.c.bf16 %v1321, %v1321
    %v1328 = vunpack.c.l.b16 %v1323
    %v1329 = vpack.c.b16 %v1328, %v1328
    %1330 = vrot.lane.b32.xlu0 %v1329, 64
    %v1331 = vpop.permute.xlu0 %1330
    %v1333 = vsel %vm412, %v1323, 0
    %v1336 = vsel %vm412, %v1331, 0
    %1338 = vmatpush.bf16.xpose.msra.mxu0 0
    %1339 = vmatpush.bf16.xpose.msra.mxu0 0
    %1340 = vmatpush.bf16.xpose.msra.mxu0 0
    %1341 = vmatpush.bf16.xpose.msra.mxu0 0
    %1342 = vmatpush.bf16.xpose.msra.mxu0 0
    %1343 = vmatpush.bf16.xpose.msra.mxu0 0
    %1344 = vmatpush.bf16.xpose.msra.mxu0 0
    %1345 = vmatpush.bf16.xpose.msra.mxu0 %v1336
    %1346 = vmatmul.bf16.gmra.mxu0 %v1333
    %v1347 = vpop.f32.mrf.mxu0
    %v1348 = vadd.f32 0.0, %v1347
    %v1349 = vpop.f32.mrf.mxu0
    %1350 = vdwg.mxu0
    %v1352 = vunpack.c.l.b16 %v1324
    %v1353 = vpack.c.b16 %v1352, %v1352
    %1354 = vrot.lane.b32.xlu0 %v1353, 64
    %v1355 = vpop.permute.xlu0 %1354
    %v1357 = vsel %vm412, %v1324, 0
    %v1360 = vsel %vm412, %v1355, 0
    %1362 = vmatpush.bf16.xpose.msra.mxu0 0
    %1363 = vmatpush.bf16.xpose.msra.mxu0 0
    %1364 = vmatpush.bf16.xpose.msra.mxu0 0
    %1365 = vmatpush.bf16.xpose.msra.mxu0 0
    %1366 = vmatpush.bf16.xpose.msra.mxu0 0
    %1367 = vmatpush.bf16.xpose.msra.mxu0 0
    %1368 = vmatpush.bf16.xpose.msra.mxu0 0
    %1369 = vmatpush.bf16.xpose.msra.mxu0 %v1360
    %1370 = vmatmul.bf16.gmra.mxu0 %v1357
    %v1371 = vpop.f32.mrf.mxu0
    %v1372 = vadd.f32 0.0, %v1371
    %v1373 = vpop.f32.mrf.mxu0
    %1374 = vdwg.mxu0
    %v1375 = vmul.f32 %v1348, 0.25
    %v1376 = vmul.f32 %v1372, 0.25
    %v1377 = vadd.f32 %v1375, %v313
    %v1378 = vadd.f32 %v1376, %v314
    %v1379 = vsel %vm460, %v1377, -inf
    %1380 = vmax.xlane.f32.xlu0 %v1379
    %v1381 = vpop.xlane.xlu0 %1380
    %v1382 = vsel %vm460, %v1378, -inf
    %1383 = vmax.xlane.f32.xlu0 %v1382
    %v1384 = vpop.xlane.xlu0 %1383
    %v1385 = vsub.f32 %v1377, %v1381
    %v1386 = vsub.f32 %v1378, %v1384
    %v1387 = vmul.f32 %v1385, 1.442695
    %v1388 = vpow.pop %v1387
    %v1389 = vmul.f32 %v1386, 1.442695
    %v1390 = vpow.pop %v1389
    %v1391 = vsel %vm460, %v1388, 0.0
    %1392 = vadd.xlane.f32.xlu0 %v1391
    %v1393 = vpop.xlane.xlu0 %1392
    %v1394 = vsel %vm460, %v1390, 0.0
    %1395 = vadd.xlane.f32.xlu0 %v1394
    %v1396 = vpop.xlane.xlu0 %1395
    %v1397 = vrcp.pop %v1393
    %v1398 = vrcp.pop %v1396
    %v1399 = vmul.f32 %v1388, %v1397
    %v1400 = vmul.f32 %v1390, %v1398
    %v1401 = vpack.c.bf16 %v1399, %v1399
    %v1402 = vpack.c.bf16 %v1400, %v1400
    %v1404 = vsel %vm460, %v1401, 0
    %v1407 = vsel %vm488, %v1325, 0
    %1409 = vmatpush.bf16.msra.mxu0 0
    %1410 = vmatpush.bf16.msra.mxu0 0
    %1411 = vmatpush.bf16.msra.mxu0 0
    %1412 = vmatpush.bf16.msra.mxu0 0
    %1413 = vmatpush.bf16.msra.mxu0 0
    %1414 = vmatpush.bf16.msra.mxu0 0
    %1415 = vmatpush.bf16.msra.mxu0 0
    %1416 = vmatpush.bf16.msra.mxu0 %v1407
    %1417 = vmatmul.bf16.gmra.mxu0 %v1404
    %v1418 = vpop.f32.mrf.mxu0
    %v1419 = vadd.f32 0.0, %v1418
    %v1420 = vpop.f32.mrf.mxu0
    %1421 = vdwg.mxu0
    %v1423 = vsel %vm460, %v1402, 0
    %v1426 = vsel %vm488, %v1326, 0
    %1428 = vmatpush.bf16.msra.mxu0 0
    %1429 = vmatpush.bf16.msra.mxu0 0
    %1430 = vmatpush.bf16.msra.mxu0 0
    %1431 = vmatpush.bf16.msra.mxu0 0
    %1432 = vmatpush.bf16.msra.mxu0 0
    %1433 = vmatpush.bf16.msra.mxu0 0
    %1434 = vmatpush.bf16.msra.mxu0 0
    %1435 = vmatpush.bf16.msra.mxu0 %v1426
    %1436 = vmatmul.bf16.gmra.mxu0 %v1423
    %v1437 = vpop.f32.mrf.mxu0
    %v1438 = vadd.f32 0.0, %v1437
    %v1439 = vpop.f32.mrf.mxu0
    %1440 = vdwg.mxu0
    %1441 = vrot.lane.b32.xlu0 %v1329, 112
    %v1442 = vpop.permute.xlu0 %1441
    %1443 = vrot.lane.b32.xlu0 %v1329, 48
    %v1444 = vpop.permute.xlu0 %1443
    %v1446 = vsel %vm412, %v1442, 0
    %v1449 = vsel %vm412, %v1444, 0
    %1451 = vmatpush.bf16.xpose.msra.mxu0 0
    %1452 = vmatpush.bf16.xpose.msra.mxu0 0
    %1453 = vmatpush.bf16.xpose.msra.mxu0 0
    %1454 = vmatpush.bf16.xpose.msra.mxu0 0
    %1455 = vmatpush.bf16.xpose.msra.mxu0 0
    %1456 = vmatpush.bf16.xpose.msra.mxu0 0
    %1457 = vmatpush.bf16.xpose.msra.mxu0 0
    %1458 = vmatpush.bf16.xpose.msra.mxu0 %v1449
    %1459 = vmatmul.bf16.gmra.mxu0 %v1446
    %v1460 = vpop.f32.mrf.mxu0
    %v1461 = vadd.f32 0.0, %v1460
    %v1462 = vpop.f32.mrf.mxu0
    %1463 = vdwg.mxu0
    %1464 = vrot.lane.b32.xlu0 %v1353, 112
    %v1465 = vpop.permute.xlu0 %1464
    %1466 = vrot.lane.b32.xlu0 %v1353, 48
    %v1467 = vpop.permute.xlu0 %1466
    %v1469 = vsel %vm412, %v1465, 0
    %v1472 = vsel %vm412, %v1467, 0
    %1474 = vmatpush.bf16.xpose.msra.mxu0 0
    %1475 = vmatpush.bf16.xpose.msra.mxu0 0
    %1476 = vmatpush.bf16.xpose.msra.mxu0 0
    %1477 = vmatpush.bf16.xpose.msra.mxu0 0
    %1478 = vmatpush.bf16.xpose.msra.mxu0 0
    %1479 = vmatpush.bf16.xpose.msra.mxu0 0
    %1480 = vmatpush.bf16.xpose.msra.mxu0 0
    %1481 = vmatpush.bf16.xpose.msra.mxu0 %v1472
    %1482 = vmatmul.bf16.gmra.mxu0 %v1469
    %v1483 = vpop.f32.mrf.mxu0
    %v1484 = vadd.f32 0.0, %v1483
    %v1485 = vpop.f32.mrf.mxu0
    %1486 = vdwg.mxu0
    %v1487 = vmul.f32 %v1461, 0.25
    %v1488 = vmul.f32 %v1484, 0.25
    %v1489 = vadd.f32 %v1487, %v313
    %v1490 = vadd.f32 %v1488, %v314
    %v1491 = vsel %vm460, %v1489, -inf
    %1492 = vmax.xlane.f32.xlu0 %v1491
    %v1493 = vpop.xlane.xlu0 %1492
    %v1494 = vsel %vm460, %v1490, -inf
    %1495 = vmax.xlane.f32.xlu0 %v1494
    %v1496 = vpop.xlane.xlu0 %1495
    %v1497 = vsub.f32 %v1489, %v1493
    %v1498 = vsub.f32 %v1490, %v1496
    %v1499 = vmul.f32 %v1497, 1.442695
    %v1500 = vpow.pop %v1499
    %v1501 = vmul.f32 %v1498, 1.442695
    %v1502 = vpow.pop %v1501
    %v1503 = vsel %vm460, %v1500, 0.0
    %1504 = vadd.xlane.f32.xlu0 %v1503
    %v1505 = vpop.xlane.xlu0 %1504
    %v1506 = vsel %vm460, %v1502, 0.0
    %1507 = vadd.xlane.f32.xlu0 %v1506
    %v1508 = vpop.xlane.xlu0 %1507
    %v1509 = vrcp.pop %v1505
    %v1510 = vrcp.pop %v1508
    %v1511 = vmul.f32 %v1500, %v1509
    %v1512 = vmul.f32 %v1502, %v1510
    %v1513 = vpack.c.bf16 %v1511, %v1511
    %v1514 = vpack.c.bf16 %v1512, %v1512
    %v1516 = vunpack.c.l.b16 %v1325
    %v1517 = vpack.c.b16 %v1516, %v1516
    %1518 = vrot.lane.b32.xlu0 %v1517, 112
    %v1519 = vpop.permute.xlu0 %1518
    %v1521 = vsel %vm460, %v1513, 0
    %v1524 = vsel %vm488, %v1519, 0
    %1526 = vmatpush.bf16.msra.mxu0 0
    %1527 = vmatpush.bf16.msra.mxu0 0
    %1528 = vmatpush.bf16.msra.mxu0 0
    %1529 = vmatpush.bf16.msra.mxu0 0
    %1530 = vmatpush.bf16.msra.mxu0 0
    %1531 = vmatpush.bf16.msra.mxu0 0
    %1532 = vmatpush.bf16.msra.mxu0 0
    %1533 = vmatpush.bf16.msra.mxu0 %v1524
    %1534 = vmatmul.bf16.gmra.mxu0 %v1521
    %v1535 = vpop.f32.mrf.mxu0
    %v1536 = vadd.f32 0.0, %v1535
    %v1537 = vpop.f32.mrf.mxu0
    %1538 = vdwg.mxu0
    %v1540 = vunpack.c.l.b16 %v1326
    %v1541 = vpack.c.b16 %v1540, %v1540
    %1542 = vrot.lane.b32.xlu0 %v1541, 112
    %v1543 = vpop.permute.xlu0 %1542
    %v1545 = vsel %vm460, %v1514, 0
    %v1548 = vsel %vm488, %v1543, 0
    %1550 = vmatpush.bf16.msra.mxu0 0
    %1551 = vmatpush.bf16.msra.mxu0 0
    %1552 = vmatpush.bf16.msra.mxu0 0
    %1553 = vmatpush.bf16.msra.mxu0 0
    %1554 = vmatpush.bf16.msra.mxu0 0
    %1555 = vmatpush.bf16.msra.mxu0 0
    %1556 = vmatpush.bf16.msra.mxu0 0
    %1557 = vmatpush.bf16.msra.mxu0 %v1548
    %1558 = vmatmul.bf16.gmra.mxu0 %v1545
    %v1559 = vpop.f32.mrf.mxu0
    %v1560 = vadd.f32 0.0, %v1559
    %v1561 = vpop.f32.mrf.mxu0
    %1562 = vdwg.mxu0
    %1563 = vrot.lane.b32.xlu0 %v1329, 96
    %v1564 = vpop.permute.xlu0 %1563
    %1565 = vrot.lane.b32.xlu0 %v1329, 32
    %v1566 = vpop.permute.xlu0 %1565
    %v1568 = vsel %vm412, %v1564, 0
    %v1571 = vsel %vm412, %v1566, 0
    %1573 = vmatpush.bf16.xpose.msra.mxu0 0
    %1574 = vmatpush.bf16.xpose.msra.mxu0 0
    %1575 = vmatpush.bf16.xpose.msra.mxu0 0
    %1576 = vmatpush.bf16.xpose.msra.mxu0 0
    %1577 = vmatpush.bf16.xpose.msra.mxu0 0
    %1578 = vmatpush.bf16.xpose.msra.mxu0 0
    %1579 = vmatpush.bf16.xpose.msra.mxu0 0
    %1580 = vmatpush.bf16.xpose.msra.mxu0 %v1571
    %1581 = vmatmul.bf16.gmra.mxu0 %v1568
    %v1582 = vpop.f32.mrf.mxu0
    %v1583 = vadd.f32 0.0, %v1582
    %v1584 = vpop.f32.mrf.mxu0
    %1585 = vdwg.mxu0
    %1586 = vrot.lane.b32.xlu0 %v1353, 96
    %v1587 = vpop.permute.xlu0 %1586
    %1588 = vrot.lane.b32.xlu0 %v1353, 32
    %v1589 = vpop.permute.xlu0 %1588
    %v1591 = vsel %vm412, %v1587, 0
    %v1594 = vsel %vm412, %v1589, 0
    %1596 = vmatpush.bf16.xpose.msra.mxu0 0
    %1597 = vmatpush.bf16.xpose.msra.mxu0 0
    %1598 = vmatpush.bf16.xpose.msra.mxu0 0
    %1599 = vmatpush.bf16.xpose.msra.mxu0 0
    %1600 = vmatpush.bf16.xpose.msra.mxu0 0
    %1601 = vmatpush.bf16.xpose.msra.mxu0 0
    %1602 = vmatpush.bf16.xpose.msra.mxu0 0
    %1603 = vmatpush.bf16.xpose.msra.mxu0 %v1594
    %1604 = vmatmul.bf16.gmra.mxu0 %v1591
    %v1605 = vpop.f32.mrf.mxu0
    %v1606 = vadd.f32 0.0, %v1605
    %v1607 = vpop.f32.mrf.mxu0
    %1608 = vdwg.mxu0
    %v1609 = vmul.f32 %v1583, 0.25
    %v1610 = vmul.f32 %v1606, 0.25
    %v1611 = vadd.f32 %v1609, %v313
    %v1612 = vadd.f32 %v1610, %v314
    %v1613 = vsel %vm460, %v1611, -inf
    %1614 = vmax.xlane.f32.xlu0 %v1613
    %v1615 = vpop.xlane.xlu0 %1614
    %v1616 = vsel %vm460, %v1612, -inf
    %1617 = vmax.xlane.f32.xlu0 %v1616
    %v1618 = vpop.xlane.xlu0 %1617
    %v1619 = vsub.f32 %v1611, %v1615
    %v1620 = vsub.f32 %v1612, %v1618
    %v1621 = vmul.f32 %v1619, 1.442695
    %v1622 = vpow.pop %v1621
    %v1623 = vmul.f32 %v1620, 1.442695
    %v1624 = vpow.pop %v1623
    %v1625 = vsel %vm460, %v1622, 0.0
    %1626 = vadd.xlane.f32.xlu0 %v1625
    %v1627 = vpop.xlane.xlu0 %1626
    %v1628 = vsel %vm460, %v1624, 0.0
    %1629 = vadd.xlane.f32.xlu0 %v1628
    %v1630 = vpop.xlane.xlu0 %1629
    %v1631 = vrcp.pop %v1627
    %v1632 = vrcp.pop %v1630
    %v1633 = vmul.f32 %v1622, %v1631
    %v1634 = vmul.f32 %v1624, %v1632
    %v1635 = vpack.c.bf16 %v1633, %v1633
    %v1636 = vpack.c.bf16 %v1634, %v1634
    %1637 = vrot.lane.b32.xlu0 %v1517, 96
    %v1638 = vpop.permute.xlu0 %1637
    %v1640 = vsel %vm460, %v1635, 0
    %v1643 = vsel %vm488, %v1638, 0
    %1645 = vmatpush.bf16.msra.mxu0 0
    %1646 = vmatpush.bf16.msra.mxu0 0
    %1647 = vmatpush.bf16.msra.mxu0 0
    %1648 = vmatpush.bf16.msra.mxu0 0
    %1649 = vmatpush.bf16.msra.mxu0 0
    %1650 = vmatpush.bf16.msra.mxu0 0
    %1651 = vmatpush.bf16.msra.mxu0 0
    %1652 = vmatpush.bf16.msra.mxu0 %v1643
    %1653 = vmatmul.bf16.gmra.mxu0 %v1640
    %v1654 = vpop.f32.mrf.mxu0
    %v1655 = vadd.f32 0.0, %v1654
    %v1656 = vpop.f32.mrf.mxu0
    %1657 = vdwg.mxu0
    %1658 = vrot.lane.b32.xlu0 %v1541, 96
    %v1659 = vpop.permute.xlu0 %1658
    %v1661 = vsel %vm460, %v1636, 0
    %v1664 = vsel %vm488, %v1659, 0
    %1666 = vmatpush.bf16.msra.mxu0 0
    %1667 = vmatpush.bf16.msra.mxu0 0
    %1668 = vmatpush.bf16.msra.mxu0 0
    %1669 = vmatpush.bf16.msra.mxu0 0
    %1670 = vmatpush.bf16.msra.mxu0 0
    %1671 = vmatpush.bf16.msra.mxu0 0
    %1672 = vmatpush.bf16.msra.mxu0 0
    %1673 = vmatpush.bf16.msra.mxu0 %v1664
    %1674 = vmatmul.bf16.gmra.mxu0 %v1661
    %v1675 = vpop.f32.mrf.mxu0
    %v1676 = vadd.f32 0.0, %v1675
    %v1677 = vpop.f32.mrf.mxu0
    %1678 = vdwg.mxu0
    %1679 = vrot.lane.b32.xlu0 %v1329, 80
    %v1680 = vpop.permute.xlu0 %1679
    %1681 = vrot.lane.b32.xlu0 %v1329, 16
    %v1682 = vpop.permute.xlu0 %1681
    %v1684 = vsel %vm412, %v1680, 0
    %v1687 = vsel %vm412, %v1682, 0
    %1689 = vmatpush.bf16.xpose.msra.mxu0 0
    %1690 = vmatpush.bf16.xpose.msra.mxu0 0
    %1691 = vmatpush.bf16.xpose.msra.mxu0 0
    %1692 = vmatpush.bf16.xpose.msra.mxu0 0
    %1693 = vmatpush.bf16.xpose.msra.mxu0 0
    %1694 = vmatpush.bf16.xpose.msra.mxu0 0
    %1695 = vmatpush.bf16.xpose.msra.mxu0 0
    %1696 = vmatpush.bf16.xpose.msra.mxu0 %v1687
    %1697 = vmatmul.bf16.gmra.mxu0 %v1684
    %v1698 = vpop.f32.mrf.mxu0
    %v1699 = vadd.f32 0.0, %v1698
    %v1700 = vpop.f32.mrf.mxu0
    %1701 = vdwg.mxu0
    %1702 = vrot.lane.b32.xlu0 %v1353, 80
    %v1703 = vpop.permute.xlu0 %1702
    %1704 = vrot.lane.b32.xlu0 %v1353, 16
    %v1705 = vpop.permute.xlu0 %1704
    %v1707 = vsel %vm412, %v1703, 0
    %v1710 = vsel %vm412, %v1705, 0
    %1712 = vmatpush.bf16.xpose.msra.mxu0 0
    %1713 = vmatpush.bf16.xpose.msra.mxu0 0
    %1714 = vmatpush.bf16.xpose.msra.mxu0 0
    %1715 = vmatpush.bf16.xpose.msra.mxu0 0
    %1716 = vmatpush.bf16.xpose.msra.mxu0 0
    %1717 = vmatpush.bf16.xpose.msra.mxu0 0
    %1718 = vmatpush.bf16.xpose.msra.mxu0 0
    %1719 = vmatpush.bf16.xpose.msra.mxu0 %v1710
    %1720 = vmatmul.bf16.gmra.mxu0 %v1707
    %v1721 = vpop.f32.mrf.mxu0
    %v1722 = vadd.f32 0.0, %v1721
    %v1723 = vpop.f32.mrf.mxu0
    %1724 = vdwg.mxu0
    %v1725 = vmul.f32 %v1699, 0.25
    %v1726 = vmul.f32 %v1722, 0.25
    %v1727 = vadd.f32 %v1725, %v313
    %v1728 = vadd.f32 %v1726, %v314
    %v1729 = vsel %vm460, %v1727, -inf
    %1730 = vmax.xlane.f32.xlu0 %v1729
    %v1731 = vpop.xlane.xlu0 %1730
    %v1732 = vsel %vm460, %v1728, -inf
    %1733 = vmax.xlane.f32.xlu0 %v1732
    %v1734 = vpop.xlane.xlu0 %1733
    %v1735 = vsub.f32 %v1727, %v1731
    %v1736 = vsub.f32 %v1728, %v1734
    %v1737 = vmul.f32 %v1735, 1.442695
    %v1738 = vpow.pop %v1737
    %v1739 = vmul.f32 %v1736, 1.442695
    %v1740 = vpow.pop %v1739
    %v1741 = vsel %vm460, %v1738, 0.0
    %1742 = vadd.xlane.f32.xlu0 %v1741
    %v1743 = vpop.xlane.xlu0 %1742
    %v1744 = vsel %vm460, %v1740, 0.0
    %1745 = vadd.xlane.f32.xlu0 %v1744
    %v1746 = vpop.xlane.xlu0 %1745
    %v1747 = vrcp.pop %v1743
    %v1748 = vrcp.pop %v1746
    %v1749 = vmul.f32 %v1738, %v1747
    %v1750 = vmul.f32 %v1740, %v1748
    %v1751 = vpack.c.bf16 %v1749, %v1749
    %v1752 = vpack.c.bf16 %v1750, %v1750
    %1753 = vrot.lane.b32.xlu0 %v1517, 80
    %v1754 = vpop.permute.xlu0 %1753
    %v1756 = vsel %vm460, %v1751, 0
    %v1759 = vsel %vm488, %v1754, 0
    %1761 = vmatpush.bf16.msra.mxu0 0
    %1762 = vmatpush.bf16.msra.mxu0 0
    %1763 = vmatpush.bf16.msra.mxu0 0
    %1764 = vmatpush.bf16.msra.mxu0 0
    %1765 = vmatpush.bf16.msra.mxu0 0
    %1766 = vmatpush.bf16.msra.mxu0 0
    %1767 = vmatpush.bf16.msra.mxu0 0
    %1768 = vmatpush.bf16.msra.mxu0 %v1759
    %1769 = vmatmul.bf16.gmra.mxu0 %v1756
    %v1770 = vpop.f32.mrf.mxu0
    %v1771 = vadd.f32 0.0, %v1770
    %v1772 = vpop.f32.mrf.mxu0
    %1773 = vdwg.mxu0
    %1774 = vrot.lane.b32.xlu0 %v1541, 80
    %v1775 = vpop.permute.xlu0 %1774
    %v1777 = vsel %vm460, %v1752, 0
    %v1780 = vsel %vm488, %v1775, 0
    %1782 = vmatpush.bf16.msra.mxu0 0
    %1783 = vmatpush.bf16.msra.mxu0 0
    %1784 = vmatpush.bf16.msra.mxu0 0
    %1785 = vmatpush.bf16.msra.mxu0 0
    %1786 = vmatpush.bf16.msra.mxu0 0
    %1787 = vmatpush.bf16.msra.mxu0 0
    %1788 = vmatpush.bf16.msra.mxu0 0
    %1789 = vmatpush.bf16.msra.mxu0 %v1780
    %1790 = vmatmul.bf16.gmra.mxu0 %v1777
    %v1791 = vpop.f32.mrf.mxu0
    %v1792 = vadd.f32 0.0, %v1791
    %v1793 = vpop.f32.mrf.mxu0
    %1794 = vdwg.mxu0
    %1797 = vrot.lane.b32.xlu0 %v1536, 16
    %v1798 = vpop.permute.xlu0 %1797
    %1799 = vrot.lane.b32.xlu0 %v1560, 16
    %v1800 = vpop.permute.xlu0 %1799
    %1805 = vrot.lane.b32.xlu0 %v1655, 32
    %v1806 = vpop.permute.xlu0 %1805
    %1807 = vrot.lane.b32.xlu0 %v1676, 32
    %v1808 = vpop.permute.xlu0 %1807
    %1813 = vrot.lane.b32.xlu0 %v1771, 48
    %v1814 = vpop.permute.xlu0 %1813
    %1815 = vrot.lane.b32.xlu0 %v1792, 48
    %v1816 = vpop.permute.xlu0 %1815
    %v1819 = vsel %vm412, %v1419, %v1798
    %v1820 = vsel %vm412, %v1438, %v1800
    %v1821 = vsel %vm904, %v1819, %v1806
    %v1822 = vsel %vm904, %v1820, %v1808
    %v1823 = vsel %vm907, %v1821, %v1814
    %v1824 = vsel %vm907, %v1822, %v1816
    %s1825 = scalar_lea.vmem %s9, 32
    %v1826 = vld [vmem:[%s1825] sm:$0xf]
    %v1827 = vld [vmem:[%s1825 + $0x4] sm:$0xf]
    %v1828 = vld [vmem:[%s1825 + $0x8] sm:$0xf]
    %v1829 = vld [vmem:[%s1825 + $0xc] sm:$0xf]
    %v1830 = vld [vmem:[%s1825 + $0x10] sm:$0xf]
    %v1831 = vld [vmem:[%s1825 + $0x14] sm:$0xf]
    %v1832 = vld [vmem:[%s1825 + $0x18] sm:$0xf]
    %v1833 = vld [vmem:[%s1825 + $0x1c] sm:$0xf]
    %v1834 = vpack.c.bf16 %v1824, %v1823
    %s1835 = scalar_lea.vmem %s10, 1
    %v1836 = vld [vmem:[%s1835] sm:$0x1]
    %v1838 = vperm.slane %v1836, 0
    %v1848 = vunpack.c.l.b16 %v1826
    %v1849 = vunpack.c.l.b16 %v1827
    %v1850 = vunpack.c.l.b16 %v1828
    %v1851 = vunpack.c.l.b16 %v1829
    %v1852 = vunpack.c.l.b16 %v1830
    %v1853 = vunpack.c.l.b16 %v1831
    %v1854 = vunpack.c.l.b16 %v1832
    %v1855 = vunpack.c.l.b16 %v1833
    %v1856 = vpack.c.b16 %v1849, %v1848
    %v1857 = vpack.c.b16 %v1851, %v1850
    %v1858 = vpack.c.b16 %v1853, %v1852
    %v1859 = vpack.c.b16 %v1855, %v1854
    %v1865 = vsel %vm245, %v1834, 0
    %1867 = vmatpush.bf16.msra.mxu0 0
    %1868 = vmatpush.bf16.msra.mxu0 0
    %1869 = vmatpush.bf16.msra.mxu0 0
    %1870 = vmatpush.bf16.msra.mxu0 0
    %1871 = vmatpush.bf16.msra.mxu0 %v1859
    %1872 = vmatpush.bf16.msra.mxu0 %v1858
    %1873 = vmatpush.bf16.msra.mxu0 %v1857
    %1874 = vmatpush.bf16.msra.mxu0 %v1856
    %1875 = vmatmul.bf16.gmra.mxu0 %v1865
    %v1876 = vpop.f32.mrf.mxu0
    %v1877 = vadd.f32 %v1838, %v1876
    %v1878 = vpop.f32.mrf.mxu0
    %v1879 = vadd.f32 %v1838, %v1878
    %1880 = vdwg.mxu0
    %v1881 = vadd.f32 %v1233, %v1877
    %v1882 = vadd.f32 %v1234, %v1879
    %s1883 = scalar_lea.vmem %s11, 1
    %v1884 = vld [vmem:[%s1883] sm:$0x1]
    %s1885 = scalar_lea.vmem %s12, 1
    %v1886 = vld [vmem:[%s1885] sm:$0x1]
    %v1887 = vsel %vm245, %v1881, 0.0
    %1888 = vadd.xlane.f32.xlu0 %v1887
    %v1889 = vpop.xlane.xlu0 %1888
    %v1890 = vsel %vm245, %v1882, 0.0
    %1891 = vadd.xlane.f32.xlu0 %v1890
    %v1892 = vpop.xlane.xlu0 %1891
    %v1893 = vmul.f32 %v1889, %v258
    %v1894 = vmul.f32 %v1892, %v258
    %v1895 = vsub.f32 %v1881, %v1893
    %v1896 = vsub.f32 %v1882, %v1894
    %v1897 = vmul.f32 %v1895, %v1895
    %v1898 = vmul.f32 %v1896, %v1896
    %v1899 = vsel %vm245, %v1897, 0.0
    %1900 = vadd.xlane.f32.xlu0 %v1899
    %v1901 = vpop.xlane.xlu0 %1900
    %v1902 = vsel %vm245, %v1898, 0.0
    %1903 = vadd.xlane.f32.xlu0 %v1902
    %v1904 = vpop.xlane.xlu0 %1903
    %v1905 = vmul.f32 %v1901, %v258
    %v1906 = vmul.f32 %v1904, %v258
    %v1907 = vadd.f32 %v1905, 1e-12
    %v1908 = vadd.f32 %v1906, 1e-12
    %v1909 = vrsqrt.pop %v1907
    %v1910 = vmul.f32 %v1909, %v1907
    %v1911 = vmul.f32 %v1910, %v1909
    %v1912 = vmul.f32 0.5, %v1911
    %v1913 = vsub.f32 1.5, %v1912
    %v1914 = vmul.f32 %v1909, %v1913
    %vm1915 = vweird.f32 %v1907
    %vm1916 = vweird.f32 %v1909
    %vm1917 = vmor %vm1915, %vm1916
    %v1918 = vsel %vm1917, %v1909, %v1914
    %v1919 = vrsqrt.pop %v1908
    %v1920 = vmul.f32 %v1919, %v1908
    %v1921 = vmul.f32 %v1920, %v1919
    %v1922 = vmul.f32 0.5, %v1921
    %v1923 = vsub.f32 1.5, %v1922
    %v1924 = vmul.f32 %v1919, %v1923
    %vm1925 = vweird.f32 %v1908
    %vm1926 = vweird.f32 %v1919
    %vm1927 = vmor %vm1925, %vm1926
    %v1928 = vsel %vm1927, %v1919, %v1924
    %v1929 = vmul.f32 %v1895, %v1918
    %v1930 = vmul.f32 %v1896, %v1928
    %v1932 = vperm.slane %v1884, 0
    %v1934 = vmul.f32 %v1929, %v1932
    %v1935 = vmul.f32 %v1930, %v1932
    %v1937 = vperm.slane %v1886, 0
    %v1939 = vadd.f32 %v1934, %v1937
    %v1940 = vadd.f32 %v1935, %v1937
    %s1941 = scalar_lea.vmem [#allocation8], 32
    %v1942 = vld [vmem:[%s1941] sm:$0xf]
    %v1943 = vld [vmem:[%s1941 + $0x4] sm:$0xf]
    %v1944 = vld [vmem:[%s1941 + $0x8] sm:$0xf]
    %v1945 = vld [vmem:[%s1941 + $0xc] sm:$0xf]
    %v1946 = vld [vmem:[%s1941 + $0x10] sm:$0xf]
    %v1947 = vld [vmem:[%s1941 + $0x14] sm:$0xf]
    %v1948 = vld [vmem:[%s1941 + $0x18] sm:$0xf]
    %v1949 = vld [vmem:[%s1941 + $0x1c] sm:$0xf]
    %v1950 = vpack.c.bf16 %v1940, %v1939
    %s1951 = scalar_lea.vmem %s14, 1
    %v1952 = vld [vmem:[%s1951] sm:$0x1]
    %v1954 = vperm.slane %v1952, 0
    %v1964 = vunpack.c.l.b16 %v1942
    %v1965 = vunpack.c.l.b16 %v1943
    %v1966 = vunpack.c.l.b16 %v1944
    %v1967 = vunpack.c.l.b16 %v1945
    %v1968 = vunpack.c.l.b16 %v1946
    %v1969 = vunpack.c.l.b16 %v1947
    %v1970 = vunpack.c.l.b16 %v1948
    %v1971 = vunpack.c.l.b16 %v1949
    %v1972 = vpack.c.b16 %v1965, %v1964
    %v1973 = vpack.c.b16 %v1967, %v1966
    %v1974 = vpack.c.b16 %v1969, %v1968
    %v1975 = vpack.c.b16 %v1971, %v1970
    %v1981 = vsel %vm245, %v1950, 0
    %1983 = vmatpush.bf16.msra.mxu0 0
    %1984 = vmatpush.bf16.msra.mxu0 0
    %1985 = vmatpush.bf16.msra.mxu0 0
    %1986 = vmatpush.bf16.msra.mxu0 0
    %1987 = vmatpush.bf16.msra.mxu0 %v1975
    %1988 = vmatpush.bf16.msra.mxu0 %v1974
    %1989 = vmatpush.bf16.msra.mxu0 %v1973
    %1990 = vmatpush.bf16.msra.mxu0 %v1972
    %1991 = vmatmul.bf16.gmra.mxu0 %v1981
    %v1992 = vpop.f32.mrf.mxu0
    %v1993 = vadd.f32 %v1954, %v1992
    %v1994 = vpop.f32.mrf.mxu0
    %v1995 = vadd.f32 %v1954, %v1994
    %1996 = vdwg.mxu0
    %v1997 = vmul.f32 %v1993, %v1993
    %v1998 = vmul.f32 %v1995, %v1995
    %v1999 = vmul.f32 %v1993, %v1997
    %v2000 = vmul.f32 %v1995, %v1998
    %v2001 = vmul.f32 %v1999, 0.044715
    %v2002 = vmul.f32 %v2000, 0.044715
    %v2003 = vadd.f32 %v1993, %v2001
    %v2004 = vadd.f32 %v1995, %v2002
    %v2005 = vmul.f32 %v2003, 0.7978846
    %v2006 = vmul.f32 %v2004, 0.7978846
    %v2007 = vtanh.pop %v2005
    %v2008 = vtanh.pop %v2006
    %v2009 = vadd.f32 %v2007, 1.0
    %v2010 = vadd.f32 %v2008, 1.0
    %v2011 = vmul.f32 %v2009, 0.5
    %v2012 = vmul.f32 %v2010, 0.5
    %v2013 = vmul.f32 %v1993, %v2011
    %v2014 = vmul.f32 %v1995, %v2012
    %s2015 = scalar_lea.vmem %s15, 64
    %v2016 = vld [vmem:[%s2015] sm:$0xf]
    %v2017 = vld [vmem:[%s2015 + $0x4] sm:$0xf]
    %v2018 = vld [vmem:[%s2015 + $0x8] sm:$0xf]
    %v2019 = vld [vmem:[%s2015 + $0xc] sm:$0xf]
    %v2020 = vld [vmem:[%s2015 + $0x10] sm:$0xf]
    %v2021 = vld [vmem:[%s2015 + $0x14] sm:$0xf]
    %v2022 = vld [vmem:[%s2015 + $0x18] sm:$0xf]
    %v2023 = vld [vmem:[%s2015 + $0x1c] sm:$0xf]
    %v2024 = vld [vmem:[%s2015 + $0x20] sm:$0xf]
    %v2025 = vld [vmem:[%s2015 + $0x24] sm:$0xf]
    %v2026 = vld [vmem:[%s2015 + $0x28] sm:$0xf]
    %v2027 = vld [vmem:[%s2015 + $0x2c] sm:$0xf]
    %v2028 = vld [vmem:[%s2015 + $0x30] sm:$0xf]
    %v2029 = vld [vmem:[%s2015 + $0x34] sm:$0xf]
    %v2030 = vld [vmem:[%s2015 + $0x38] sm:$0xf]
    %v2031 = vld [vmem:[%s2015 + $0x3c] sm:$0xf]
    %v2032 = vpack.c.bf16 %v2014, %v2013
    %s2033 = scalar_lea.vmem %s16, 1
    %v2034 = vld [vmem:[%s2033] sm:$0x1]
    %v2036 = vperm.slane %v2034, 0
    %v2054 = vunpack.c.l.b16 %v2016
    %v2055 = vunpack.c.l.b16 %v2017
    %v2056 = vunpack.c.l.b16 %v2018
    %v2057 = vunpack.c.l.b16 %v2019
    %v2058 = vunpack.c.l.b16 %v2020
    %v2059 = vunpack.c.l.b16 %v2021
    %v2060 = vunpack.c.l.b16 %v2022
    %v2061 = vunpack.c.l.b16 %v2023
    %v2062 = vunpack.c.l.b16 %v2024
    %v2063 = vunpack.c.l.b16 %v2025
    %v2064 = vunpack.c.l.b16 %v2026
    %v2065 = vunpack.c.l.b16 %v2027
    %v2066 = vunpack.c.l.b16 %v2028
    %v2067 = vunpack.c.l.b16 %v2029
    %v2068 = vunpack.c.l.b16 %v2030
    %v2069 = vunpack.c.l.b16 %v2031
    %v2070 = vpack.c.b16 %v2055, %v2054
    %v2071 = vpack.c.b16 %v2057, %v2056
    %v2072 = vpack.c.b16 %v2059, %v2058
    %v2073 = vpack.c.b16 %v2061, %v2060
    %v2074 = vpack.c.b16 %v2063, %v2062
    %v2075 = vpack.c.b16 %v2065, %v2064
    %v2076 = vpack.c.b16 %v2067, %v2066
    %v2077 = vpack.c.b16 %v2069, %v2068
    %2086 = vmatpush.bf16.msra.mxu0 %v2077
    %2087 = vmatpush.bf16.msra.mxu0 %v2076
    %2088 = vmatpush.bf16.msra.mxu0 %v2075
    %2089 = vmatpush.bf16.msra.mxu0 %v2074
    %2090 = vmatpush.bf16.msra.mxu0 %v2073
    %2091 = vmatpush.bf16.msra.mxu0 %v2072
    %2092 = vmatpush.bf16.msra.mxu0 %v2071
    %2093 = vmatpush.bf16.msra.mxu0 %v2070
    %2094 = vmatmul.bf16.gmra.mxu0 %v2032
    %v2095 = vpop.f32.mrf.mxu0
    %v2096 = vadd.f32 %v2036, %v2095
    %v2097 = vpop.f32.mrf.mxu0
    %v2098 = vadd.f32 %v2036, %v2097
    %2099 = vdwg.mxu0
    %v2100 = vadd.f32 %v1939, %v2096
    %v2101 = vadd.f32 %v1940, %v2098
    %s2102 = scalar_lea.vmem %s17, 1
    %v2103 = vld [vmem:[%s2102] sm:$0x1]
    %s2104 = scalar_lea.vmem %s18, 1
    %v2105 = vld [vmem:[%s2104] sm:$0x1]
    %v2106 = vsel %vm245, %v2100, 0.0
    %2107 = vadd.xlane.f32.xlu0 %v2106
    %v2108 = vpop.xlane.xlu0 %2107
    %v2109 = vsel %vm245, %v2101, 0.0
    %2110 = vadd.xlane.f32.xlu0 %v2109
    %v2111 = vpop.xlane.xlu0 %2110
    %v2112 = vmul.f32 %v2108, %v258
    %v2113 = vmul.f32 %v2111, %v258
    %v2114 = vsub.f32 %v2100, %v2112
    %v2115 = vsub.f32 %v2101, %v2113
    %v2116 = vmul.f32 %v2114, %v2114
    %v2117 = vmul.f32 %v2115, %v2115
    %v2118 = vsel %vm245, %v2116, 0.0
    %2119 = vadd.xlane.f32.xlu0 %v2118
    %v2120 = vpop.xlane.xlu0 %2119
    %v2121 = vsel %vm245, %v2117, 0.0
    %2122 = vadd.xlane.f32.xlu0 %v2121
    %v2123 = vpop.xlane.xlu0 %2122
    %v2124 = vmul.f32 %v2120, %v258
    %v2125 = vmul.f32 %v2123, %v258
    %v2126 = vadd.f32 %v2124, 1e-12
    %v2127 = vadd.f32 %v2125, 1e-12
    %v2128 = vrsqrt.pop %v2126
    %v2129 = vmul.f32 %v2128, %v2126
    %v2130 = vmul.f32 %v2129, %v2128
    %v2131 = vmul.f32 0.5, %v2130
    %v2132 = vsub.f32 1.5, %v2131
    %v2133 = vmul.f32 %v2128, %v2132
    %vm2134 = vweird.f32 %v2126
    %vm2135 = vweird.f32 %v2128
    %vm2136 = vmor %vm2134, %vm2135
    %v2137 = vsel %vm2136, %v2128, %v2133
    %v2138 = vrsqrt.pop %v2127
    %v2139 = vmul.f32 %v2138, %v2127
    %v2140 = vmul.f32 %v2139, %v2138
    %v2141 = vmul.f32 0.5, %v2140
    %v2142 = vsub.f32 1.5, %v2141
    %v2143 = vmul.f32 %v2138, %v2142
    %vm2144 = vweird.f32 %v2127
    %vm2145 = vweird.f32 %v2138
    %vm2146 = vmor %vm2144, %vm2145
    %v2147 = vsel %vm2146, %v2138, %v2143
    %v2148 = vmul.f32 %v2114, %v2137
    %v2149 = vmul.f32 %v2115, %v2147
    %v2151 = vperm.slane %v2103, 0
    %v2153 = vmul.f32 %v2148, %v2151
    %v2154 = vmul.f32 %v2149, %v2151
    %v2156 = vperm.slane %v2105, 0
    %v2158 = vadd.f32 %v2153, %v2156
    %v2159 = vadd.f32 %v2154, %v2156
    %v2161 = vrot.slane %v2159, 7
    %vm2163 = vcmask 1040384
    %v2164 = vsel %vm2163, %v2158, %v2161
    %v2165 = vld [vmem:[%s19] sm:$0xf]
    %v2166 = vld [vmem:[%s19 + $0x4] sm:$0xf]
    %v2167 = vld [vmem:[%s19 + $0x8] sm:$0xf]
    %v2168 = vld [vmem:[%s19 + $0xc] sm:$0xf]
    %v2169 = vld [vmem:[%s19 + $0x10] sm:$0xf]
    %v2170 = vld [vmem:[%s19 + $0x14] sm:$0xf]
    %v2171 = vld [vmem:[%s19 + $0x18] sm:$0xf]
    %v2172 = vld [vmem:[%s19 + $0x1c] sm:$0xf]
    %v2173 = vpack.c.bf16 %v2164, %v2164
    %v2174 = vld [vmem:[%s20] sm:$0x1]
    %v2176 = vperm.slane %v2174, 0
    %v2186 = vunpack.c.l.b16 %v2165
    %v2187 = vunpack.c.l.b16 %v2166
    %v2188 = vunpack.c.l.b16 %v2167
    %v2189 = vunpack.c.l.b16 %v2168
    %v2190 = vunpack.c.l.b16 %v2169
    %v2191 = vunpack.c.l.b16 %v2170
    %v2192 = vunpack.c.l.b16 %v2171
    %v2193 = vunpack.c.l.b16 %v2172
    %v2194 = vpack.c.b16 %v2187, %v2186
    %v2195 = vpack.c.b16 %v2189, %v2188
    %v2196 = vpack.c.b16 %v2191, %v2190
    %v2197 = vpack.c.b16 %v2193, %v2192
    %v2203 = vsel %vm245, %v2173, 0
    %2205 = vmatpush.bf16.msra.mxu0 0
    %2206 = vmatpush.bf16.msra.mxu0 0
    %2207 = vmatpush.bf16.msra.mxu0 0
    %2208 = vmatpush.bf16.msra.mxu0 0
    %2209 = vmatpush.bf16.msra.mxu0 %v2197
    %2210 = vmatpush.bf16.msra.mxu0 %v2196
    %2211 = vmatpush.bf16.msra.mxu0 %v2195
    %2212 = vmatpush.bf16.msra.mxu0 %v2194
    %2213 = vmatmul.bf16.gmra.mxu0 %v2203
    %v2214 = vpop.f32.mrf.mxu0
    %v2215 = vadd.f32 %v2176, %v2214
    %v2216 = vpop.f32.mrf.mxu0
    %2217 = vdwg.mxu0
    %v2218 = vtanh.pop %v2215
    %v2219 = vld [vmem:[%s21] sm:$0xf]
    %v2220 = vld [vmem:[%s21 + $0x4] sm:$0xf]
    %v2221 = vld [vmem:[%s21 + $0x8] sm:$0xf]
    %v2222 = vld [vmem:[%s21 + $0xc] sm:$0xf]
    %v2223 = vld [vmem:[%s21 + $0x10] sm:$0xf]
    %v2224 = vld [vmem:[%s21 + $0x14] sm:$0xf]
    %v2225 = vld [vmem:[%s21 + $0x18] sm:$0xf]
    %v2226 = vld [vmem:[%s21 + $0x1c] sm:$0xf]
    %v2227 = vpack.c.bf16 %v2218, %v2218
    %v2228 = vld [vmem:[%s22] sm:$0x1]
    %v2230 = vperm.slane %v2228, 0
    %v2240 = vunpack.c.l.b16 %v2219
    %v2241 = vunpack.c.l.b16 %v2220
    %v2242 = vunpack.c.l.b16 %v2221
    %v2243 = vunpack.c.l.b16 %v2222
    %v2244 = vunpack.c.l.b16 %v2223
    %v2245 = vunpack.c.l.b16 %v2224
    %v2246 = vunpack.c.l.b16 %v2225
    %v2247 = vunpack.c.l.b16 %v2226
    %v2248 = vpack.c.b16 %v2241, %v2240
    %v2249 = vpack.c.b16 %v2243, %v2242
    %v2250 = vpack.c.b16 %v2245, %v2244
    %v2251 = vpack.c.b16 %v2247, %v2246
    %v2257 = vsel %vm245, %v2227, 0
    %2259 = vmatpush.bf16.msra.mxu0 0
    %2260 = vmatpush.bf16.msra.mxu0 0
    %2261 = vmatpush.bf16.msra.mxu0 0
    %2262 = vmatpush.bf16.msra.mxu0 0
    %2263 = vmatpush.bf16.msra.mxu0 %v2251
    %2264 = vmatpush.bf16.msra.mxu0 %v2250
    %2265 = vmatpush.bf16.msra.mxu0 %v2249
    %2266 = vmatpush.bf16.msra.mxu0 %v2248
    %2267 = vmatmul.bf16.gmra.mxu0 %v2257
    %v2268 = vpop.f32.mrf.mxu0
    %v2269 = vadd.f32 %v2230, %v2268
    %v2270 = vpop.f32.mrf.mxu0
    %2271 = vdwg.mxu0
    %v2272 = vld [vmem:[%s23] sm:$0xf]
    %v2273 = vld [vmem:[%s23 + $0x4] sm:$0xf]
    %v2274 = vld [vmem:[%s23 + $0x8] sm:$0xf]
    %v2275 = vld [vmem:[%s23 + $0xc] sm:$0xf]
    %v2276 = vpack.c.bf16 %v2269, %v2269
    %v2277 = vld [vmem:[%s24] sm:$0x1]
    %v2279 = vperm.slane %v2277, 0
    %v2285 = vunpack.c.l.b16 %v2272
    %v2286 = vunpack.c.l.b16 %v2273
    %v2287 = vunpack.c.l.b16 %v2274
    %v2288 = vunpack.c.l.b16 %v2275
    %v2289 = vpack.c.b16 %v2286, %v2285
    %v2290 = vpack.c.b16 %v2288, %v2287
    %v2294 = vsel %vm904, %v2276, 0
    %2296 = vmatpush.bf16.msra.mxu0 0
    %2297 = vmatpush.bf16.msra.mxu0 0
    %2298 = vmatpush.bf16.msra.mxu0 0
    %2299 = vmatpush.bf16.msra.mxu0 0
    %2300 = vmatpush.bf16.msra.mxu0 0
    %2301 = vmatpush.bf16.msra.mxu0 0
    %2302 = vmatpush.bf16.msra.mxu0 %v2290
    %2303 = vmatpush.bf16.msra.mxu0 %v2289
    %2304 = vmatmul.bf16.gmra.mxu0 %v2294
    %v2305 = vpop.f32.mrf.mxu0
    %v2306 = vadd.f32 %v2279, %v2305
    %v2307 = vpop.f32.mrf.mxu0
    %2308 = vdwg.mxu0
    %vm2309 = vcmask 517120
    %2310 = vst.msk [vmem:[#allocation10] sm:$0x3] %vm2309, %v2218
    %vm2311 = vcmask 254976
    %2312 = vst.msk [vmem:[#allocation11] sm:$0x3] %vm2311, %v2269
    %vm2313 = vcmask 25600
    %2314 = vst.msk [vmem:[#allocation13] sm:$0x3] %vm2313, %v2306
    // Predicated region
    $region118: #{tpu_custom_call.1} parent=1 // pred_check
      _
    $region119: #{tpu_custom_call.1} parent=1 // pred_check_branch
      %2316 = sbr.rel (0) target = $region121
    $region120: #{tpu_custom_call.1} parent=1 // pred_region
      %2318 = vsyncadd [#allocation4], 0
      %s2320 = sshll.u32 [#allocation10], 4
      %s2321 = int_to_ptr.vmem [resolvable:$true] %s2320
      %s2322 = sshll.u32 %s25, 4
      %s2323 = int_to_ptr.hbm [resolvable:$true] %s2322
      %2325 = dma.vmem_to_hbm [thread:$0]  %s2321, 32, %s2323, [#allocation4]
    $region121: #{tpu_custom_call.1} parent=1 // pred_fallthru
      _
    // Predicated region
    $region122: #{tpu_custom_call.1} parent=1 // pred_check
      _
    $region123: #{tpu_custom_call.1} parent=1 // pred_check_branch
      %2327 = sbr.rel (0) target = $region125
    $region124: #{tpu_custom_call.1} parent=1 // pred_region
      %2329 = vsyncadd [#allocation12], 0
      %s2331 = sshll.u32 [#allocation11], 4
      %s2332 = int_to_ptr.vmem [resolvable:$true] %s2331
      %s2333 = sshll.u32 %s26, 4
      %s2334 = int_to_ptr.hbm [resolvable:$true] %s2333
      %2336 = dma.vmem_to_hbm [thread:$0]  %s2332, 32, %s2334, [#allocation12]
    $region125: #{tpu_custom_call.1} parent=1 // pred_fallthru
      _
    // Predicated region
    $region126: #{tpu_custom_call.1} parent=1 // pred_check
      _
    $region127: #{tpu_custom_call.1} parent=1 // pred_check_branch
      %2338 = sbr.rel (0) target = $region129
    $region128: #{tpu_custom_call.1} parent=1 // pred_region
      %2340 = vsyncadd [#allocation12], 0
      %s2342 = sshll.u32 [#allocation13], 4
      %s2343 = int_to_ptr.vmem [resolvable:$true] %s2342
      %s2344 = sshll.u32 %s27, 4
      %s2345 = int_to_ptr.hbm [resolvable:$true] %s2344
      %2347 = dma.vmem_to_hbm [thread:$0]  %s2343, 32, %s2345, [#allocation12]
    $region129: #{tpu_custom_call.1} parent=1 // pred_fallthru
      _
    // Predicated region
    $region130: #{tpu_custom_call.1} parent=1 // pred_check
      _
    $region131: #{tpu_custom_call.1} parent=1 // pred_check_branch
      %2349 = sbr.rel (0) target = $region133
    $region132: #{tpu_custom_call.1} parent=1 // pred_region
      %2351 = dma.done [#allocation4], 32
    $region133: #{tpu_custom_call.1} parent=1 // pred_fallthru
      _
    // Predicated region
    $region134: #{tpu_custom_call.1} parent=1 // pred_check
      _
    $region135: #{tpu_custom_call.1} parent=1 // pred_check_branch
      %2353 = sbr.rel (0) target = $region137
    $region136: #{tpu_custom_call.1} parent=1 // pred_region
      %2355 = dma.done [#allocation12], 32
    $region137: #{tpu_custom_call.1} parent=1 // pred_fallthru
      _
    // Predicated region
    $region138: #{tpu_custom_call.1} parent=1 // pred_check
      _
    $region139: #{tpu_custom_call.1} parent=1 // pred_check_branch
      %2357 = sbr.rel (0) target = $region141
    $region140: #{tpu_custom_call.1} parent=1 // pred_region
      %2359 = dma.done [#allocation12], 32
    $region141: #{tpu_custom_call.1} parent=1 // pred_fallthru
      _
    %2360 = vsyncpa [#allocation3], 1
    %2361 = vsyncpa [#allocation6], 1
    %2362 = vsyncpa [#allocation9], 1
    %2363 = vsyncpa [#allocation4], 1
    %2364 = vsyncpa [#allocation12], 1

</llo_original>
